<compile_context>
chip_gen: v7x
topology: tpu7x:2x2x1
jax: 0.10.0
libtpu: 0.0.40
codegen_flags: <defaults>
</compile_context>

<pallas_src>
import functools

import jax
import jax.numpy as jnp
from jax import lax
from jax.experimental import pallas as pl
from jax.experimental.pallas import tpu as pltpu


def resblock_kernel(x_ref, hal_ref, w1_ref, b1_ref, w2_ref, b2_ref, o_ref,
                    pad_ref, col_ref, *, res_scale, K, m_chunk_rows):
    """One (batch, H-band) tile per grid step.

    x_ref   : (TH, W, Cp)          f32 input band (residual source)
    hal_ref : (4P, W, Cp)          mxu-dtype halo rows (2P above + 2P below)
    w*_ref  : (K*K*Cp, Cp)         im2col weight matrices (mxu dtype)
    b*_ref  : (1, Cp)              f32 conv biases (lane padded)
    o_ref   : (TH, W, Cp)          f32 output band
    pad_ref : (TH+4P, W+2P, Cp)    mxu-dtype padded scratch (reused for both convs)
    col_ref : (TH+2P, W, K*K*Cp)   mxu-dtype im2col scratch (reused for both convs)
    """
    TH, W, Cp = x_ref.shape
    P = K // 2
    R1 = TH + 2 * P                    # conv1 output rows (band + conv2 halo)
    KcP = col_ref.shape[-1]            # K*K*Cp
    cdt = col_ref.dtype
    band = pl.program_id(1)
    last_band = pl.num_programs(1) - 1

    # --- zero the W-direction frame (SAME padding along W) ------------------
    # Done every step: both grid axes are "parallel", each core has its own
    # (uninitialized) scratch, so a pid==0-only clear would be unsafe.
    zcols = jnp.zeros((TH + 4 * P, P, Cp), pad_ref.dtype)
    pad_ref[:, 0:P, :] = zcols
    pad_ref[:, W + P:W + 2 * P, :] = zcols

    # --- conv1 input band: 2P halo rows above, TH centre rows, 2P below -----
    pad_ref[0:2 * P, P:P + W, :] = hal_ref[0:2 * P, :, :]
    pad_ref[2 * P:2 * P + TH, P:P + W, :] = x_ref[...].astype(cdt)
    pad_ref[2 * P + TH:4 * P + TH, P:P + W, :] = hal_ref[2 * P:4 * P, :, :]

    def im2col(rows):
        # col[r, w, (kh*K+kw)*Cp : +Cp] = pad[r+kh, w+kw, :]; all slices lane-aligned.
        for kh in range(K):
            for kw in range(K):
                j = kh * K + kw
                col_ref[0:rows, :, j * Cp:(j + 1) * Cp] = \
                    pad_ref[kh:kh + rows, kw:kw + W, :]

    # --- conv1: deep MXU matmul per row-chunk, fused bias+ReLU ---------------
    # Result (incl. the P-row halo) becomes conv2's padded input (pad reused).
    im2col(R1)
    for r0 in range(0, R1, m_chunk_rows):
        r1 = min(r0 + m_chunk_rows, R1)
        a = col_ref[r0:r1, :, :].reshape((r1 - r0) * W, KcP)
        y = jnp.dot(a, w1_ref[...], preferred_element_type=jnp.float32)
        y = jnp.maximum(y + b1_ref[...], 0.0)
        pad_ref[r0:r1, P:P + W, :] = y.reshape(r1 - r0, W, Cp).astype(cdt)

    # Halo rows that fall outside the image must be ZERO for conv2's SAME pad
    # (conv1 computed on the zero-padded border is nonzero because of the bias).
    zrows = jnp.zeros((P, W + 2 * P, Cp), pad_ref.dtype)

    @pl.when(band == 0)
    def _():
        pad_ref[0:P, :, :] = zrows

    @pl.when(band == last_band)
    def _():
        pad_ref[R1 - P:R1, :, :] = zrows

    # --- conv2 + bias (+ res_scale) + residual -------------------------------
    im2col(TH)
    for r0 in range(0, TH, m_chunk_rows):
        r1 = min(r0 + m_chunk_rows, TH)
        a = col_ref[r0:r1, :, :].reshape((r1 - r0) * W, KcP)
        y = jnp.dot(a, w2_ref[...], preferred_element_type=jnp.float32) + b2_ref[...]
        if res_scale != 1.0:               # static arg: skip the VPU mul when 1
            y = y * res_scale
        o_ref[r0:r1, :, :] = (y.reshape(r1 - r0, W, Cp)
                              + x_ref[r0:r1, :, :].astype(jnp.float32)
                              ).astype(o_ref.dtype)


def _pick_band_height(H, th_max):
    """Largest divisor of H that is <= th_max, preferring >= 2 bands."""
    divs = [d for d in range(1, H + 1) if H % d == 0]
    cands = [d for d in divs if d <= th_max and (H // d) >= 2]
    if not cands:
        cands = [d for d in divs if d <= th_max] or [H]
    return max(cands)


def resblock_pallas(x_nhwc, w1, b1, w2, b2, *, res_scale=1.0,
                    mxu_dtype=jnp.bfloat16, th_max=16):
    """x_nhwc: (B,H,W,C) f32; w*: (K,K,C,C) HWIO; b*: (1,C). Returns (B,H,W,C)."""
    B, H, W, C = x_nhwc.shape
    K = w1.shape[0]
    P = K // 2
    LANES = 128
    Cp = ((C + LANES - 1) // LANES) * LANES            # lane-dense channel dim

    TH = _pick_band_height(H, th_max)
    nb = H // TH

    # ---- wrapper-side layout plumbing (cheap XLA ops) -----------------------
    def pad_c(a, axis):
        pads = [(0, 0)] * a.ndim
        pads[axis] = (0, Cp - C)
        return jnp.pad(a, pads)

    xp = pad_c(x_nhwc, 3)                              # (B,H,W,Cp) f32

    # Per-band halo rows (2P above + 2P below, zero at image boundaries) so
    # every BlockSpec block is non-overlapping and fully auto-pipelined.
    xz = jnp.pad(xp, ((0, 0), (2 * P, 2 * P), (0, 0), (0, 0)))
    tops = jnp.stack([xz[:, i * TH:i * TH + 2 * P] for i in range(nb)], axis=1)
    bots = jnp.stack([xz[:, i * TH + TH + 2 * P:i * TH + TH + 4 * P]
                      for i in range(nb)], axis=1)
    halos = jnp.concatenate([tops, bots], axis=2).astype(mxu_dtype)  # (B,nb,4P,W,Cp)

    def w_mat(w):
        # HWIO -> im2col matrix (K*K*Cp, Cp); row index = (kh, kw, cin).
        wp = jnp.pad(w, ((0, 0), (0, 0), (0, Cp - C), (0, Cp - C)))
        return wp.reshape(K * K * Cp, Cp).astype(mxu_dtype)

    w1m, w2m = w_mat(w1), w_mat(w2)
    b1p, b2p = pad_c(b1, 1), pad_c(b2, 1)              # (1,Cp) f32

    m_chunk_rows = max(1, 1024 // W)                   # ~1k flattened rows / dot

    kernel = functools.partial(resblock_kernel, res_scale=float(res_scale),
                               K=K, m_chunk_rows=m_chunk_rows)

    # ---- explicit VMEM budget (review item 6) -------------------------------
    mxu_b = jnp.dtype(mxu_dtype).itemsize
    x_b = jnp.dtype(x_nhwc.dtype).itemsize
    scratch_bytes = ((TH + 4 * P) * (W + 2 * P) * Cp * mxu_b          # pad
                     + (TH + 2 * P) * W * (K * K * Cp) * mxu_b)       # col
    block_bytes = (TH * W * Cp * x_b                                  # x band
                   + 4 * P * W * Cp * mxu_b                           # halo
                   + TH * W * Cp * x_b)                               # out band
    weight_bytes = 2 * K * K * Cp * Cp * mxu_b + 2 * Cp * 4
    vmem_limit = int(2 * (scratch_bytes + 2 * (block_bytes + weight_bytes))
                     + (8 << 20))
    vmem_limit = max(vmem_limit, 32 << 20)
    vmem_limit = min(vmem_limit, 112 << 20)

    cost = pl.CostEstimate(
        flops=2 * 2 * B * H * W * K * K * Cp * Cp,     # two convs, MAC = 2 flops
        transcendentals=0,
        bytes_accessed=(2 * B * H * W * Cp * x_b                      # x in + out
                        + B * nb * 4 * P * W * Cp * mxu_b             # halos
                        + 2 * K * K * Cp * Cp * mxu_b + 2 * Cp * 4))

    out = pl.pallas_call(
        kernel,
        out_shape=jax.ShapeDtypeStruct((B, H, W, Cp), x_nhwc.dtype),
        grid_spec=pltpu.PrefetchScalarGridSpec(
            num_scalar_prefetch=0,
            grid=(B, nb),
            in_specs=[
                # per-band input (batch dim squeezed)
                pl.BlockSpec((None, TH, W, Cp), lambda b, i: (b, i, 0, 0)),
                # per-band halo rows (batch & band dims squeezed)
                pl.BlockSpec((None, None, 4 * P, W, Cp),
                             lambda b, i: (b, i, 0, 0, 0)),
                # weights / biases: whole arrays, resident across the grid
                pl.BlockSpec((K * K * Cp, Cp), lambda b, i: (0, 0)),
                pl.BlockSpec((1, Cp), lambda b, i: (0, 0)),
                pl.BlockSpec((K * K * Cp, Cp), lambda b, i: (0, 0)),
                pl.BlockSpec((1, Cp), lambda b, i: (0, 0)),
            ],
            out_specs=pl.BlockSpec((None, TH, W, Cp), lambda b, i: (b, i, 0, 0)),
            scratch_shapes=[
                pltpu.VMEM((TH + 4 * P, W + 2 * P, Cp), mxu_dtype),   # padded band
                pltpu.VMEM((TH + 2 * P, W, K * K * Cp), mxu_dtype),   # im2col buf
            ],
        ),
        compiler_params=pltpu.CompilerParams(
            dimension_semantics=("parallel", "parallel"),
            vmem_limit_bytes=vmem_limit),
        cost_estimate=cost,
    )(xp, halos, w1m, b1p, w2m, b2p)

    return out[..., :C]                                # strip lane padding


def resblock_ref(x, w1, b1, w2, b2, res_scale):
    """Pure-JAX reference (NHWC / HWIO)."""
    dn = lax.conv_dimension_numbers(x.shape, w1.shape, ('NHWC', 'HWIO', 'NHWC'))
    y = lax.conv_general_dilated(x, w1, (1, 1), 'SAME', dimension_numbers=dn) + b1
    y = jnp.maximum(y, 0.0)
    y = lax.conv_general_dilated(y, w2, (1, 1), 'SAME', dimension_numbers=dn) + b2
    return y * res_scale + x


if __name__ == "__main__":
    # small shapes consistent with the module: B=2, C=4, H=W=16, 3x3 convs
    B, C, H, W, K = 2, 4, 16, 16, 3
    res_scale = 1.0

    key = jax.random.PRNGKey(0)
    k1, k2, k3, k4, k5 = jax.random.split(key, 5)

    # PyTorch-style NCHW input
    x_nchw = jax.random.normal(k1, (B, C, H, W), jnp.float32)

    # deterministic parameter init (Conv2d-like uniform(-1/sqrt(fan_in), ...))
    fan_in = C * K * K
    bound = 1.0 / (fan_in ** 0.5)
    w1 = jax.random.uniform(k2, (K, K, C, C), jnp.float32, -bound, bound)
    b1 = jax.random.uniform(k3, (1, C), jnp.float32, -bound, bound)
    w2 = jax.random.uniform(k4, (K, K, C, C), jnp.float32, -bound, bound)
    b2 = jax.random.uniform(k5, (1, C), jnp.float32, -bound, bound)

    # NCHW -> NHWC for the kernel
    x_nhwc = jnp.transpose(x_nchw, (0, 2, 3, 1))
    ref = resblock_ref(x_nhwc, w1, b1, w2, b2, res_scale)

    # exact-precision path: strict check
    out_f32 = resblock_pallas(x_nhwc, w1, b1, w2, b2, res_scale=res_scale,
                              mxu_dtype=jnp.float32)
    out_f32 = jax.block_until_ready(out_f32)
    err_f32 = float(jnp.max(jnp.abs(out_f32 - ref)))
    assert jnp.allclose(out_f32, ref, atol=1e-4, rtol=1e-4), \
        f"f32 path max abs err {err_f32}"

    # default (recommended) bf16-MXU path: f32 accumulation, dtype-appropriate tolerance
    out_bf16 = resblock_pallas(x_nhwc, w1, b1, w2, b2, res_scale=res_scale)
    out_bf16 = jax.block_until_ready(out_bf16)
    err_bf16 = float(jnp.max(jnp.abs(out_bf16 - ref)))
    assert jnp.allclose(out_bf16, ref, atol=5e-2, rtol=5e-2), \
        f"bf16 path max abs err {err_bf16}"

    # transpose back to NCHW to match the PyTorch module's output convention
    out_nchw = jax.block_until_ready(jnp.transpose(out_bf16, (0, 3, 1, 2)))

    print("KERNEL_OK")
</pallas_src>

<mosaic_0001>
module attributes {stable_mosaic.version = 11 : i64} {
  func.func @resblock_kernel(%arg0: i32, %arg1: i32, %arg2: memref<1x8x16x128xf32, #tpu.memory_space<vmem>>, %arg3: memref<1x1x4x16x128xf32, #tpu.memory_space<vmem>>, %arg4: memref<1152x128xf32, #tpu.memory_space<vmem>>, %arg5: memref<1x128xf32, #tpu.memory_space<vmem>>, %arg6: memref<1152x128xf32, #tpu.memory_space<vmem>>, %arg7: memref<1x128xf32, #tpu.memory_space<vmem>>, %arg8: memref<1x8x16x128xf32, #tpu.memory_space<vmem>>, %arg9: memref<12x18x128xf32, #tpu.memory_space<vmem>>, %arg10: memref<10x16x1152xf32, #tpu.memory_space<vmem>>) attributes {dimension_semantics = [#tpu.dimension_semantics<parallel>, #tpu.dimension_semantics<parallel>], iteration_bounds = array<i64: 2, 2>, scalar_prefetch = 0 : i64, scratch_operands = 2 : i64, tpu.core_type = #tpu.core_type<tc>, window_params = [{transform_indices = @transform_0, window_bounds = array<i64: 1, 8, 16, 128>}, {transform_indices = @transform_1, window_bounds = array<i64: 1, 1, 4, 16, 128>}, {pipeline_mode = #tpu.pipeline_mode<synchronous>, transform_indices = @transform_2, window_bounds = array<i64: 1152, 128>}, {pipeline_mode = #tpu.pipeline_mode<synchronous>, transform_indices = @transform_3, window_bounds = array<i64: 1, 128>}, {pipeline_mode = #tpu.pipeline_mode<synchronous>, transform_indices = @transform_4, window_bounds = array<i64: 1152, 128>}, {pipeline_mode = #tpu.pipeline_mode<synchronous>, transform_indices = @transform_5, window_bounds = array<i64: 1, 128>}, {transform_indices = @transform_6, window_bounds = array<i64: 1, 8, 16, 128>}]} {
    %cst = arith.constant 0.000000e+00 : f32
    %0 = vector.broadcast %cst : f32 to vector<12x1x128xf32>
    %c0 = arith.constant 0 : index
    %c0_0 = arith.constant 0 : index
    %c0_1 = arith.constant 0 : index
    %1 = vector.load %arg9[%c0, %c0_0, %c0_1] : memref<12x18x128xf32, #tpu.memory_space<vmem>>, vector<12x1x128xf32>
    tpu.vector_store %arg9[%c0, %c0_0, %c0_1], %0 {strides = array<i32>} : memref<12x18x128xf32, #tpu.memory_space<vmem>>, vector<12x1x128xf32>,
    %c0_2 = arith.constant 0 : index
    %c17 = arith.constant 17 : index
    %c0_3 = arith.constant 0 : index
    %2 = vector.load %arg9[%c0_2, %c17, %c0_3] : memref<12x18x128xf32, #tpu.memory_space<vmem>>, vector<12x1x128xf32>
    tpu.vector_store %arg9[%c0_2, %c17, %c0_3], %0 {strides = array<i32>} : memref<12x18x128xf32, #tpu.memory_space<vmem>>, vector<12x1x128xf32>,
    %c0_4 = arith.constant 0 : index
    %c0_5 = arith.constant 0 : index
    %c0_6 = arith.constant 0 : index
    %c0_7 = arith.constant 0 : index
    %c0_8 = arith.constant 0 : index
    %3 = vector.load %arg3[%c0_4, %c0_5, %c0_6, %c0_7, %c0_8] : memref<1x1x4x16x128xf32, #tpu.memory_space<vmem>>, vector<1x1x2x16x128xf32>
    %4 = vector.shape_cast %3 : vector<1x1x2x16x128xf32> to vector<2x16x128xf32>
    %c0_9 = arith.constant 0 : index
    %c1 = arith.constant 1 : index
    %c0_10 = arith.constant 0 : index
    %5 = vector.load %arg9[%c0_9, %c1, %c0_10] : memref<12x18x128xf32, #tpu.memory_space<vmem>>, vector<2x16x128xf32>
    tpu.vector_store %arg9[%c0_9, %c1, %c0_10], %4 {strides = array<i32>} : memref<12x18x128xf32, #tpu.memory_space<vmem>>, vector<2x16x128xf32>,
    %c0_11 = arith.constant 0 : index
    %c0_12 = arith.constant 0 : index
    %c0_13 = arith.constant 0 : index
    %c0_14 = arith.constant 0 : index
    %6 = vector.load %arg2[%c0_11, %c0_12, %c0_13, %c0_14] : memref<1x8x16x128xf32, #tpu.memory_space<vmem>>, vector<1x8x16x128xf32>
    %7 = vector.shape_cast %6 : vector<1x8x16x128xf32> to vector<8x16x128xf32>
    %c2 = arith.constant 2 : index
    %c1_15 = arith.constant 1 : index
    %c0_16 = arith.constant 0 : index
    %8 = vector.load %arg9[%c2, %c1_15, %c0_16] : memref<12x18x128xf32, #tpu.memory_space<vmem>>, vector<8x16x128xf32>
    tpu.vector_store %arg9[%c2, %c1_15, %c0_16], %7 {strides = array<i32>} : memref<12x18x128xf32, #tpu.memory_space<vmem>>, vector<8x16x128xf32>,
    %c0_17 = arith.constant 0 : index
    %c0_18 = arith.constant 0 : index
    %c2_19 = arith.constant 2 : index
    %c0_20 = arith.constant 0 : index
    %c0_21 = arith.constant 0 : index
    %9 = vector.load %arg3[%c0_17, %c0_18, %c2_19, %c0_20, %c0_21] : memref<1x1x4x16x128xf32, #tpu.memory_space<vmem>>, vector<1x1x2x16x128xf32>
    %10 = vector.shape_cast %9 : vector<1x1x2x16x128xf32> to vector<2x16x128xf32>
    %c10 = arith.constant 10 : index
    %c1_22 = arith.constant 1 : index
    %c0_23 = arith.constant 0 : index
    %11 = vector.load %arg9[%c10, %c1_22, %c0_23] : memref<12x18x128xf32, #tpu.memory_space<vmem>>, vector<2x16x128xf32>
    tpu.vector_store %arg9[%c10, %c1_22, %c0_23], %10 {strides = array<i32>} : memref<12x18x128xf32, #tpu.memory_space<vmem>>, vector<2x16x128xf32>,
    %c0_24 = arith.constant 0 : index
    %c0_25 = arith.constant 0 : index
    %c0_26 = arith.constant 0 : index
    %12 = vector.load %arg9[%c0_24, %c0_25, %c0_26] : memref<12x18x128xf32, #tpu.memory_space<vmem>>, vector<10x16x128xf32>
    %c0_27 = arith.constant 0 : index
    %c0_28 = arith.constant 0 : index
    %c0_29 = arith.constant 0 : index
    %13 = vector.load %arg10[%c0_27, %c0_28, %c0_29] : memref<10x16x1152xf32, #tpu.memory_space<vmem>>, vector<10x16x128xf32>
    tpu.vector_store %arg10[%c0_27, %c0_28, %c0_29], %12 {strides = array<i32>} : memref<10x16x1152xf32, #tpu.memory_space<vmem>>, vector<10x16x128xf32>,
    %c0_30 = arith.constant 0 : index
    %c1_31 = arith.constant 1 : index
    %c0_32 = arith.constant 0 : index
    %14 = vector.load %arg9[%c0_30, %c1_31, %c0_32] : memref<12x18x128xf32, #tpu.memory_space<vmem>>, vector<10x16x128xf32>
    %c0_33 = arith.constant 0 : index
    %c0_34 = arith.constant 0 : index
    %c128 = arith.constant 128 : index
    %15 = vector.load %arg10[%c0_33, %c0_34, %c128] : memref<10x16x1152xf32, #tpu.memory_space<vmem>>, vector<10x16x128xf32>
    tpu.vector_store %arg10[%c0_33, %c0_34, %c128], %14 {strides = array<i32>} : memref<10x16x1152xf32, #tpu.memory_space<vmem>>, vector<10x16x128xf32>,
    %c0_35 = arith.constant 0 : index
    %c2_36 = arith.constant 2 : index
    %c0_37 = arith.constant 0 : index
    %16 = vector.load %arg9[%c0_35, %c2_36, %c0_37] : memref<12x18x128xf32, #tpu.memory_space<vmem>>, vector<10x16x128xf32>
    %c0_38 = arith.constant 0 : index
    %c0_39 = arith.constant 0 : index
    %c256 = arith.constant 256 : index
    %17 = vector.load %arg10[%c0_38, %c0_39, %c256] : memref<10x16x1152xf32, #tpu.memory_space<vmem>>, vector<10x16x128xf32>
    tpu.vector_store %arg10[%c0_38, %c0_39, %c256], %16 {strides = array<i32>} : memref<10x16x1152xf32, #tpu.memory_space<vmem>>, vector<10x16x128xf32>,
    %c1_40 = arith.constant 1 : index
    %c0_41 = arith.constant 0 : index
    %c0_42 = arith.constant 0 : index
    %18 = vector.load %arg9[%c1_40, %c0_41, %c0_42] : memref<12x18x128xf32, #tpu.memory_space<vmem>>, vector<10x16x128xf32>
    %c0_43 = arith.constant 0 : index
    %c0_44 = arith.constant 0 : index
    %c384 = arith.constant 384 : index
    %19 = vector.load %arg10[%c0_43, %c0_44, %c384] : memref<10x16x1152xf32, #tpu.memory_space<vmem>>, vector<10x16x128xf32>
    tpu.vector_store %arg10[%c0_43, %c0_44, %c384], %18 {strides = array<i32>} : memref<10x16x1152xf32, #tpu.memory_space<vmem>>, vector<10x16x128xf32>,
    %c1_45 = arith.constant 1 : index
    %c1_46 = arith.constant 1 : index
    %c0_47 = arith.constant 0 : index
    %20 = vector.load %arg9[%c1_45, %c1_46, %c0_47] : memref<12x18x128xf32, #tpu.memory_space<vmem>>, vector<10x16x128xf32>
    %c0_48 = arith.constant 0 : index
    %c0_49 = arith.constant 0 : index
    %c512 = arith.constant 512 : index
    %21 = vector.load %arg10[%c0_48, %c0_49, %c512] : memref<10x16x1152xf32, #tpu.memory_space<vmem>>, vector<10x16x128xf32>
    tpu.vector_store %arg10[%c0_48, %c0_49, %c512], %20 {strides = array<i32>} : memref<10x16x1152xf32, #tpu.memory_space<vmem>>, vector<10x16x128xf32>,
    %c1_50 = arith.constant 1 : index
    %c2_51 = arith.constant 2 : index
    %c0_52 = arith.constant 0 : index
    %22 = vector.load %arg9[%c1_50, %c2_51, %c0_52] : memref<12x18x128xf32, #tpu.memory_space<vmem>>, vector<10x16x128xf32>
    %c0_53 = arith.constant 0 : index
    %c0_54 = arith.constant 0 : index
    %c640 = arith.constant 640 : index
    %23 = vector.load %arg10[%c0_53, %c0_54, %c640] : memref<10x16x1152xf32, #tpu.memory_space<vmem>>, vector<10x16x128xf32>
    tpu.vector_store %arg10[%c0_53, %c0_54, %c640], %22 {strides = array<i32>} : memref<10x16x1152xf32, #tpu.memory_space<vmem>>, vector<10x16x128xf32>,
    %c2_55 = arith.constant 2 : index
    %c0_56 = arith.constant 0 : index
    %c0_57 = arith.constant 0 : index
    %24 = vector.load %arg9[%c2_55, %c0_56, %c0_57] : memref<12x18x128xf32, #tpu.memory_space<vmem>>, vector<10x16x128xf32>
    %c0_58 = arith.constant 0 : index
    %c0_59 = arith.constant 0 : index
    %c768 = arith.constant 768 : index
    %25 = vector.load %arg10[%c0_58, %c0_59, %c768] : memref<10x16x1152xf32, #tpu.memory_space<vmem>>, vector<10x16x128xf32>
    tpu.vector_store %arg10[%c0_58, %c0_59, %c768], %24 {strides = array<i32>} : memref<10x16x1152xf32, #tpu.memory_space<vmem>>, vector<10x16x128xf32>,
    %c2_60 = arith.constant 2 : index
    %c1_61 = arith.constant 1 : index
    %c0_62 = arith.constant 0 : index
    %26 = vector.load %arg9[%c2_60, %c1_61, %c0_62] : memref<12x18x128xf32, #tpu.memory_space<vmem>>, vector<10x16x128xf32>
    %c0_63 = arith.constant 0 : index
    %c0_64 = arith.constant 0 : index
    %c896 = arith.constant 896 : index
    %27 = vector.load %arg10[%c0_63, %c0_64, %c896] : memref<10x16x1152xf32, #tpu.memory_space<vmem>>, vector<10x16x128xf32>
    tpu.vector_store %arg10[%c0_63, %c0_64, %c896], %26 {strides = array<i32>} : memref<10x16x1152xf32, #tpu.memory_space<vmem>>, vector<10x16x128xf32>,
    %c2_65 = arith.constant 2 : index
    %c2_66 = arith.constant 2 : index
    %c0_67 = arith.constant 0 : index
    %28 = vector.load %arg9[%c2_65, %c2_66, %c0_67] : memref<12x18x128xf32, #tpu.memory_space<vmem>>, vector<10x16x128xf32>
    %c0_68 = arith.constant 0 : index
    %c0_69 = arith.constant 0 : index
    %c1024 = arith.constant 1024 : index
    %29 = vector.load %arg10[%c0_68, %c0_69, %c1024] : memref<10x16x1152xf32, #tpu.memory_space<vmem>>, vector<10x16x128xf32>
    tpu.vector_store %arg10[%c0_68, %c0_69, %c1024], %28 {strides = array<i32>} : memref<10x16x1152xf32, #tpu.memory_space<vmem>>, vector<10x16x128xf32>,
    %c0_70 = arith.constant 0 : index
    %c0_71 = arith.constant 0 : index
    %c0_72 = arith.constant 0 : index
    %30 = vector.load %arg10[%c0_70, %c0_71, %c0_72] : memref<10x16x1152xf32, #tpu.memory_space<vmem>>, vector<10x16x1152xf32>
    %31 = vector.shape_cast %30 : vector<10x16x1152xf32> to vector<160x1152xf32>
    %c0_73 = arith.constant 0 : index
    %c0_74 = arith.constant 0 : index
    %32 = vector.load %arg4[%c0_73, %c0_74] : memref<1152x128xf32, #tpu.memory_space<vmem>>, vector<1152x128xf32>
    %cst_75 = arith.constant dense<0.000000e+00> : vector<160x128xf32>
    %33 = tpu.matmul %31, %32, %cst_75 {dimension_numbers = #tpu.dot_dimension_numbers<[1], [0], [0], [1], [0, 0, 1, 1], [], []>} : vector<160x1152xf32>, vector<1152x128xf32>, vector<160x128xf32> -> vector<160x128xf32>
    %c0_76 = arith.constant 0 : index
    %c0_77 = arith.constant 0 : index
    %34 = vector.load %arg5[%c0_76, %c0_77] : memref<1x128xf32, #tpu.memory_space<vmem>>, vector<1x128xf32>
    %35 = vector.broadcast %34 : vector<1x128xf32> to vector<160x128xf32>
    %36 = arith.addf %33, %35 : vector<160x128xf32>
    %cst_78 = arith.constant 0.000000e+00 : f32
    %37 = vector.broadcast %cst_78 : f32 to vector<160x128xf32>
    %38 = arith.maximumf %36, %37 : vector<160x128xf32>
    %39 = vector.shape_cast %38 : vector<160x128xf32> to vector<10x16x128xf32>
    %c0_79 = arith.constant 0 : index
    %c1_80 = arith.constant 1 : index
    %c0_81 = arith.constant 0 : index
    %40 = vector.load %arg9[%c0_79, %c1_80, %c0_81] : memref<12x18x128xf32, #tpu.memory_space<vmem>>, vector<10x16x128xf32>
    tpu.vector_store %arg9[%c0_79, %c1_80, %c0_81], %39 {strides = array<i32>} : memref<12x18x128xf32, #tpu.memory_space<vmem>>, vector<10x16x128xf32>,
    %cst_82 = arith.constant 0.000000e+00 : f32
    %41 = vector.broadcast %cst_82 : f32 to vector<1x18x128xf32>
    %c0_i32 = arith.constant 0 : i32
    %42 = arith.cmpi eq, %arg1, %c0_i32 : i32
    %43 = arith.extui %42 : i1 to i32
    %c0_i32_83 = arith.constant 0 : i32
    %44 = arith.cmpi ne, %43, %c0_i32_83 : i32
    scf.if %44 {
      %c0_155 = arith.constant 0 : index
      %c0_156 = arith.constant 0 : index
      %c0_157 = arith.constant 0 : index
      %80 = vector.load %arg9[%c0_155, %c0_156, %c0_157] : memref<12x18x128xf32, #tpu.memory_space<vmem>>, vector<1x18x128xf32>
      tpu.vector_store %arg9[%c0_155, %c0_156, %c0_157], %41 {strides = array<i32>} : memref<12x18x128xf32, #tpu.memory_space<vmem>>, vector<1x18x128xf32>,
    } else {
    }
    %c1_i32 = arith.constant 1 : i32
    %45 = arith.cmpi eq, %arg1, %c1_i32 : i32
    %46 = arith.extui %45 : i1 to i32
    %c0_i32_84 = arith.constant 0 : i32
    %47 = arith.cmpi ne, %46, %c0_i32_84 : i32
    scf.if %47 {
      %c9 = arith.constant 9 : index
      %c0_155 = arith.constant 0 : index
      %c0_156 = arith.constant 0 : index
      %80 = vector.load %arg9[%c9, %c0_155, %c0_156] : memref<12x18x128xf32, #tpu.memory_space<vmem>>, vector<1x18x128xf32>
      tpu.vector_store %arg9[%c9, %c0_155, %c0_156], %41 {strides = array<i32>} : memref<12x18x128xf32, #tpu.memory_space<vmem>>, vector<1x18x128xf32>,
    } else {
    }
    %c0_85 = arith.constant 0 : index
    %c0_86 = arith.constant 0 : index
    %c0_87 = arith.constant 0 : index
    %48 = vector.load %arg9[%c0_85, %c0_86, %c0_87] : memref<12x18x128xf32, #tpu.memory_space<vmem>>, vector<8x16x128xf32>
    %c0_88 = arith.constant 0 : index
    %c0_89 = arith.constant 0 : index
    %c0_90 = arith.constant 0 : index
    %49 = vector.load %arg10[%c0_88, %c0_89, %c0_90] : memref<10x16x1152xf32, #tpu.memory_space<vmem>>, vector<8x16x128xf32>
    tpu.vector_store %arg10[%c0_88, %c0_89, %c0_90], %48 {strides = array<i32>} : memref<10x16x1152xf32, #tpu.memory_space<vmem>>, vector<8x16x128xf32>,
    %c0_91 = arith.constant 0 : index
    %c1_92 = arith.constant 1 : index
    %c0_93 = arith.constant 0 : index
    %50 = vector.load %arg9[%c0_91, %c1_92, %c0_93] : memref<12x18x128xf32, #tpu.memory_space<vmem>>, vector<8x16x128xf32>
    %c0_94 = arith.constant 0 : index
    %c0_95 = arith.constant 0 : index
    %c128_96 = arith.constant 128 : index
    %51 = vector.load %arg10[%c0_94, %c0_95, %c128_96] : memref<10x16x1152xf32, #tpu.memory_space<vmem>>, vector<8x16x128xf32>
    tpu.vector_store %arg10[%c0_94, %c0_95, %c128_96], %50 {strides = array<i32>} : memref<10x16x1152xf32, #tpu.memory_space<vmem>>, vector<8x16x128xf32>,
    %c0_97 = arith.constant 0 : index
    %c2_98 = arith.constant 2 : index
    %c0_99 = arith.constant 0 : index
    %52 = vector.load %arg9[%c0_97, %c2_98, %c0_99] : memref<12x18x128xf32, #tpu.memory_space<vmem>>, vector<8x16x128xf32>
    %c0_100 = arith.constant 0 : index
    %c0_101 = arith.constant 0 : index
    %c256_102 = arith.constant 256 : index
    %53 = vector.load %arg10[%c0_100, %c0_101, %c256_102] : memref<10x16x1152xf32, #tpu.memory_space<vmem>>, vector<8x16x128xf32>
    tpu.vector_store %arg10[%c0_100, %c0_101, %c256_102], %52 {strides = array<i32>} : memref<10x16x1152xf32, #tpu.memory_space<vmem>>, vector<8x16x128xf32>,
    %c1_103 = arith.constant 1 : index
    %c0_104 = arith.constant 0 : index
    %c0_105 = arith.constant 0 : index
    %54 = vector.load %arg9[%c1_103, %c0_104, %c0_105] : memref<12x18x128xf32, #tpu.memory_space<vmem>>, vector<8x16x128xf32>
    %c0_106 = arith.constant 0 : index
    %c0_107 = arith.constant 0 : index
    %c384_108 = arith.constant 384 : index
    %55 = vector.load %arg10[%c0_106, %c0_107, %c384_108] : memref<10x16x1152xf32, #tpu.memory_space<vmem>>, vector<8x16x128xf32>
    tpu.vector_store %arg10[%c0_106, %c0_107, %c384_108], %54 {strides = array<i32>} : memref<10x16x1152xf32, #tpu.memory_space<vmem>>, vector<8x16x128xf32>,
    %c1_109 = arith.constant 1 : index
    %c1_110 = arith.constant 1 : index
    %c0_111 = arith.constant 0 : index
    %56 = vector.load %arg9[%c1_109, %c1_110, %c0_111] : memref<12x18x128xf32, #tpu.memory_space<vmem>>, vector<8x16x128xf32>
    %c0_112 = arith.constant 0 : index
    %c0_113 = arith.constant 0 : index
    %c512_114 = arith.constant 512 : index
    %57 = vector.load %arg10[%c0_112, %c0_113, %c512_114] : memref<10x16x1152xf32, #tpu.memory_space<vmem>>, vector<8x16x128xf32>
    tpu.vector_store %arg10[%c0_112, %c0_113, %c512_114], %56 {strides = array<i32>} : memref<10x16x1152xf32, #tpu.memory_space<vmem>>, vector<8x16x128xf32>,
    %c1_115 = arith.constant 1 : index
    %c2_116 = arith.constant 2 : index
    %c0_117 = arith.constant 0 : index
    %58 = vector.load %arg9[%c1_115, %c2_116, %c0_117] : memref<12x18x128xf32, #tpu.memory_space<vmem>>, vector<8x16x128xf32>
    %c0_118 = arith.constant 0 : index
    %c0_119 = arith.constant 0 : index
    %c640_120 = arith.constant 640 : index
    %59 = vector.load %arg10[%c0_118, %c0_119, %c640_120] : memref<10x16x1152xf32, #tpu.memory_space<vmem>>, vector<8x16x128xf32>
    tpu.vector_store %arg10[%c0_118, %c0_119, %c640_120], %58 {strides = array<i32>} : memref<10x16x1152xf32, #tpu.memory_space<vmem>>, vector<8x16x128xf32>,
    %c2_121 = arith.constant 2 : index
    %c0_122 = arith.constant 0 : index
    %c0_123 = arith.constant 0 : index
    %60 = vector.load %arg9[%c2_121, %c0_122, %c0_123] : memref<12x18x128xf32, #tpu.memory_space<vmem>>, vector<8x16x128xf32>
    %c0_124 = arith.constant 0 : index
    %c0_125 = arith.constant 0 : index
    %c768_126 = arith.constant 768 : index
    %61 = vector.load %arg10[%c0_124, %c0_125, %c768_126] : memref<10x16x1152xf32, #tpu.memory_space<vmem>>, vector<8x16x128xf32>
    tpu.vector_store %arg10[%c0_124, %c0_125, %c768_126], %60 {strides = array<i32>} : memref<10x16x1152xf32, #tpu.memory_space<vmem>>, vector<8x16x128xf32>,
    %c2_127 = arith.constant 2 : index
    %c1_128 = arith.constant 1 : index
    %c0_129 = arith.constant 0 : index
    %62 = vector.load %arg9[%c2_127, %c1_128, %c0_129] : memref<12x18x128xf32, #tpu.memory_space<vmem>>, vector<8x16x128xf32>
    %c0_130 = arith.constant 0 : index
    %c0_131 = arith.constant 0 : index
    %c896_132 = arith.constant 896 : index
    %63 = vector.load %arg10[%c0_130, %c0_131, %c896_132] : memref<10x16x1152xf32, #tpu.memory_space<vmem>>, vector<8x16x128xf32>
    tpu.vector_store %arg10[%c0_130, %c0_131, %c896_132], %62 {strides = array<i32>} : memref<10x16x1152xf32, #tpu.memory_space<vmem>>, vector<8x16x128xf32>,
    %c2_133 = arith.constant 2 : index
    %c2_134 = arith.constant 2 : index
    %c0_135 = arith.constant 0 : index
    %64 = vector.load %arg9[%c2_133, %c2_134, %c0_135] : memref<12x18x128xf32, #tpu.memory_space<vmem>>, vector<8x16x128xf32>
    %c0_136 = arith.constant 0 : index
    %c0_137 = arith.constant 0 : index
    %c1024_138 = arith.constant 1024 : index
    %65 = vector.load %arg10[%c0_136, %c0_137, %c1024_138] : memref<10x16x1152xf32, #tpu.memory_space<vmem>>, vector<8x16x128xf32>
    tpu.vector_store %arg10[%c0_136, %c0_137, %c1024_138], %64 {strides = array<i32>} : memref<10x16x1152xf32, #tpu.memory_space<vmem>>, vector<8x16x128xf32>,
    %c0_139 = arith.constant 0 : index
    %c0_140 = arith.constant 0 : index
    %c0_141 = arith.constant 0 : index
    %66 = vector.load %arg10[%c0_139, %c0_140, %c0_141] : memref<10x16x1152xf32, #tpu.memory_space<vmem>>, vector<8x16x1152xf32>
    %67 = vector.shape_cast %66 : vector<8x16x1152xf32> to vector<128x1152xf32>
    %c0_142 = arith.constant 0 : index
    %c0_143 = arith.constant 0 : index
    %68 = vector.load %arg6[%c0_142, %c0_143] : memref<1152x128xf32, #tpu.memory_space<vmem>>, vector<1152x128xf32>
    %cst_144 = arith.constant dense<0.000000e+00> : vector<128x128xf32>
    %69 = tpu.matmul %67, %68, %cst_144 {dimension_numbers = #tpu.dot_dimension_numbers<[1], [0], [0], [1], [0, 0, 1, 1], [], []>} : vector<128x1152xf32>, vector<1152x128xf32>, vector<128x128xf32> -> vector<128x128xf32>
    %c0_145 = arith.constant 0 : index
    %c0_146 = arith.constant 0 : index
    %70 = vector.load %arg7[%c0_145, %c0_146] : memref<1x128xf32, #tpu.memory_space<vmem>>, vector<1x128xf32>
    %71 = vector.broadcast %70 : vector<1x128xf32> to vector<128x128xf32>
    %72 = arith.addf %69, %71 : vector<128x128xf32>
    %73 = vector.shape_cast %72 : vector<128x128xf32> to vector<8x16x128xf32>
    %c0_147 = arith.constant 0 : index
    %c0_148 = arith.constant 0 : index
    %c0_149 = arith.constant 0 : index
    %c0_150 = arith.constant 0 : index
    %74 = vector.load %arg2[%c0_147, %c0_148, %c0_149, %c0_150] : memref<1x8x16x128xf32, #tpu.memory_space<vmem>>, vector<1x8x16x128xf32>
    %75 = vector.shape_cast %74 : vector<1x8x16x128xf32> to vector<8x16x128xf32>
    %76 = arith.addf %73, %75 : vector<8x16x128xf32>
    %c0_151 = arith.constant 0 : index
    %c0_152 = arith.constant 0 : index
    %c0_153 = arith.constant 0 : index
    %c0_154 = arith.constant 0 : index
    %77 = vector.load %arg8[%c0_151, %c0_152, %c0_153, %c0_154] : memref<1x8x16x128xf32, #tpu.memory_space<vmem>>, vector<1x8x16x128xf32>
    %78 = vector.shape_cast %77 : vector<1x8x16x128xf32> to vector<8x16x128xf32>
    %79 = vector.shape_cast %76 : vector<8x16x128xf32> to vector<1x8x16x128xf32>
    tpu.vector_store %arg8[%c0_151, %c0_152, %c0_153, %c0_154], %79 {strides = array<i32>} : memref<1x8x16x128xf32, #tpu.memory_space<vmem>>, vector<1x8x16x128xf32>,
    return
  }
  func.func @transform_0(%arg0: i32, %arg1: i32) -> (i32, i32, i32, i32) {
    %c0_i32 = arith.constant 0 : i32
    %c0_i32_0 = arith.constant 0 : i32
    %c0_i32_1 = arith.constant 0 : i32
    return %arg0, %arg1, %c0_i32, %c0_i32_0 : i32, i32, i32, i32
  }
  func.func @transform_1(%arg0: i32, %arg1: i32) -> (i32, i32, i32, i32, i32) {
    %c0_i32 = arith.constant 0 : i32
    %c0_i32_0 = arith.constant 0 : i32
    %c0_i32_1 = arith.constant 0 : i32
    %c0_i32_2 = arith.constant 0 : i32
    return %arg0, %arg1, %c0_i32, %c0_i32_0, %c0_i32_1 : i32, i32, i32, i32, i32
  }
  func.func @transform_2(%arg0: i32, %arg1: i32) -> (i32, i32) {
    %c0_i32 = arith.constant 0 : i32
    %c0_i32_0 = arith.constant 0 : i32
    %c0_i32_1 = arith.constant 0 : i32
    return %c0_i32, %c0_i32_0 : i32, i32
  }
  func.func @transform_3(%arg0: i32, %arg1: i32) -> (i32, i32) {
    %c0_i32 = arith.constant 0 : i32
    %c0_i32_0 = arith.constant 0 : i32
    %c0_i32_1 = arith.constant 0 : i32
    return %c0_i32, %c0_i32_0 : i32, i32
  }
  func.func @transform_4(%arg0: i32, %arg1: i32) -> (i32, i32) {
    %c0_i32 = arith.constant 0 : i32
    %c0_i32_0 = arith.constant 0 : i32
    %c0_i32_1 = arith.constant 0 : i32
    return %c0_i32, %c0_i32_0 : i32, i32
  }
  func.func @transform_5(%arg0: i32, %arg1: i32) -> (i32, i32) {
    %c0_i32 = arith.constant 0 : i32
    %c0_i32_0 = arith.constant 0 : i32
    %c0_i32_1 = arith.constant 0 : i32
    return %c0_i32, %c0_i32_0 : i32, i32
  }
  func.func @transform_6(%arg0: i32, %arg1: i32) -> (i32, i32, i32, i32) {
    %c0_i32 = arith.constant 0 : i32
    %c0_i32_0 = arith.constant 0 : i32
    %c0_i32_1 = arith.constant 0 : i32
    return %arg0, %arg1, %c0_i32, %c0_i32_0 : i32, i32, i32, i32
  }
}

</mosaic_0001>

<llo_original>
// kernel: tpu_custom_call.1
$region0: #{tpu_custom_call.1}
  #allocation0 [shape = 'u32[]', space=smem, size = 0x4, offset = 0x4, fixed_abs, tag = 'smem constant byte address 0x4 - core index']
  #allocation1 [shape = 'u32[144,128]{1,0:T(1,128)}', space=vmem, size = 0x12000, scoped, tag = 'internal scratch']
  #allocation2 [shape = 'f32[12,18,128]{2,1,0:T(8,128)}', space=vmem, size = 0x24000, scoped, tag = 'scratch operand']
  #allocation3 [shape = 'f32[10,16,1152]{2,1,0:T(8,128)}', space=vmem, size = 0xb4000, scoped, tag = 'scratch operand']
  %s0 = inlined_call_operand.hbm [shape: f32[2,16,16,128], index: 0, kind: input, shape index: {}]
  %s1 = inlined_call_operand.hbm [shape: f32[2,2,4,16,128], index: 1, kind: input, shape index: {}]
  %s2 = inlined_call_operand.hbm [shape: f32[1152,128], index: 2, kind: input, shape index: {}]
  %s3 = inlined_call_operand.vmem [shape: f32[1,128], index: 3, kind: input, shape index: {}]
  %s4 = inlined_call_operand.hbm [shape: f32[1152,128], index: 4, kind: input, shape index: {}]
  %s5 = inlined_call_operand.vmem [shape: f32[1,128], index: 5, kind: input, shape index: {}]
  %s6 = inlined_call_operand.hbm [shape: f32[2,16,16,128], index: 6, kind: output, shape index: {}]
  %s7 = sld [smem:[#allocation0]]
  $region81: #{tpu_custom_call.1} parent=0
    _
  %s9 = ssub.s32 1, %s7
  %s10 = scalar_select 0, %s9, %s7
  $region1: #{tpu_custom_call.1} parent=0
    #allocation4 [shape = 'u8[131072]{0}', space=vmem, size = 0x20000, scoped, tag = 'input window, operand 0']
    #allocation5 [shape = 's32[2]{0}', space=sflag, size = 0x8, scoped, tag = 'scoped memory for tpu_custom_call.1']
    #allocation6 [shape = 's32[2]{0}', space=sflag, size = 0x8, scoped, tag = 'scoped memory for tpu_custom_call.1']
    #allocation7 [shape = 'u8[65536]{0}', space=vmem, size = 0x10000, scoped, tag = 'input window, operand 1']
    #allocation8 [shape = 's32[2]{0}', space=sflag, size = 0x8, scoped, tag = 'scoped memory for tpu_custom_call.1']
    #allocation9 [shape = 'u8[589824]{0}', space=vmem, size = 0x90000, scoped, tag = 'input window, operand 2, single buffered']
    #allocation10 [shape = 'u8[589824]{0}', space=vmem, size = 0x90000, scoped, tag = 'input window, operand 4, single buffered']
    #allocation11 [shape = 's32[1]{0}', space=sflag, size = 0x4, scoped, tag = 'scoped memory for tpu_custom_call.1']
    #allocation12 [shape = 'u8[131072]{0}', space=vmem, size = 0x20000, scoped, tag = 'output window, operand 0']
    %11 = vsyncpa [#allocation5], 0
    %s12 = scalar_lea.sflag [#allocation5], 1
    %13 = vsyncpa %s12, 0
    %14 = vsyncpa [#allocation8], 0
    %s15 = scalar_lea.sflag [#allocation8], 1
    %16 = vsyncpa %s15, 0
    %17 = vsyncpa [#allocation11], 0
    %18 = vsyncpa [#allocation6], 0
    %s19 = scalar_lea.sflag [#allocation6], 1
    %20 = vsyncpa %s19, 0
    loop: start=0, step=1, limit=6
    $region2: #{tpu_custom_call.1} parent=1 // loop_pre_header
      _
    $region3: #{tpu_custom_call.1} parent=1 // loop_header
      %s22 = sphi 0, %s26
      %p23 = scmp.ge.s32.totalorder %s22, 6
      %s29 = sphi 0, %s41
      %s30 = sphi 0, %s37
      %s31 = sphi 0, %s29
      %s32 = sphi 0, %s30
      %s33 = sphi 0, %s31
      %s34 = sphi 0, %s32
      %s46 = sphi 0, %s48
      %s49 = sphi 0, %s46
      %s50 = sphi 0, %s49
      %s66 = sphi 0, %s50
      %s74 = sphi 0, %s76
      %s77 = sphi 0, %s74
      %s78 = sphi 0, %s77
      %s94 = sphi 0, %s78
      %s98 = sphi 0, %s98
      %s100 = sphi 0, %s98
      %s101 = sphi 0, %s100
      %s115 = sphi 0, %s101
      %s119 = sphi 0, %s119
      %s121 = sphi 0, %s119
      %s122 = sphi 0, %s121
      %s136 = sphi 0, %s122
      %s140 = sphi 0, %s140
      %s142 = sphi 0, %s140
      %s143 = sphi 0, %s142
      %s157 = sphi 0, %s143
      %s161 = sphi 0, %s161
      %s163 = sphi 0, %s161
      %s164 = sphi 0, %s163
      %s178 = sphi 0, %s164
      %s186 = sphi 0, %s188
      %s189 = sphi 0, %s186
      %s190 = sphi 0, %s189
      %s206 = sphi 0, %s190
    $region4: #{tpu_custom_call.1} parent=1 // loop_header_branch
      %25 = sbr.rel (%p23) target = $region8
    $region5: #{tpu_custom_call.1} parent=1 // loop_body
      %s27 = ssub.s32 %s22, 1
      %s28 = ssub.s32 %s22, 2
      %s35 = sadd.s32 1, %s30
      %p36 = scmp.ge.s32.totalorder %s35, 2
      %s37 = scalar_select %p36, 0, %s35
      %s38 = sadd.s32 1, %s29
      %s39 = scalar_select %p36, %s38, %s29
      %p40 = scmp.ge.s32.totalorder %s39, 2
      %s41 = scalar_select %p40, 0, %s39
      %s42 = ssub.s32 %s29, %s41
      %s43 = ssub.s32 %s30, %s37
      %s44 = sor.u32 %s42, %s43
      %p45 = scmp.eq.s32.totalorder %s44, 0
      %s47 = sadd.s32 %s46, 1
      %s48 = scalar_select %p45, %s46, %s47
      %p51 = pneg %p45
      %p52 = scmp.eq.s32.totalorder %s22, 3
      %p53 = por %p51, %p52
      %p54 = scmp.ne.s32.totalorder %s46, %s49
      %p55 = scmp.eq.s32.totalorder %s22, 0
      %p56 = por %p54, %p55
      %p57 = scmp.ne.s32.totalorder %s46, %s49
      %p58 = scmp.eq.s32.totalorder %s27, 3
      %p59 = por %p57, %p58
      %p60 = scmp.ne.s32.totalorder %s49, %s50
      %p61 = scmp.eq.s32.totalorder %s27, 0
      %p62 = por %p60, %p61
      %p63 = scmp.ne.s32.totalorder %s49, %s50
      %p64 = scmp.eq.s32.totalorder %s28, 3
      %p65 = por %p63, %p64
      %p67 = scmp.ne.s32.totalorder %s50, %s66
      %p68 = scmp.eq.s32.totalorder %s28, 0
      %p69 = por %p67, %p68
      %s70 = ssub.s32 %s29, %s41
      %s71 = ssub.s32 %s30, %s37
      %s72 = sor.u32 %s70, %s71
      %p73 = scmp.eq.s32.totalorder %s72, 0
      %s75 = sadd.s32 %s74, 1
      %s76 = scalar_select %p73, %s74, %s75
      %p79 = pneg %p73
      %p80 = scmp.eq.s32.totalorder %s22, 3
      %p81 = por %p79, %p80
      %p82 = scmp.ne.s32.totalorder %s74, %s77
      %p83 = scmp.eq.s32.totalorder %s22, 0
      %p84 = por %p82, %p83
      %p85 = scmp.ne.s32.totalorder %s74, %s77
      %p86 = scmp.eq.s32.totalorder %s27, 3
      %p87 = por %p85, %p86
      %p88 = scmp.ne.s32.totalorder %s77, %s78
      %p89 = scmp.eq.s32.totalorder %s27, 0
      %p90 = por %p88, %p89
      %p91 = scmp.ne.s32.totalorder %s77, %s78
      %p92 = scmp.eq.s32.totalorder %s28, 3
      %p93 = por %p91, %p92
      %p95 = scmp.ne.s32.totalorder %s78, %s94
      %p96 = scmp.eq.s32.totalorder %s28, 0
      %p97 = por %p95, %p96
      %s99 = sadd.s32 %s98, 1
      %p102 = scmp.eq.s32.totalorder %s22, 3
      %p103 = scmp.ne.s32.totalorder %s98, %s100
      %p104 = scmp.eq.s32.totalorder %s22, 0
      %p105 = por %p103, %p104
      %p106 = scmp.ne.s32.totalorder %s98, %s100
      %p107 = scmp.eq.s32.totalorder %s27, 3
      %p108 = por %p106, %p107
      %p109 = scmp.ne.s32.totalorder %s100, %s101
      %p110 = scmp.eq.s32.totalorder %s27, 0
      %p111 = por %p109, %p110
      %p112 = scmp.ne.s32.totalorder %s100, %s101
      %p113 = scmp.eq.s32.totalorder %s28, 3
      %p114 = por %p112, %p113
      %p116 = scmp.ne.s32.totalorder %s101, %s115
      %p117 = scmp.eq.s32.totalorder %s28, 0
      %p118 = por %p116, %p117
      %s120 = sadd.s32 %s119, 1
      %p123 = scmp.eq.s32.totalorder %s22, 3
      %p124 = scmp.ne.s32.totalorder %s119, %s121
      %p125 = scmp.eq.s32.totalorder %s22, 0
      %p126 = por %p124, %p125
      %p127 = scmp.ne.s32.totalorder %s119, %s121
      %p128 = scmp.eq.s32.totalorder %s27, 3
      %p129 = por %p127, %p128
      %p130 = scmp.ne.s32.totalorder %s121, %s122
      %p131 = scmp.eq.s32.totalorder %s27, 0
      %p132 = por %p130, %p131
      %p133 = scmp.ne.s32.totalorder %s121, %s122
      %p134 = scmp.eq.s32.totalorder %s28, 3
      %p135 = por %p133, %p134
      %p137 = scmp.ne.s32.totalorder %s122, %s136
      %p138 = scmp.eq.s32.totalorder %s28, 0
      %p139 = por %p137, %p138
      %s141 = sadd.s32 %s140, 1
      %p144 = scmp.eq.s32.totalorder %s22, 3
      %p145 = scmp.ne.s32.totalorder %s140, %s142
      %p146 = scmp.eq.s32.totalorder %s22, 0
      %p147 = por %p145, %p146
      %p148 = scmp.ne.s32.totalorder %s140, %s142
      %p149 = scmp.eq.s32.totalorder %s27, 3
      %p150 = por %p148, %p149
      %p151 = scmp.ne.s32.totalorder %s142, %s143
      %p152 = scmp.eq.s32.totalorder %s27, 0
      %p153 = por %p151, %p152
      %p154 = scmp.ne.s32.totalorder %s142, %s143
      %p155 = scmp.eq.s32.totalorder %s28, 3
      %p156 = por %p154, %p155
      %p158 = scmp.ne.s32.totalorder %s143, %s157
      %p159 = scmp.eq.s32.totalorder %s28, 0
      %p160 = por %p158, %p159
      %s162 = sadd.s32 %s161, 1
      %p165 = scmp.eq.s32.totalorder %s22, 3
      %p166 = scmp.ne.s32.totalorder %s161, %s163
      %p167 = scmp.eq.s32.totalorder %s22, 0
      %p168 = por %p166, %p167
      %p169 = scmp.ne.s32.totalorder %s161, %s163
      %p170 = scmp.eq.s32.totalorder %s27, 3
      %p171 = por %p169, %p170
      %p172 = scmp.ne.s32.totalorder %s163, %s164
      %p173 = scmp.eq.s32.totalorder %s27, 0
      %p174 = por %p172, %p173
      %p175 = scmp.ne.s32.totalorder %s163, %s164
      %p176 = scmp.eq.s32.totalorder %s28, 3
      %p177 = por %p175, %p176
      %p179 = scmp.ne.s32.totalorder %s164, %s178
      %p180 = scmp.eq.s32.totalorder %s28, 0
      %p181 = por %p179, %p180
      %s182 = ssub.s32 %s29, %s41
      %s183 = ssub.s32 %s30, %s37
      %s184 = sor.u32 %s182, %s183
      %p185 = scmp.eq.s32.totalorder %s184, 0
      %s187 = sadd.s32 %s186, 1
      %s188 = scalar_select %p185, %s186, %s187
      %p191 = pneg %p185
      %p192 = scmp.eq.s32.totalorder %s22, 3
      %p193 = por %p191, %p192
      %p194 = scmp.ne.s32.totalorder %s186, %s189
      %p195 = scmp.eq.s32.totalorder %s22, 0
      %p196 = por %p194, %p195
      %p197 = scmp.ne.s32.totalorder %s186, %s189
      %p198 = scmp.eq.s32.totalorder %s27, 3
      %p199 = por %p197, %p198
      %p200 = scmp.ne.s32.totalorder %s189, %s190
      %p201 = scmp.eq.s32.totalorder %s27, 0
      %p202 = por %p200, %p201
      %p203 = scmp.ne.s32.totalorder %s189, %s190
      %p204 = scmp.eq.s32.totalorder %s28, 3
      %p205 = por %p203, %p204
      %p207 = scmp.ne.s32.totalorder %s190, %s206
      %p208 = scmp.eq.s32.totalorder %s28, 0
      %p209 = por %p207, %p208
      %p210 = scmp.le.s32.totalorder 1, %s22
      %p211 = scmp.lt.s32.totalorder %s22, 5
      %p212 = pnand %p210, %p211
      %p213 = pneg %p212
      // Predicated region
      $region9: #{tpu_custom_call.1} parent=5 // pred_check
        _
      $region10: #{tpu_custom_call.1} parent=5 // pred_check_branch
        %215 = sbr.rel (%p212) target = $region12
      $region11: #{tpu_custom_call.1} parent=5 // pred_region
        %s216 = ssub.s32 %s22, 1
        // Predicated region
        $region13: #{tpu_custom_call.1} parent=11 // pred_check
          %p217 = pneg %p111
        $region14: #{tpu_custom_call.1} parent=11 // pred_check_branch
          %219 = sbr.rel (%p217) target = $region16
        $region15: #{tpu_custom_call.1} parent=11 // pred_region
          %s221 = ssub.s32 18432, 18432
          %222 = vsyncadd [#allocation8], %s221
          %s223 = sshll.u32 [#allocation9], 4
          %s224 = int_to_ptr.vmem [resolvable:$true] %s223
          %229 = dma.hbm_to_vmem [thread:$0]  %s2, 18432, %s224, [#allocation8], 128, 128, 8
        $region16: #{tpu_custom_call.1} parent=11 // pred_fallthru
          _
        // Predicated region
        $region17: #{tpu_custom_call.1} parent=11 // pred_check
          %p230 = pneg %p132
        $region18: #{tpu_custom_call.1} parent=11 // pred_check_branch
          %232 = sbr.rel (%p230) target = $region20
        $region19: #{tpu_custom_call.1} parent=11 // pred_region
          _
        $region20: #{tpu_custom_call.1} parent=11 // pred_fallthru
          _
        // Predicated region
        $region21: #{tpu_custom_call.1} parent=11 // pred_check
          %p233 = pneg %p153
        $region22: #{tpu_custom_call.1} parent=11 // pred_check_branch
          %235 = sbr.rel (%p233) target = $region24
        $region23: #{tpu_custom_call.1} parent=11 // pred_region
          %s237 = ssub.s32 18432, 18432
          %238 = vsyncadd [#allocation11], %s237
          %s239 = sshll.u32 [#allocation10], 4
          %s240 = int_to_ptr.vmem [resolvable:$true] %s239
          %245 = dma.hbm_to_vmem [thread:$0]  %s4, 18432, %s240, [#allocation11], 128, 128, 8
        $region24: #{tpu_custom_call.1} parent=11 // pred_fallthru
          _
        // Predicated region
        $region25: #{tpu_custom_call.1} parent=11 // pred_check
          %p246 = pneg %p174
        $region26: #{tpu_custom_call.1} parent=11 // pred_check_branch
          %248 = sbr.rel (%p246) target = $region28
        $region27: #{tpu_custom_call.1} parent=11 // pred_region
          _
        $region28: #{tpu_custom_call.1} parent=11 // pred_fallthru
          _
      $region12: #{tpu_custom_call.1} parent=5 // pred_fallthru
        _
      %p249 = scmp.lt.s32.totalorder %s22, 4
      // Predicated region
      $region29: #{tpu_custom_call.1} parent=5 // pred_check
        %p250 = pneg %p249
      $region30: #{tpu_custom_call.1} parent=5 // pred_check_branch
        %252 = sbr.rel (%p250) target = $region32
      $region31: #{tpu_custom_call.1} parent=5 // pred_region
        // Predicated region
        $region33: #{tpu_custom_call.1} parent=31 // pred_check
          %p253 = pneg %p56
        $region34: #{tpu_custom_call.1} parent=31 // pred_check_branch
          %255 = sbr.rel (%p253) target = $region36
        $region35: #{tpu_custom_call.1} parent=31 // pred_region
          %s256 = sand.u32 %s46, 1
          %s257 = scalar_lea.sflag [#allocation5], %s256
          %s258 = sand.u32 %s46, 1
          %s259 = smul.addr %s258, 128
          %s260 = scalar_lea.vmem [#allocation4], %s259
          %s261 = smul.u32 8, %s30
          %s263 = ssub.s32 2048, 2048
          %264 = vsyncadd %s257, %s263
          %s265 = smul.addr %s261, 2
          %s266 = smul.addr %s29, 32
          %s267 = sadd.s32 %s265, %s266
          %s268 = smul.addr %s267, 128
          %s269 = scalar_lea.hbm %s0, %s268
          %s270 = sshll.u32 %s260, 4
          %s271 = int_to_ptr.vmem [resolvable:$true] %s270
          %276 = dma.hbm_to_vmem [thread:$0]  %s269, 2048, %s271, %s257, 128, 128, 8
        $region36: #{tpu_custom_call.1} parent=31 // pred_fallthru
          _
        // Predicated region
        $region37: #{tpu_custom_call.1} parent=31 // pred_check
          %p277 = pneg %p84
        $region38: #{tpu_custom_call.1} parent=31 // pred_check_branch
          %279 = sbr.rel (%p277) target = $region40
        $region39: #{tpu_custom_call.1} parent=31 // pred_region
          %s280 = sand.u32 %s22, 1
          %s281 = scalar_lea.sflag [#allocation8], %s280
          %s282 = sand.u32 %s74, 1
          %s283 = smul.addr %s282, 64
          %s284 = scalar_lea.vmem [#allocation7], %s283
          %s286 = ssub.s32 1024, 1024
          %287 = vsyncadd %s281, %s286
          %s288 = smul.addr %s30, 8
          %s289 = smul.addr %s29, 16
          %s290 = sadd.s32 %s288, %s289
          %s291 = smul.addr %s290, 128
          %s292 = scalar_lea.hbm %s1, %s291
          %s293 = sshll.u32 %s284, 4
          %s294 = int_to_ptr.vmem [resolvable:$true] %s293
          %299 = dma.hbm_to_vmem [thread:$0]  %s292, 1024, %s294, %s281, 128, 128, 8
        $region40: #{tpu_custom_call.1} parent=31 // pred_fallthru
          _
      $region32: #{tpu_custom_call.1} parent=5 // pred_fallthru
        _
      %p300 = scmp.le.s32.totalorder 1, %s22
      %p301 = scmp.lt.s32.totalorder %s22, 5
      %p302 = pnand %p300, %p301
      %p303 = pneg %p302
      // Predicated region
      $region41: #{tpu_custom_call.1} parent=5 // pred_check
        _
      $region42: #{tpu_custom_call.1} parent=5 // pred_check_branch
        %305 = sbr.rel (%p302) target = $region44
      $region43: #{tpu_custom_call.1} parent=5 // pred_region
        %s306 = ssub.s32 %s22, 1
        %s307 = sand.u32 %s49, 1
        %s308 = scalar_lea.sflag [#allocation5], %s307
        %s309 = sand.u32 %s49, 1
        %s310 = smul.addr %s309, 128
        %s311 = scalar_lea.vmem [#allocation4], %s310
        // Predicated region
        $region45: #{tpu_custom_call.1} parent=43 // pred_check
          %p312 = pneg %p62
        $region46: #{tpu_custom_call.1} parent=43 // pred_check_branch
          %314 = sbr.rel (%p312) target = $region48
        $region47: #{tpu_custom_call.1} parent=43 // pred_region
          %315 = dma.done %s308, 2048
        $region48: #{tpu_custom_call.1} parent=43 // pred_fallthru
          _
        %s316 = sand.u32 %s27, 1
        %s317 = scalar_lea.sflag [#allocation8], %s316
        %s318 = sand.u32 %s77, 1
        %s319 = smul.addr %s318, 64
        %s320 = scalar_lea.vmem [#allocation7], %s319
        // Predicated region
        $region49: #{tpu_custom_call.1} parent=43 // pred_check
          %p321 = pneg %p90
        $region50: #{tpu_custom_call.1} parent=43 // pred_check_branch
          %323 = sbr.rel (%p321) target = $region52
        $region51: #{tpu_custom_call.1} parent=43 // pred_region
          %324 = dma.done %s317, 1024
        $region52: #{tpu_custom_call.1} parent=43 // pred_fallthru
          _
        // Predicated region
        $region53: #{tpu_custom_call.1} parent=43 // pred_check
          %p325 = pneg %p111
        $region54: #{tpu_custom_call.1} parent=43 // pred_check_branch
          %327 = sbr.rel (%p325) target = $region56
        $region55: #{tpu_custom_call.1} parent=43 // pred_region
          %328 = dma.done [#allocation8], 18432
        $region56: #{tpu_custom_call.1} parent=43 // pred_fallthru
          _
        // Predicated region
        $region57: #{tpu_custom_call.1} parent=43 // pred_check
          %p329 = pneg %p153
        $region58: #{tpu_custom_call.1} parent=43 // pred_check_branch
          %331 = sbr.rel (%p329) target = $region60
        $region59: #{tpu_custom_call.1} parent=43 // pred_region
          %332 = dma.done [#allocation11], 18432
        $region60: #{tpu_custom_call.1} parent=43 // pred_fallthru
          _
        %s333 = sand.u32 %s49, 1
        %s334 = scalar_lea.sflag [#allocation5], %s333
        %s335 = sand.u32 %s49, 1
        %s336 = smul.addr %s335, 128
        %s337 = scalar_lea.vmem [#allocation4], %s336
        %p338 = pneg %p62
        %p339 = pneg %p59
        %s340 = sand.u32 %s27, 1
        %s341 = scalar_lea.sflag [#allocation8], %s340
        %s342 = sand.u32 %s77, 1
        %s343 = smul.addr %s342, 64
        %s344 = scalar_lea.vmem [#allocation7], %s343
        %p345 = pneg %p90
        %p346 = pneg %p87
        %p347 = pneg %p111
        %p348 = pneg %p108
        %p349 = pneg %p132
        %p350 = pneg %p129
        %p351 = pneg %p153
        %p352 = pneg %p150
        %p353 = pneg %p174
        %p354 = pneg %p171
        %p355 = pneg %p202
        %p356 = pneg %p199
        %s357 = sand.u32 %s189, 1
        %s358 = scalar_lea.sflag [#allocation6], %s357
        %s359 = sand.u32 %s189, 1
        %s360 = smul.addr %s359, 128
        %s361 = scalar_lea.vmem [#allocation12], %s360
        %s362 = smul.u32 8, %s32
        %s363 = smul.u32 8, %s32
        %364 = vst [vmem:[#allocation2] sm:$0x1] 0.0
        %365 = vst [vmem:[#allocation2 + $0x18] sm:$0x1] 0.0
        %366 = vst [vmem:[#allocation2 + $0x30] sm:$0x1] 0.0
        %367 = vst [vmem:[#allocation2 + $0x48] sm:$0x1] 0.0
        %368 = vst [vmem:[#allocation2 + $0x60] sm:$0x1] 0.0
        %369 = vst [vmem:[#allocation2 + $0x78] sm:$0x1] 0.0
        %370 = vst [vmem:[#allocation2 + $0x90] sm:$0x1] 0.0
        %371 = vst [vmem:[#allocation2 + $0xa8] sm:$0x1] 0.0
        %372 = vst [vmem:[#allocation2 + $0xc0] sm:$0x1] 0.0
        %373 = vst [vmem:[#allocation2 + $0xd8] sm:$0x1] 0.0
        %374 = vst [vmem:[#allocation2 + $0xf0] sm:$0x1] 0.0
        %375 = vst [vmem:[#allocation2 + $0x108] sm:$0x1] 0.0
        %376 = vst [vmem:[#allocation2 + $0x11] sm:$0x1] 0.0
        %377 = vst [vmem:[#allocation2 + $0x29] sm:$0x1] 0.0
        %378 = vst [vmem:[#allocation2 + $0x41] sm:$0x1] 0.0
        %379 = vst [vmem:[#allocation2 + $0x59] sm:$0x1] 0.0
        %380 = vst [vmem:[#allocation2 + $0x71] sm:$0x1] 0.0
        %381 = vst [vmem:[#allocation2 + $0x89] sm:$0x1] 0.0
        %382 = vst [vmem:[#allocation2 + $0xa1] sm:$0x1] 0.0
        %383 = vst [vmem:[#allocation2 + $0xb9] sm:$0x1] 0.0
        %384 = vst [vmem:[#allocation2 + $0xd1] sm:$0x1] 0.0
        %385 = vst [vmem:[#allocation2 + $0xe9] sm:$0x1] 0.0
        %386 = vst [vmem:[#allocation2 + $0x101] sm:$0x1] 0.0
        %387 = vst [vmem:[#allocation2 + $0x119] sm:$0x1] 0.0
        %v388 = vld [vmem:[%s320] sm:$0xff]
        %v389 = vld [vmem:[%s320 + $0x8] sm:$0xff]
        %v390 = vld [vmem:[%s320 + $0x10] sm:$0xff]
        %v391 = vld [vmem:[%s320 + $0x18] sm:$0xff]
        %392 = vst [vmem:[#allocation2 + $0x1] sm:$0xff] %v388
        %393 = vst [vmem:[#allocation2 + $0x9] sm:$0xff] %v389
        %394 = vst [vmem:[#allocation2 + $0x19] sm:$0xff] %v390
        %395 = vst [vmem:[#allocation2 + $0x21] sm:$0xff] %v391
        %v396 = vld [vmem:[%s311] sm:$0xff]
        %v397 = vld [vmem:[%s311 + $0x8] sm:$0xff]
        %v398 = vld [vmem:[%s311 + $0x10] sm:$0xff]
        %v399 = vld [vmem:[%s311 + $0x18] sm:$0xff]
        %v400 = vld [vmem:[%s311 + $0x20] sm:$0xff]
        %v401 = vld [vmem:[%s311 + $0x28] sm:$0xff]
        %v402 = vld [vmem:[%s311 + $0x30] sm:$0xff]
        %v403 = vld [vmem:[%s311 + $0x38] sm:$0xff]
        %v404 = vld [vmem:[%s311 + $0x40] sm:$0xff]
        %v405 = vld [vmem:[%s311 + $0x48] sm:$0xff]
        %v406 = vld [vmem:[%s311 + $0x50] sm:$0xff]
        %v407 = vld [vmem:[%s311 + $0x58] sm:$0xff]
        %v408 = vld [vmem:[%s311 + $0x60] sm:$0xff]
        %v409 = vld [vmem:[%s311 + $0x68] sm:$0xff]
        %v410 = vld [vmem:[%s311 + $0x70] sm:$0xff]
        %v411 = vld [vmem:[%s311 + $0x78] sm:$0xff]
        %s412 = scalar_lea.vmem [#allocation2], 48
        %413 = vst [vmem:[%s412 + $0x1] sm:$0xff] %v396
        %414 = vst [vmem:[%s412 + $0x9] sm:$0xff] %v397
        %415 = vst [vmem:[%s412 + $0x19] sm:$0xff] %v398
        %416 = vst [vmem:[%s412 + $0x21] sm:$0xff] %v399
        %417 = vst [vmem:[%s412 + $0x31] sm:$0xff] %v400
        %418 = vst [vmem:[%s412 + $0x39] sm:$0xff] %v401
        %419 = vst [vmem:[%s412 + $0x49] sm:$0xff] %v402
        %420 = vst [vmem:[%s412 + $0x51] sm:$0xff] %v403
        %421 = vst [vmem:[%s412 + $0x61] sm:$0xff] %v404
        %422 = vst [vmem:[%s412 + $0x69] sm:$0xff] %v405
        %423 = vst [vmem:[%s412 + $0x79] sm:$0xff] %v406
        %424 = vst [vmem:[%s412 + $0x81] sm:$0xff] %v407
        %425 = vst [vmem:[%s412 + $0x91] sm:$0xff] %v408
        %426 = vst [vmem:[%s412 + $0x99] sm:$0xff] %v409
        %427 = vst [vmem:[%s412 + $0xa9] sm:$0xff] %v410
        %428 = vst [vmem:[%s412 + $0xb1] sm:$0xff] %v411
        %s429 = scalar_lea.vmem %s320, 32 [#allocation7]
        %v430 = vld [vmem:[%s429] sm:$0xff]
        %v431 = vld [vmem:[%s429 + $0x8] sm:$0xff]
        %v432 = vld [vmem:[%s429 + $0x10] sm:$0xff]
        %v433 = vld [vmem:[%s429 + $0x18] sm:$0xff]
        %s434 = scalar_lea.vmem [#allocation2], 240
        %435 = vst [vmem:[%s434 + $0x1] sm:$0xff] %v430
        %436 = vst [vmem:[%s434 + $0x9] sm:$0xff] %v431
        %437 = vst [vmem:[%s434 + $0x19] sm:$0xff] %v432
        %438 = vst [vmem:[%s434 + $0x21] sm:$0xff] %v433
        %v439 = vld [vmem:[#allocation2] sm:$0xff]
        %v440 = vld [vmem:[#allocation2 + $0x8] sm:$0xff]
        %v441 = vld [vmem:[#allocation2 + $0x18] sm:$0xff]
        %v442 = vld [vmem:[#allocation2 + $0x20] sm:$0xff]
        %v443 = vld [vmem:[#allocation2 + $0x30] sm:$0xff]
        %v444 = vld [vmem:[#allocation2 + $0x38] sm:$0xff]
        %v445 = vld [vmem:[#allocation2 + $0x48] sm:$0xff]
        %v446 = vld [vmem:[#allocation2 + $0x50] sm:$0xff]
        %v447 = vld [vmem:[#allocation2 + $0x60] sm:$0xff]
        %v448 = vld [vmem:[#allocation2 + $0x68] sm:$0xff]
        %v449 = vld [vmem:[#allocation2 + $0x78] sm:$0xff]
        %v450 = vld [vmem:[#allocation2 + $0x80] sm:$0xff]
        %v451 = vld [vmem:[#allocation2 + $0x90] sm:$0xff]
        %v452 = vld [vmem:[#allocation2 + $0x98] sm:$0xff]
        %v453 = vld [vmem:[#allocation2 + $0xa8] sm:$0xff]
        %v454 = vld [vmem:[#allocation2 + $0xb0] sm:$0xff]
        %v455 = vld [vmem:[#allocation2 + $0xc0] sm:$0xff]
        %v456 = vld [vmem:[#allocation2 + $0xc8] sm:$0xff]
        %v457 = vld [vmem:[#allocation2 + $0xd8] sm:$0xff]
        %v458 = vld [vmem:[#allocation2 + $0xe0] sm:$0xff]
        %459 = vst [vmem:[#allocation3] sm:$0xff] %v439
        %460 = vst [vmem:[#allocation3 + $0x48] sm:$0xff] %v440
        %461 = vst [vmem:[#allocation3 + $0x90] sm:$0xff] %v441
        %462 = vst [vmem:[#allocation3 + $0xd8] sm:$0xff] %v442
        %463 = vst [vmem:[#allocation3 + $0x120] sm:$0xff] %v443
        %464 = vst [vmem:[#allocation3 + $0x168] sm:$0xff] %v444
        %465 = vst [vmem:[#allocation3 + $0x1b0] sm:$0xff] %v445
        %466 = vst [vmem:[#allocation3 + $0x1f8] sm:$0xff] %v446
        %467 = vst [vmem:[#allocation3 + $0x240] sm:$0xff] %v447
        %468 = vst [vmem:[#allocation3 + $0x288] sm:$0xff] %v448
        %469 = vst [vmem:[#allocation3 + $0x2d0] sm:$0xff] %v449
        %470 = vst [vmem:[#allocation3 + $0x318] sm:$0xff] %v450
        %471 = vst [vmem:[#allocation3 + $0x360] sm:$0xff] %v451
        %472 = vst [vmem:[#allocation3 + $0x3a8] sm:$0xff] %v452
        %473 = vst [vmem:[#allocation3 + $0x3f0] sm:$0xff] %v453
        %474 = vst [vmem:[#allocation3 + $0x438] sm:$0xff] %v454
        %475 = vst [vmem:[#allocation3 + $0x480] sm:$0xff] %v455
        %476 = vst [vmem:[#allocation3 + $0x4c8] sm:$0xff] %v456
        %477 = vst [vmem:[#allocation3 + $0x510] sm:$0xff] %v457
        %478 = vst [vmem:[#allocation3 + $0x558] sm:$0xff] %v458
        %v479 = vld [vmem:[#allocation2 + $0x1] sm:$0xff]
        %v480 = vld [vmem:[#allocation2 + $0x9] sm:$0xff]
        %v481 = vld [vmem:[#allocation2 + $0x19] sm:$0xff]
        %v482 = vld [vmem:[#allocation2 + $0x21] sm:$0xff]
        %v483 = vld [vmem:[#allocation2 + $0x31] sm:$0xff]
        %v484 = vld [vmem:[#allocation2 + $0x39] sm:$0xff]
        %v485 = vld [vmem:[#allocation2 + $0x49] sm:$0xff]
        %v486 = vld [vmem:[#allocation2 + $0x51] sm:$0xff]
        %v487 = vld [vmem:[#allocation2 + $0x61] sm:$0xff]
        %v488 = vld [vmem:[#allocation2 + $0x69] sm:$0xff]
        %v489 = vld [vmem:[#allocation2 + $0x79] sm:$0xff]
        %v490 = vld [vmem:[#allocation2 + $0x81] sm:$0xff]
        %v491 = vld [vmem:[#allocation2 + $0x91] sm:$0xff]
        %v492 = vld [vmem:[#allocation2 + $0x99] sm:$0xff]
        %v493 = vld [vmem:[#allocation2 + $0xa9] sm:$0xff]
        %v494 = vld [vmem:[#allocation2 + $0xb1] sm:$0xff]
        %v495 = vld [vmem:[#allocation2 + $0xc1] sm:$0xff]
        %v496 = vld [vmem:[#allocation2 + $0xc9] sm:$0xff]
        %v497 = vld [vmem:[#allocation2 + $0xd9] sm:$0xff]
        %v498 = vld [vmem:[#allocation2 + $0xe1] sm:$0xff]
        %499 = vst [vmem:[#allocation3 + $0x8] sm:$0xff] %v479
        %500 = vst [vmem:[#allocation3 + $0x50] sm:$0xff] %v480
        %501 = vst [vmem:[#allocation3 + $0x98] sm:$0xff] %v481
        %502 = vst [vmem:[#allocation3 + $0xe0] sm:$0xff] %v482
        %503 = vst [vmem:[#allocation3 + $0x128] sm:$0xff] %v483
        %504 = vst [vmem:[#allocation3 + $0x170] sm:$0xff] %v484
        %505 = vst [vmem:[#allocation3 + $0x1b8] sm:$0xff] %v485
        %506 = vst [vmem:[#allocation3 + $0x200] sm:$0xff] %v486
        %507 = vst [vmem:[#allocation3 + $0x248] sm:$0xff] %v487
        %508 = vst [vmem:[#allocation3 + $0x290] sm:$0xff] %v488
        %509 = vst [vmem:[#allocation3 + $0x2d8] sm:$0xff] %v489
        %510 = vst [vmem:[#allocation3 + $0x320] sm:$0xff] %v490
        %511 = vst [vmem:[#allocation3 + $0x368] sm:$0xff] %v491
        %512 = vst [vmem:[#allocation3 + $0x3b0] sm:$0xff] %v492
        %513 = vst [vmem:[#allocation3 + $0x3f8] sm:$0xff] %v493
        %514 = vst [vmem:[#allocation3 + $0x440] sm:$0xff] %v494
        %515 = vst [vmem:[#allocation3 + $0x488] sm:$0xff] %v495
        %516 = vst [vmem:[#allocation3 + $0x4d0] sm:$0xff] %v496
        %517 = vst [vmem:[#allocation3 + $0x518] sm:$0xff] %v497
        %518 = vst [vmem:[#allocation3 + $0x560] sm:$0xff] %v498
        %v519 = vld [vmem:[#allocation2 + $0x2] sm:$0xff]
        %v520 = vld [vmem:[#allocation2 + $0xa] sm:$0xff]
        %v521 = vld [vmem:[#allocation2 + $0x1a] sm:$0xff]
        %v522 = vld [vmem:[#allocation2 + $0x22] sm:$0xff]
        %v523 = vld [vmem:[#allocation2 + $0x32] sm:$0xff]
        %v524 = vld [vmem:[#allocation2 + $0x3a] sm:$0xff]
        %v525 = vld [vmem:[#allocation2 + $0x4a] sm:$0xff]
        %v526 = vld [vmem:[#allocation2 + $0x52] sm:$0xff]
        %v527 = vld [vmem:[#allocation2 + $0x62] sm:$0xff]
        %v528 = vld [vmem:[#allocation2 + $0x6a] sm:$0xff]
        %v529 = vld [vmem:[#allocation2 + $0x7a] sm:$0xff]
        %v530 = vld [vmem:[#allocation2 + $0x82] sm:$0xff]
        %v531 = vld [vmem:[#allocation2 + $0x92] sm:$0xff]
        %v532 = vld [vmem:[#allocation2 + $0x9a] sm:$0xff]
        %v533 = vld [vmem:[#allocation2 + $0xaa] sm:$0xff]
        %v534 = vld [vmem:[#allocation2 + $0xb2] sm:$0xff]
        %v535 = vld [vmem:[#allocation2 + $0xc2] sm:$0xff]
        %v536 = vld [vmem:[#allocation2 + $0xca] sm:$0xff]
        %v537 = vld [vmem:[#allocation2 + $0xda] sm:$0xff]
        %v538 = vld [vmem:[#allocation2 + $0xe2] sm:$0xff]
        %539 = vst [vmem:[#allocation3 + $0x10] sm:$0xff] %v519
        %540 = vst [vmem:[#allocation3 + $0x58] sm:$0xff] %v520
        %541 = vst [vmem:[#allocation3 + $0xa0] sm:$0xff] %v521
        %542 = vst [vmem:[#allocation3 + $0xe8] sm:$0xff] %v522
        %543 = vst [vmem:[#allocation3 + $0x130] sm:$0xff] %v523
        %544 = vst [vmem:[#allocation3 + $0x178] sm:$0xff] %v524
        %545 = vst [vmem:[#allocation3 + $0x1c0] sm:$0xff] %v525
        %546 = vst [vmem:[#allocation3 + $0x208] sm:$0xff] %v526
        %547 = vst [vmem:[#allocation3 + $0x250] sm:$0xff] %v527
        %548 = vst [vmem:[#allocation3 + $0x298] sm:$0xff] %v528
        %549 = vst [vmem:[#allocation3 + $0x2e0] sm:$0xff] %v529
        %550 = vst [vmem:[#allocation3 + $0x328] sm:$0xff] %v530
        %551 = vst [vmem:[#allocation3 + $0x370] sm:$0xff] %v531
        %552 = vst [vmem:[#allocation3 + $0x3b8] sm:$0xff] %v532
        %553 = vst [vmem:[#allocation3 + $0x400] sm:$0xff] %v533
        %554 = vst [vmem:[#allocation3 + $0x448] sm:$0xff] %v534
        %555 = vst [vmem:[#allocation3 + $0x490] sm:$0xff] %v535
        %556 = vst [vmem:[#allocation3 + $0x4d8] sm:$0xff] %v536
        %557 = vst [vmem:[#allocation3 + $0x520] sm:$0xff] %v537
        %558 = vst [vmem:[#allocation3 + $0x568] sm:$0xff] %v538
        %s559 = scalar_lea.vmem [#allocation2], 24
        %v560 = vld [vmem:[%s559] sm:$0xff]
        %v561 = vld [vmem:[%s559 + $0x8] sm:$0xff]
        %v562 = vld [vmem:[%s559 + $0x18] sm:$0xff]
        %v563 = vld [vmem:[%s559 + $0x20] sm:$0xff]
        %v564 = vld [vmem:[%s559 + $0x30] sm:$0xff]
        %v565 = vld [vmem:[%s559 + $0x38] sm:$0xff]
        %v566 = vld [vmem:[%s559 + $0x48] sm:$0xff]
        %v567 = vld [vmem:[%s559 + $0x50] sm:$0xff]
        %v568 = vld [vmem:[%s559 + $0x60] sm:$0xff]
        %v569 = vld [vmem:[%s559 + $0x68] sm:$0xff]
        %v570 = vld [vmem:[%s559 + $0x78] sm:$0xff]
        %v571 = vld [vmem:[%s559 + $0x80] sm:$0xff]
        %v572 = vld [vmem:[%s559 + $0x90] sm:$0xff]
        %v573 = vld [vmem:[%s559 + $0x98] sm:$0xff]
        %v574 = vld [vmem:[%s559 + $0xa8] sm:$0xff]
        %v575 = vld [vmem:[%s559 + $0xb0] sm:$0xff]
        %v576 = vld [vmem:[%s559 + $0xc0] sm:$0xff]
        %v577 = vld [vmem:[%s559 + $0xc8] sm:$0xff]
        %v578 = vld [vmem:[%s559 + $0xd8] sm:$0xff]
        %v579 = vld [vmem:[%s559 + $0xe0] sm:$0xff]
        %580 = vst [vmem:[#allocation3 + $0x18] sm:$0xff] %v560
        %581 = vst [vmem:[#allocation3 + $0x60] sm:$0xff] %v561
        %582 = vst [vmem:[#allocation3 + $0xa8] sm:$0xff] %v562
        %583 = vst [vmem:[#allocation3 + $0xf0] sm:$0xff] %v563
        %584 = vst [vmem:[#allocation3 + $0x138] sm:$0xff] %v564
        %585 = vst [vmem:[#allocation3 + $0x180] sm:$0xff] %v565
        %586 = vst [vmem:[#allocation3 + $0x1c8] sm:$0xff] %v566
        %587 = vst [vmem:[#allocation3 + $0x210] sm:$0xff] %v567
        %588 = vst [vmem:[#allocation3 + $0x258] sm:$0xff] %v568
        %589 = vst [vmem:[#allocation3 + $0x2a0] sm:$0xff] %v569
        %590 = vst [vmem:[#allocation3 + $0x2e8] sm:$0xff] %v570
        %591 = vst [vmem:[#allocation3 + $0x330] sm:$0xff] %v571
        %592 = vst [vmem:[#allocation3 + $0x378] sm:$0xff] %v572
        %593 = vst [vmem:[#allocation3 + $0x3c0] sm:$0xff] %v573
        %594 = vst [vmem:[#allocation3 + $0x408] sm:$0xff] %v574
        %595 = vst [vmem:[#allocation3 + $0x450] sm:$0xff] %v575
        %596 = vst [vmem:[#allocation3 + $0x498] sm:$0xff] %v576
        %597 = vst [vmem:[#allocation3 + $0x4e0] sm:$0xff] %v577
        %598 = vst [vmem:[#allocation3 + $0x528] sm:$0xff] %v578
        %599 = vst [vmem:[#allocation3 + $0x570] sm:$0xff] %v579
        %v600 = vld [vmem:[%s559 + $0x1] sm:$0xff]
        %v601 = vld [vmem:[%s559 + $0x9] sm:$0xff]
        %v602 = vld [vmem:[%s559 + $0x19] sm:$0xff]
        %v603 = vld [vmem:[%s559 + $0x21] sm:$0xff]
        %v604 = vld [vmem:[%s559 + $0x31] sm:$0xff]
        %v605 = vld [vmem:[%s559 + $0x39] sm:$0xff]
        %v606 = vld [vmem:[%s559 + $0x49] sm:$0xff]
        %v607 = vld [vmem:[%s559 + $0x51] sm:$0xff]
        %v608 = vld [vmem:[%s559 + $0x61] sm:$0xff]
        %v609 = vld [vmem:[%s559 + $0x69] sm:$0xff]
        %v610 = vld [vmem:[%s559 + $0x79] sm:$0xff]
        %v611 = vld [vmem:[%s559 + $0x81] sm:$0xff]
        %v612 = vld [vmem:[%s559 + $0x91] sm:$0xff]
        %v613 = vld [vmem:[%s559 + $0x99] sm:$0xff]
        %v614 = vld [vmem:[%s559 + $0xa9] sm:$0xff]
        %v615 = vld [vmem:[%s559 + $0xb1] sm:$0xff]
        %v616 = vld [vmem:[%s559 + $0xc1] sm:$0xff]
        %v617 = vld [vmem:[%s559 + $0xc9] sm:$0xff]
        %v618 = vld [vmem:[%s559 + $0xd9] sm:$0xff]
        %v619 = vld [vmem:[%s559 + $0xe1] sm:$0xff]
        %620 = vst [vmem:[#allocation3 + $0x20] sm:$0xff] %v600
        %621 = vst [vmem:[#allocation3 + $0x68] sm:$0xff] %v601
        %622 = vst [vmem:[#allocation3 + $0xb0] sm:$0xff] %v602
        %623 = vst [vmem:[#allocation3 + $0xf8] sm:$0xff] %v603
        %624 = vst [vmem:[#allocation3 + $0x140] sm:$0xff] %v604
        %625 = vst [vmem:[#allocation3 + $0x188] sm:$0xff] %v605
        %626 = vst [vmem:[#allocation3 + $0x1d0] sm:$0xff] %v606
        %627 = vst [vmem:[#allocation3 + $0x218] sm:$0xff] %v607
        %628 = vst [vmem:[#allocation3 + $0x260] sm:$0xff] %v608
        %629 = vst [vmem:[#allocation3 + $0x2a8] sm:$0xff] %v609
        %630 = vst [vmem:[#allocation3 + $0x2f0] sm:$0xff] %v610
        %631 = vst [vmem:[#allocation3 + $0x338] sm:$0xff] %v611
        %632 = vst [vmem:[#allocation3 + $0x380] sm:$0xff] %v612
        %633 = vst [vmem:[#allocation3 + $0x3c8] sm:$0xff] %v613
        %634 = vst [vmem:[#allocation3 + $0x410] sm:$0xff] %v614
        %635 = vst [vmem:[#allocation3 + $0x458] sm:$0xff] %v615
        %636 = vst [vmem:[#allocation3 + $0x4a0] sm:$0xff] %v616
        %637 = vst [vmem:[#allocation3 + $0x4e8] sm:$0xff] %v617
        %638 = vst [vmem:[#allocation3 + $0x530] sm:$0xff] %v618
        %639 = vst [vmem:[#allocation3 + $0x578] sm:$0xff] %v619
        %v640 = vld [vmem:[%s559 + $0x2] sm:$0xff]
        %v641 = vld [vmem:[%s559 + $0xa] sm:$0xff]
        %v642 = vld [vmem:[%s559 + $0x1a] sm:$0xff]
        %v643 = vld [vmem:[%s559 + $0x22] sm:$0xff]
        %v644 = vld [vmem:[%s559 + $0x32] sm:$0xff]
        %v645 = vld [vmem:[%s559 + $0x3a] sm:$0xff]
        %v646 = vld [vmem:[%s559 + $0x4a] sm:$0xff]
        %v647 = vld [vmem:[%s559 + $0x52] sm:$0xff]
        %v648 = vld [vmem:[%s559 + $0x62] sm:$0xff]
        %v649 = vld [vmem:[%s559 + $0x6a] sm:$0xff]
        %v650 = vld [vmem:[%s559 + $0x7a] sm:$0xff]
        %v651 = vld [vmem:[%s559 + $0x82] sm:$0xff]
        %v652 = vld [vmem:[%s559 + $0x92] sm:$0xff]
        %v653 = vld [vmem:[%s559 + $0x9a] sm:$0xff]
        %v654 = vld [vmem:[%s559 + $0xaa] sm:$0xff]
        %v655 = vld [vmem:[%s559 + $0xb2] sm:$0xff]
        %v656 = vld [vmem:[%s559 + $0xc2] sm:$0xff]
        %v657 = vld [vmem:[%s559 + $0xca] sm:$0xff]
        %v658 = vld [vmem:[%s559 + $0xda] sm:$0xff]
        %v659 = vld [vmem:[%s559 + $0xe2] sm:$0xff]
        %660 = vst [vmem:[#allocation3 + $0x28] sm:$0xff] %v640
        %661 = vst [vmem:[#allocation3 + $0x70] sm:$0xff] %v641
        %662 = vst [vmem:[#allocation3 + $0xb8] sm:$0xff] %v642
        %663 = vst [vmem:[#allocation3 + $0x100] sm:$0xff] %v643
        %664 = vst [vmem:[#allocation3 + $0x148] sm:$0xff] %v644
        %665 = vst [vmem:[#allocation3 + $0x190] sm:$0xff] %v645
        %666 = vst [vmem:[#allocation3 + $0x1d8] sm:$0xff] %v646
        %667 = vst [vmem:[#allocation3 + $0x220] sm:$0xff] %v647
        %668 = vst [vmem:[#allocation3 + $0x268] sm:$0xff] %v648
        %669 = vst [vmem:[#allocation3 + $0x2b0] sm:$0xff] %v649
        %670 = vst [vmem:[#allocation3 + $0x2f8] sm:$0xff] %v650
        %671 = vst [vmem:[#allocation3 + $0x340] sm:$0xff] %v651
        %672 = vst [vmem:[#allocation3 + $0x388] sm:$0xff] %v652
        %673 = vst [vmem:[#allocation3 + $0x3d0] sm:$0xff] %v653
        %674 = vst [vmem:[#allocation3 + $0x418] sm:$0xff] %v654
        %675 = vst [vmem:[#allocation3 + $0x460] sm:$0xff] %v655
        %676 = vst [vmem:[#allocation3 + $0x4a8] sm:$0xff] %v656
        %677 = vst [vmem:[#allocation3 + $0x4f0] sm:$0xff] %v657
        %678 = vst [vmem:[#allocation3 + $0x538] sm:$0xff] %v658
        %679 = vst [vmem:[#allocation3 + $0x580] sm:$0xff] %v659
        %v680 = vld [vmem:[%s412] sm:$0xff]
        %v681 = vld [vmem:[%s412 + $0x8] sm:$0xff]
        %v682 = vld [vmem:[%s412 + $0x18] sm:$0xff]
        %v683 = vld [vmem:[%s412 + $0x20] sm:$0xff]
        %v684 = vld [vmem:[%s412 + $0x30] sm:$0xff]
        %v685 = vld [vmem:[%s412 + $0x38] sm:$0xff]
        %v686 = vld [vmem:[%s412 + $0x48] sm:$0xff]
        %v687 = vld [vmem:[%s412 + $0x50] sm:$0xff]
        %v688 = vld [vmem:[%s412 + $0x60] sm:$0xff]
        %v689 = vld [vmem:[%s412 + $0x68] sm:$0xff]
        %v690 = vld [vmem:[%s412 + $0x78] sm:$0xff]
        %v691 = vld [vmem:[%s412 + $0x80] sm:$0xff]
        %v692 = vld [vmem:[%s412 + $0x90] sm:$0xff]
        %v693 = vld [vmem:[%s412 + $0x98] sm:$0xff]
        %v694 = vld [vmem:[%s412 + $0xa8] sm:$0xff]
        %v695 = vld [vmem:[%s412 + $0xb0] sm:$0xff]
        %v696 = vld [vmem:[%s412 + $0xc0] sm:$0xff]
        %v697 = vld [vmem:[%s412 + $0xc8] sm:$0xff]
        %v698 = vld [vmem:[%s412 + $0xd8] sm:$0xff]
        %v699 = vld [vmem:[%s412 + $0xe0] sm:$0xff]
        %700 = vst [vmem:[#allocation3 + $0x30] sm:$0xff] %v680
        %701 = vst [vmem:[#allocation3 + $0x78] sm:$0xff] %v681
        %702 = vst [vmem:[#allocation3 + $0xc0] sm:$0xff] %v682
        %703 = vst [vmem:[#allocation3 + $0x108] sm:$0xff] %v683
        %704 = vst [vmem:[#allocation3 + $0x150] sm:$0xff] %v684
        %705 = vst [vmem:[#allocation3 + $0x198] sm:$0xff] %v685
        %706 = vst [vmem:[#allocation3 + $0x1e0] sm:$0xff] %v686
        %707 = vst [vmem:[#allocation3 + $0x228] sm:$0xff] %v687
        %708 = vst [vmem:[#allocation3 + $0x270] sm:$0xff] %v688
        %709 = vst [vmem:[#allocation3 + $0x2b8] sm:$0xff] %v689
        %710 = vst [vmem:[#allocation3 + $0x300] sm:$0xff] %v690
        %711 = vst [vmem:[#allocation3 + $0x348] sm:$0xff] %v691
        %712 = vst [vmem:[#allocation3 + $0x390] sm:$0xff] %v692
        %713 = vst [vmem:[#allocation3 + $0x3d8] sm:$0xff] %v693
        %714 = vst [vmem:[#allocation3 + $0x420] sm:$0xff] %v694
        %715 = vst [vmem:[#allocation3 + $0x468] sm:$0xff] %v695
        %716 = vst [vmem:[#allocation3 + $0x4b0] sm:$0xff] %v696
        %717 = vst [vmem:[#allocation3 + $0x4f8] sm:$0xff] %v697
        %718 = vst [vmem:[#allocation3 + $0x540] sm:$0xff] %v698
        %719 = vst [vmem:[#allocation3 + $0x588] sm:$0xff] %v699
        %v720 = vld [vmem:[%s412 + $0x1] sm:$0xff]
        %v721 = vld [vmem:[%s412 + $0x9] sm:$0xff]
        %v722 = vld [vmem:[%s412 + $0x19] sm:$0xff]
        %v723 = vld [vmem:[%s412 + $0x21] sm:$0xff]
        %v724 = vld [vmem:[%s412 + $0x31] sm:$0xff]
        %v725 = vld [vmem:[%s412 + $0x39] sm:$0xff]
        %v726 = vld [vmem:[%s412 + $0x49] sm:$0xff]
        %v727 = vld [vmem:[%s412 + $0x51] sm:$0xff]
        %v728 = vld [vmem:[%s412 + $0x61] sm:$0xff]
        %v729 = vld [vmem:[%s412 + $0x69] sm:$0xff]
        %v730 = vld [vmem:[%s412 + $0x79] sm:$0xff]
        %v731 = vld [vmem:[%s412 + $0x81] sm:$0xff]
        %v732 = vld [vmem:[%s412 + $0x91] sm:$0xff]
        %v733 = vld [vmem:[%s412 + $0x99] sm:$0xff]
        %v734 = vld [vmem:[%s412 + $0xa9] sm:$0xff]
        %v735 = vld [vmem:[%s412 + $0xb1] sm:$0xff]
        %v736 = vld [vmem:[%s412 + $0xc1] sm:$0xff]
        %v737 = vld [vmem:[%s412 + $0xc9] sm:$0xff]
        %v738 = vld [vmem:[%s412 + $0xd9] sm:$0xff]
        %v739 = vld [vmem:[%s412 + $0xe1] sm:$0xff]
        %740 = vst [vmem:[#allocation3 + $0x38] sm:$0xff] %v720
        %741 = vst [vmem:[#allocation3 + $0x80] sm:$0xff] %v721
        %742 = vst [vmem:[#allocation3 + $0xc8] sm:$0xff] %v722
        %743 = vst [vmem:[#allocation3 + $0x110] sm:$0xff] %v723
        %744 = vst [vmem:[#allocation3 + $0x158] sm:$0xff] %v724
        %745 = vst [vmem:[#allocation3 + $0x1a0] sm:$0xff] %v725
        %746 = vst [vmem:[#allocation3 + $0x1e8] sm:$0xff] %v726
        %747 = vst [vmem:[#allocation3 + $0x230] sm:$0xff] %v727
        %748 = vst [vmem:[#allocation3 + $0x278] sm:$0xff] %v728
        %749 = vst [vmem:[#allocation3 + $0x2c0] sm:$0xff] %v729
        %750 = vst [vmem:[#allocation3 + $0x308] sm:$0xff] %v730
        %751 = vst [vmem:[#allocation3 + $0x350] sm:$0xff] %v731
        %752 = vst [vmem:[#allocation3 + $0x398] sm:$0xff] %v732
        %753 = vst [vmem:[#allocation3 + $0x3e0] sm:$0xff] %v733
        %754 = vst [vmem:[#allocation3 + $0x428] sm:$0xff] %v734
        %755 = vst [vmem:[#allocation3 + $0x470] sm:$0xff] %v735
        %756 = vst [vmem:[#allocation3 + $0x4b8] sm:$0xff] %v736
        %757 = vst [vmem:[#allocation3 + $0x500] sm:$0xff] %v737
        %758 = vst [vmem:[#allocation3 + $0x548] sm:$0xff] %v738
        %759 = vst [vmem:[#allocation3 + $0x590] sm:$0xff] %v739
        %v760 = vld [vmem:[%s412 + $0x2] sm:$0xff]
        %v761 = vld [vmem:[%s412 + $0xa] sm:$0xff]
        %v762 = vld [vmem:[%s412 + $0x1a] sm:$0xff]
        %v763 = vld [vmem:[%s412 + $0x22] sm:$0xff]
        %v764 = vld [vmem:[%s412 + $0x32] sm:$0xff]
        %v765 = vld [vmem:[%s412 + $0x3a] sm:$0xff]
        %v766 = vld [vmem:[%s412 + $0x4a] sm:$0xff]
        %v767 = vld [vmem:[%s412 + $0x52] sm:$0xff]
        %v768 = vld [vmem:[%s412 + $0x62] sm:$0xff]
        %v769 = vld [vmem:[%s412 + $0x6a] sm:$0xff]
        %v770 = vld [vmem:[%s412 + $0x7a] sm:$0xff]
        %v771 = vld [vmem:[%s412 + $0x82] sm:$0xff]
        %v772 = vld [vmem:[%s412 + $0x92] sm:$0xff]
        %v773 = vld [vmem:[%s412 + $0x9a] sm:$0xff]
        %v774 = vld [vmem:[%s412 + $0xaa] sm:$0xff]
        %v775 = vld [vmem:[%s412 + $0xb2] sm:$0xff]
        %v776 = vld [vmem:[%s412 + $0xc2] sm:$0xff]
        %v777 = vld [vmem:[%s412 + $0xca] sm:$0xff]
        %v778 = vld [vmem:[%s412 + $0xda] sm:$0xff]
        %v779 = vld [vmem:[%s412 + $0xe2] sm:$0xff]
        %780 = vst [vmem:[#allocation3 + $0x40] sm:$0xff] %v760
        %781 = vst [vmem:[#allocation3 + $0x88] sm:$0xff] %v761
        %782 = vst [vmem:[#allocation3 + $0xd0] sm:$0xff] %v762
        %783 = vst [vmem:[#allocation3 + $0x118] sm:$0xff] %v763
        %784 = vst [vmem:[#allocation3 + $0x160] sm:$0xff] %v764
        %785 = vst [vmem:[#allocation3 + $0x1a8] sm:$0xff] %v765
        %786 = vst [vmem:[#allocation3 + $0x1f0] sm:$0xff] %v766
        %787 = vst [vmem:[#allocation3 + $0x238] sm:$0xff] %v767
        %788 = vst [vmem:[#allocation3 + $0x280] sm:$0xff] %v768
        %789 = vst [vmem:[#allocation3 + $0x2c8] sm:$0xff] %v769
        %790 = vst [vmem:[#allocation3 + $0x310] sm:$0xff] %v770
        %791 = vst [vmem:[#allocation3 + $0x358] sm:$0xff] %v771
        %792 = vst [vmem:[#allocation3 + $0x3a0] sm:$0xff] %v772
        %793 = vst [vmem:[#allocation3 + $0x3e8] sm:$0xff] %v773
        %794 = vst [vmem:[#allocation3 + $0x430] sm:$0xff] %v774
        %795 = vst [vmem:[#allocation3 + $0x478] sm:$0xff] %v775
        %796 = vst [vmem:[#allocation3 + $0x4c0] sm:$0xff] %v776
        %797 = vst [vmem:[#allocation3 + $0x508] sm:$0xff] %v777
        %798 = vst [vmem:[#allocation3 + $0x550] sm:$0xff] %v778
        %799 = vst [vmem:[#allocation3 + $0x598] sm:$0xff] %v779
        %v800 = vld [vmem:[#allocation3] sm:$0xff]
        %v801 = vld [vmem:[#allocation3 + $0x8] sm:$0xff]
        %v802 = vld [vmem:[#allocation3 + $0x10] sm:$0xff]
        %v803 = vld [vmem:[#allocation3 + $0x18] sm:$0xff]
        %v804 = vld [vmem:[#allocation3 + $0x20] sm:$0xff]
        %v805 = vld [vmem:[#allocation3 + $0x28] sm:$0xff]
        %v806 = vld [vmem:[#allocation3 + $0x30] sm:$0xff]
        %v807 = vld [vmem:[#allocation3 + $0x38] sm:$0xff]
        %v808 = vld [vmem:[#allocation3 + $0x40] sm:$0xff]
        %v809 = vld [vmem:[#allocation3 + $0x48] sm:$0xff]
        %v810 = vld [vmem:[#allocation3 + $0x50] sm:$0xff]
        %v811 = vld [vmem:[#allocation3 + $0x58] sm:$0xff]
        %v812 = vld [vmem:[#allocation3 + $0x60] sm:$0xff]
        %v813 = vld [vmem:[#allocation3 + $0x68] sm:$0xff]
        %v814 = vld [vmem:[#allocation3 + $0x70] sm:$0xff]
        %v815 = vld [vmem:[#allocation3 + $0x78] sm:$0xff]
        %v816 = vld [vmem:[#allocation3 + $0x80] sm:$0xff]
        %v817 = vld [vmem:[#allocation3 + $0x88] sm:$0xff]
        %v818 = vld [vmem:[#allocation3 + $0x90] sm:$0xff]
        %v819 = vld [vmem:[#allocation3 + $0x98] sm:$0xff]
        %v820 = vld [vmem:[#allocation3 + $0xa0] sm:$0xff]
        %v821 = vld [vmem:[#allocation3 + $0xa8] sm:$0xff]
        %v822 = vld [vmem:[#allocation3 + $0xb0] sm:$0xff]
        %v823 = vld [vmem:[#allocation3 + $0xb8] sm:$0xff]
        %v824 = vld [vmem:[#allocation3 + $0xc0] sm:$0xff]
        %v825 = vld [vmem:[#allocation3 + $0xc8] sm:$0xff]
        %v826 = vld [vmem:[#allocation3 + $0xd0] sm:$0xff]
        %v827 = vld [vmem:[#allocation3 + $0xd8] sm:$0xff]
        %v828 = vld [vmem:[#allocation3 + $0xe0] sm:$0xff]
        %v829 = vld [vmem:[#allocation3 + $0xe8] sm:$0xff]
        %v830 = vld [vmem:[#allocation3 + $0xf0] sm:$0xff]
        %v831 = vld [vmem:[#allocation3 + $0xf8] sm:$0xff]
        %v832 = vld [vmem:[#allocation3 + $0x100] sm:$0xff]
        %v833 = vld [vmem:[#allocation3 + $0x108] sm:$0xff]
        %v834 = vld [vmem:[#allocation3 + $0x110] sm:$0xff]
        %v835 = vld [vmem:[#allocation3 + $0x118] sm:$0xff]
        %v836 = vld [vmem:[#allocation3 + $0x120] sm:$0xff]
        %v837 = vld [vmem:[#allocation3 + $0x128] sm:$0xff]
        %v838 = vld [vmem:[#allocation3 + $0x130] sm:$0xff]
        %v839 = vld [vmem:[#allocation3 + $0x138] sm:$0xff]
        %v840 = vld [vmem:[#allocation3 + $0x140] sm:$0xff]
        %v841 = vld [vmem:[#allocation3 + $0x148] sm:$0xff]
        %v842 = vld [vmem:[#allocation3 + $0x150] sm:$0xff]
        %v843 = vld [vmem:[#allocation3 + $0x158] sm:$0xff]
        %v844 = vld [vmem:[#allocation3 + $0x160] sm:$0xff]
        %v845 = vld [vmem:[#allocation3 + $0x168] sm:$0xff]
        %v846 = vld [vmem:[#allocation3 + $0x170] sm:$0xff]
        %v847 = vld [vmem:[#allocation3 + $0x178] sm:$0xff]
        %v848 = vld [vmem:[#allocation3 + $0x180] sm:$0xff]
        %v849 = vld [vmem:[#allocation3 + $0x188] sm:$0xff]
        %v850 = vld [vmem:[#allocation3 + $0x190] sm:$0xff]
        %v851 = vld [vmem:[#allocation3 + $0x198] sm:$0xff]
        %v852 = vld [vmem:[#allocation3 + $0x1a0] sm:$0xff]
        %v853 = vld [vmem:[#allocation3 + $0x1a8] sm:$0xff]
        %v854 = vld [vmem:[#allocation3 + $0x1b0] sm:$0xff]
        %v855 = vld [vmem:[#allocation3 + $0x1b8] sm:$0xff]
        %v856 = vld [vmem:[#allocation3 + $0x1c0] sm:$0xff]
        %v857 = vld [vmem:[#allocation3 + $0x1c8] sm:$0xff]
        %v858 = vld [vmem:[#allocation3 + $0x1d0] sm:$0xff]
        %v859 = vld [vmem:[#allocation3 + $0x1d8] sm:$0xff]
        %v860 = vld [vmem:[#allocation3 + $0x1e0] sm:$0xff]
        %v861 = vld [vmem:[#allocation3 + $0x1e8] sm:$0xff]
        %v862 = vld [vmem:[#allocation3 + $0x1f0] sm:$0xff]
        %v863 = vld [vmem:[#allocation3 + $0x1f8] sm:$0xff]
        %v864 = vld [vmem:[#allocation3 + $0x200] sm:$0xff]
        %v865 = vld [vmem:[#allocation3 + $0x208] sm:$0xff]
        %v866 = vld [vmem:[#allocation3 + $0x210] sm:$0xff]
        %v867 = vld [vmem:[#allocation3 + $0x218] sm:$0xff]
        %v868 = vld [vmem:[#allocation3 + $0x220] sm:$0xff]
        %v869 = vld [vmem:[#allocation3 + $0x228] sm:$0xff]
        %v870 = vld [vmem:[#allocation3 + $0x230] sm:$0xff]
        %v871 = vld [vmem:[#allocation3 + $0x238] sm:$0xff]
        %v872 = vld [vmem:[#allocation3 + $0x240] sm:$0xff]
        %v873 = vld [vmem:[#allocation3 + $0x248] sm:$0xff]
        %v874 = vld [vmem:[#allocation3 + $0x250] sm:$0xff]
        %v875 = vld [vmem:[#allocation3 + $0x258] sm:$0xff]
        %v876 = vld [vmem:[#allocation3 + $0x260] sm:$0xff]
        %v877 = vld [vmem:[#allocation3 + $0x268] sm:$0xff]
        %v878 = vld [vmem:[#allocation3 + $0x270] sm:$0xff]
        %v879 = vld [vmem:[#allocation3 + $0x278] sm:$0xff]
        %v880 = vld [vmem:[#allocation3 + $0x280] sm:$0xff]
        %v881 = vld [vmem:[#allocation3 + $0x288] sm:$0xff]
        %v882 = vld [vmem:[#allocation3 + $0x290] sm:$0xff]
        %v883 = vld [vmem:[#allocation3 + $0x298] sm:$0xff]
        %v884 = vld [vmem:[#allocation3 + $0x2a0] sm:$0xff]
        %v885 = vld [vmem:[#allocation3 + $0x2a8] sm:$0xff]
        %v886 = vld [vmem:[#allocation3 + $0x2b0] sm:$0xff]
        %v887 = vld [vmem:[#allocation3 + $0x2b8] sm:$0xff]
        %v888 = vld [vmem:[#allocation3 + $0x2c0] sm:$0xff]
        %v889 = vld [vmem:[#allocation3 + $0x2c8] sm:$0xff]
        %v890 = vld [vmem:[#allocation3 + $0x2d0] sm:$0xff]
        %v891 = vld [vmem:[#allocation3 + $0x2d8] sm:$0xff]
        %v892 = vld [vmem:[#allocation3 + $0x2e0] sm:$0xff]
        %v893 = vld [vmem:[#allocation3 + $0x2e8] sm:$0xff]
        %v894 = vld [vmem:[#allocation3 + $0x2f0] sm:$0xff]
        %v895 = vld [vmem:[#allocation3 + $0x2f8] sm:$0xff]
        %v896 = vld [vmem:[#allocation3 + $0x300] sm:$0xff]
        %v897 = vld [vmem:[#allocation3 + $0x308] sm:$0xff]
        %v898 = vld [vmem:[#allocation3 + $0x310] sm:$0xff]
        %v899 = vld [vmem:[#allocation3 + $0x318] sm:$0xff]
        %v900 = vld [vmem:[#allocation3 + $0x320] sm:$0xff]
        %v901 = vld [vmem:[#allocation3 + $0x328] sm:$0xff]
        %v902 = vld [vmem:[#allocation3 + $0x330] sm:$0xff]
        %v903 = vld [vmem:[#allocation3 + $0x338] sm:$0xff]
        %v904 = vld [vmem:[#allocation3 + $0x340] sm:$0xff]
        %v905 = vld [vmem:[#allocation3 + $0x348] sm:$0xff]
        %v906 = vld [vmem:[#allocation3 + $0x350] sm:$0xff]
        %v907 = vld [vmem:[#allocation3 + $0x358] sm:$0xff]
        %v908 = vld [vmem:[#allocation3 + $0x360] sm:$0xff]
        %v909 = vld [vmem:[#allocation3 + $0x368] sm:$0xff]
        %v910 = vld [vmem:[#allocation3 + $0x370] sm:$0xff]
        %v911 = vld [vmem:[#allocation3 + $0x378] sm:$0xff]
        %v912 = vld [vmem:[#allocation3 + $0x380] sm:$0xff]
        %v913 = vld [vmem:[#allocation3 + $0x388] sm:$0xff]
        %v914 = vld [vmem:[#allocation3 + $0x390] sm:$0xff]
        %v915 = vld [vmem:[#allocation3 + $0x398] sm:$0xff]
        %v916 = vld [vmem:[#allocation3 + $0x3a0] sm:$0xff]
        %v917 = vld [vmem:[#allocation3 + $0x3a8] sm:$0xff]
        %v918 = vld [vmem:[#allocation3 + $0x3b0] sm:$0xff]
        %v919 = vld [vmem:[#allocation3 + $0x3b8] sm:$0xff]
        %v920 = vld [vmem:[#allocation3 + $0x3c0] sm:$0xff]
        %v921 = vld [vmem:[#allocation3 + $0x3c8] sm:$0xff]
        %v922 = vld [vmem:[#allocation3 + $0x3d0] sm:$0xff]
        %v923 = vld [vmem:[#allocation3 + $0x3d8] sm:$0xff]
        %v924 = vld [vmem:[#allocation3 + $0x3e0] sm:$0xff]
        %v925 = vld [vmem:[#allocation3 + $0x3e8] sm:$0xff]
        %v926 = vld [vmem:[#allocation3 + $0x3f0] sm:$0xff]
        %v927 = vld [vmem:[#allocation3 + $0x3f8] sm:$0xff]
        %v928 = vld [vmem:[#allocation3 + $0x400] sm:$0xff]
        %v929 = vld [vmem:[#allocation3 + $0x408] sm:$0xff]
        %v930 = vld [vmem:[#allocation3 + $0x410] sm:$0xff]
        %v931 = vld [vmem:[#allocation3 + $0x418] sm:$0xff]
        %v932 = vld [vmem:[#allocation3 + $0x420] sm:$0xff]
        %v933 = vld [vmem:[#allocation3 + $0x428] sm:$0xff]
        %v934 = vld [vmem:[#allocation3 + $0x430] sm:$0xff]
        %v935 = vld [vmem:[#allocation3 + $0x438] sm:$0xff]
        %v936 = vld [vmem:[#allocation3 + $0x440] sm:$0xff]
        %v937 = vld [vmem:[#allocation3 + $0x448] sm:$0xff]
        %v938 = vld [vmem:[#allocation3 + $0x450] sm:$0xff]
        %v939 = vld [vmem:[#allocation3 + $0x458] sm:$0xff]
        %v940 = vld [vmem:[#allocation3 + $0x460] sm:$0xff]
        %v941 = vld [vmem:[#allocation3 + $0x468] sm:$0xff]
        %v942 = vld [vmem:[#allocation3 + $0x470] sm:$0xff]
        %v943 = vld [vmem:[#allocation3 + $0x478] sm:$0xff]
        %v944 = vld [vmem:[#allocation3 + $0x480] sm:$0xff]
        %v945 = vld [vmem:[#allocation3 + $0x488] sm:$0xff]
        %v946 = vld [vmem:[#allocation3 + $0x490] sm:$0xff]
        %v947 = vld [vmem:[#allocation3 + $0x498] sm:$0xff]
        %v948 = vld [vmem:[#allocation3 + $0x4a0] sm:$0xff]
        %v949 = vld [vmem:[#allocation3 + $0x4a8] sm:$0xff]
        %v950 = vld [vmem:[#allocation3 + $0x4b0] sm:$0xff]
        %v951 = vld [vmem:[#allocation3 + $0x4b8] sm:$0xff]
        %v952 = vld [vmem:[#allocation3 + $0x4c0] sm:$0xff]
        %v953 = vld [vmem:[#allocation3 + $0x4c8] sm:$0xff]
        %v954 = vld [vmem:[#allocation3 + $0x4d0] sm:$0xff]
        %v955 = vld [vmem:[#allocation3 + $0x4d8] sm:$0xff]
        %v956 = vld [vmem:[#allocation3 + $0x4e0] sm:$0xff]
        %v957 = vld [vmem:[#allocation3 + $0x4e8] sm:$0xff]
        %v958 = vld [vmem:[#allocation3 + $0x4f0] sm:$0xff]
        %v959 = vld [vmem:[#allocation3 + $0x4f8] sm:$0xff]
        %v960 = vld [vmem:[#allocation3 + $0x500] sm:$0xff]
        %v961 = vld [vmem:[#allocation3 + $0x508] sm:$0xff]
        %v962 = vld [vmem:[#allocation3 + $0x510] sm:$0xff]
        %v963 = vld [vmem:[#allocation3 + $0x518] sm:$0xff]
        %v964 = vld [vmem:[#allocation3 + $0x520] sm:$0xff]
        %v965 = vld [vmem:[#allocation3 + $0x528] sm:$0xff]
        %v966 = vld [vmem:[#allocation3 + $0x530] sm:$0xff]
        %v967 = vld [vmem:[#allocation3 + $0x538] sm:$0xff]
        %v968 = vld [vmem:[#allocation3 + $0x540] sm:$0xff]
        %v969 = vld [vmem:[#allocation3 + $0x548] sm:$0xff]
        %v970 = vld [vmem:[#allocation3 + $0x550] sm:$0xff]
        %v971 = vld [vmem:[#allocation3 + $0x558] sm:$0xff]
        %v972 = vld [vmem:[#allocation3 + $0x560] sm:$0xff]
        %v973 = vld [vmem:[#allocation3 + $0x568] sm:$0xff]
        %v974 = vld [vmem:[#allocation3 + $0x570] sm:$0xff]
        %v975 = vld [vmem:[#allocation3 + $0x578] sm:$0xff]
        %v976 = vld [vmem:[#allocation3 + $0x580] sm:$0xff]
        %v977 = vld [vmem:[#allocation3 + $0x588] sm:$0xff]
        %v978 = vld [vmem:[#allocation3 + $0x590] sm:$0xff]
        %v979 = vld [vmem:[#allocation3 + $0x598] sm:$0xff]
        %v980 = vld [vmem:[#allocation9] sm:$0xff]
        %v981 = vld [vmem:[#allocation9 + $0x8] sm:$0xff]
        %v982 = vld [vmem:[#allocation9 + $0x10] sm:$0xff]
        %v983 = vld [vmem:[#allocation9 + $0x18] sm:$0xff]
        %v984 = vld [vmem:[#allocation9 + $0x20] sm:$0xff]
        %v985 = vld [vmem:[#allocation9 + $0x28] sm:$0xff]
        %v986 = vld [vmem:[#allocation9 + $0x30] sm:$0xff]
        %v987 = vld [vmem:[#allocation9 + $0x38] sm:$0xff]
        %v988 = vld [vmem:[#allocation9 + $0x40] sm:$0xff]
        %v989 = vld [vmem:[#allocation9 + $0x48] sm:$0xff]
        %v990 = vld [vmem:[#allocation9 + $0x50] sm:$0xff]
        %v991 = vld [vmem:[#allocation9 + $0x58] sm:$0xff]
        %v992 = vld [vmem:[#allocation9 + $0x60] sm:$0xff]
        %v993 = vld [vmem:[#allocation9 + $0x68] sm:$0xff]
        %v994 = vld [vmem:[#allocation9 + $0x70] sm:$0xff]
        %v995 = vld [vmem:[#allocation9 + $0x78] sm:$0xff]
        %v996 = vld [vmem:[#allocation9 + $0x80] sm:$0xff]
        %v997 = vld [vmem:[#allocation9 + $0x88] sm:$0xff]
        %v998 = vld [vmem:[#allocation9 + $0x90] sm:$0xff]
        %v999 = vld [vmem:[#allocation9 + $0x98] sm:$0xff]
        %v1000 = vld [vmem:[#allocation9 + $0xa0] sm:$0xff]
        %v1001 = vld [vmem:[#allocation9 + $0xa8] sm:$0xff]
        %v1002 = vld [vmem:[#allocation9 + $0xb0] sm:$0xff]
        %v1003 = vld [vmem:[#allocation9 + $0xb8] sm:$0xff]
        %v1004 = vld [vmem:[#allocation9 + $0xc0] sm:$0xff]
        %v1005 = vld [vmem:[#allocation9 + $0xc8] sm:$0xff]
        %v1006 = vld [vmem:[#allocation9 + $0xd0] sm:$0xff]
        %v1007 = vld [vmem:[#allocation9 + $0xd8] sm:$0xff]
        %v1008 = vld [vmem:[#allocation9 + $0xe0] sm:$0xff]
        %v1009 = vld [vmem:[#allocation9 + $0xe8] sm:$0xff]
        %v1010 = vld [vmem:[#allocation9 + $0xf0] sm:$0xff]
        %v1011 = vld [vmem:[#allocation9 + $0xf8] sm:$0xff]
        %v1012 = vld [vmem:[#allocation9 + $0x100] sm:$0xff]
        %v1013 = vld [vmem:[#allocation9 + $0x108] sm:$0xff]
        %v1014 = vld [vmem:[#allocation9 + $0x110] sm:$0xff]
        %v1015 = vld [vmem:[#allocation9 + $0x118] sm:$0xff]
        %v1016 = vld [vmem:[#allocation9 + $0x120] sm:$0xff]
        %v1017 = vld [vmem:[#allocation9 + $0x128] sm:$0xff]
        %v1018 = vld [vmem:[#allocation9 + $0x130] sm:$0xff]
        %v1019 = vld [vmem:[#allocation9 + $0x138] sm:$0xff]
        %v1020 = vld [vmem:[#allocation9 + $0x140] sm:$0xff]
        %v1021 = vld [vmem:[#allocation9 + $0x148] sm:$0xff]
        %v1022 = vld [vmem:[#allocation9 + $0x150] sm:$0xff]
        %v1023 = vld [vmem:[#allocation9 + $0x158] sm:$0xff]
        %v1024 = vld [vmem:[#allocation9 + $0x160] sm:$0xff]
        %v1025 = vld [vmem:[#allocation9 + $0x168] sm:$0xff]
        %v1026 = vld [vmem:[#allocation9 + $0x170] sm:$0xff]
        %v1027 = vld [vmem:[#allocation9 + $0x178] sm:$0xff]
        %v1028 = vld [vmem:[#allocation9 + $0x180] sm:$0xff]
        %v1029 = vld [vmem:[#allocation9 + $0x188] sm:$0xff]
        %v1030 = vld [vmem:[#allocation9 + $0x190] sm:$0xff]
        %v1031 = vld [vmem:[#allocation9 + $0x198] sm:$0xff]
        %v1032 = vld [vmem:[#allocation9 + $0x1a0] sm:$0xff]
        %v1033 = vld [vmem:[#allocation9 + $0x1a8] sm:$0xff]
        %v1034 = vld [vmem:[#allocation9 + $0x1b0] sm:$0xff]
        %v1035 = vld [vmem:[#allocation9 + $0x1b8] sm:$0xff]
        %v1036 = vld [vmem:[#allocation9 + $0x1c0] sm:$0xff]
        %v1037 = vld [vmem:[#allocation9 + $0x1c8] sm:$0xff]
        %v1038 = vld [vmem:[#allocation9 + $0x1d0] sm:$0xff]
        %v1039 = vld [vmem:[#allocation9 + $0x1d8] sm:$0xff]
        %v1040 = vld [vmem:[#allocation9 + $0x1e0] sm:$0xff]
        %v1041 = vld [vmem:[#allocation9 + $0x1e8] sm:$0xff]
        %v1042 = vld [vmem:[#allocation9 + $0x1f0] sm:$0xff]
        %v1043 = vld [vmem:[#allocation9 + $0x1f8] sm:$0xff]
        %v1044 = vld [vmem:[#allocation9 + $0x200] sm:$0xff]
        %v1045 = vld [vmem:[#allocation9 + $0x208] sm:$0xff]
        %v1046 = vld [vmem:[#allocation9 + $0x210] sm:$0xff]
        %v1047 = vld [vmem:[#allocation9 + $0x218] sm:$0xff]
        %v1048 = vld [vmem:[#allocation9 + $0x220] sm:$0xff]
        %v1049 = vld [vmem:[#allocation9 + $0x228] sm:$0xff]
        %v1050 = vld [vmem:[#allocation9 + $0x230] sm:$0xff]
        %v1051 = vld [vmem:[#allocation9 + $0x238] sm:$0xff]
        %v1052 = vld [vmem:[#allocation9 + $0x240] sm:$0xff]
        %v1053 = vld [vmem:[#allocation9 + $0x248] sm:$0xff]
        %v1054 = vld [vmem:[#allocation9 + $0x250] sm:$0xff]
        %v1055 = vld [vmem:[#allocation9 + $0x258] sm:$0xff]
        %v1056 = vld [vmem:[#allocation9 + $0x260] sm:$0xff]
        %v1057 = vld [vmem:[#allocation9 + $0x268] sm:$0xff]
        %v1058 = vld [vmem:[#allocation9 + $0x270] sm:$0xff]
        %v1059 = vld [vmem:[#allocation9 + $0x278] sm:$0xff]
        %v1060 = vld [vmem:[#allocation9 + $0x280] sm:$0xff]
        %v1061 = vld [vmem:[#allocation9 + $0x288] sm:$0xff]
        %v1062 = vld [vmem:[#allocation9 + $0x290] sm:$0xff]
        %v1063 = vld [vmem:[#allocation9 + $0x298] sm:$0xff]
        %v1064 = vld [vmem:[#allocation9 + $0x2a0] sm:$0xff]
        %v1065 = vld [vmem:[#allocation9 + $0x2a8] sm:$0xff]
        %v1066 = vld [vmem:[#allocation9 + $0x2b0] sm:$0xff]
        %v1067 = vld [vmem:[#allocation9 + $0x2b8] sm:$0xff]
        %v1068 = vld [vmem:[#allocation9 + $0x2c0] sm:$0xff]
        %v1069 = vld [vmem:[#allocation9 + $0x2c8] sm:$0xff]
        %v1070 = vld [vmem:[#allocation9 + $0x2d0] sm:$0xff]
        %v1071 = vld [vmem:[#allocation9 + $0x2d8] sm:$0xff]
        %v1072 = vld [vmem:[#allocation9 + $0x2e0] sm:$0xff]
        %v1073 = vld [vmem:[#allocation9 + $0x2e8] sm:$0xff]
        %v1074 = vld [vmem:[#allocation9 + $0x2f0] sm:$0xff]
        %v1075 = vld [vmem:[#allocation9 + $0x2f8] sm:$0xff]
        %v1076 = vld [vmem:[#allocation9 + $0x300] sm:$0xff]
        %v1077 = vld [vmem:[#allocation9 + $0x308] sm:$0xff]
        %v1078 = vld [vmem:[#allocation9 + $0x310] sm:$0xff]
        %v1079 = vld [vmem:[#allocation9 + $0x318] sm:$0xff]
        %v1080 = vld [vmem:[#allocation9 + $0x320] sm:$0xff]
        %v1081 = vld [vmem:[#allocation9 + $0x328] sm:$0xff]
        %v1082 = vld [vmem:[#allocation9 + $0x330] sm:$0xff]
        %v1083 = vld [vmem:[#allocation9 + $0x338] sm:$0xff]
        %v1084 = vld [vmem:[#allocation9 + $0x340] sm:$0xff]
        %v1085 = vld [vmem:[#allocation9 + $0x348] sm:$0xff]
        %v1086 = vld [vmem:[#allocation9 + $0x350] sm:$0xff]
        %v1087 = vld [vmem:[#allocation9 + $0x358] sm:$0xff]
        %v1088 = vld [vmem:[#allocation9 + $0x360] sm:$0xff]
        %v1089 = vld [vmem:[#allocation9 + $0x368] sm:$0xff]
        %v1090 = vld [vmem:[#allocation9 + $0x370] sm:$0xff]
        %v1091 = vld [vmem:[#allocation9 + $0x378] sm:$0xff]
        %v1092 = vld [vmem:[#allocation9 + $0x380] sm:$0xff]
        %v1093 = vld [vmem:[#allocation9 + $0x388] sm:$0xff]
        %v1094 = vld [vmem:[#allocation9 + $0x390] sm:$0xff]
        %v1095 = vld [vmem:[#allocation9 + $0x398] sm:$0xff]
        %v1096 = vld [vmem:[#allocation9 + $0x3a0] sm:$0xff]
        %v1097 = vld [vmem:[#allocation9 + $0x3a8] sm:$0xff]
        %v1098 = vld [vmem:[#allocation9 + $0x3b0] sm:$0xff]
        %v1099 = vld [vmem:[#allocation9 + $0x3b8] sm:$0xff]
        %v1100 = vld [vmem:[#allocation9 + $0x3c0] sm:$0xff]
        %v1101 = vld [vmem:[#allocation9 + $0x3c8] sm:$0xff]
        %v1102 = vld [vmem:[#allocation9 + $0x3d0] sm:$0xff]
        %v1103 = vld [vmem:[#allocation9 + $0x3d8] sm:$0xff]
        %v1104 = vld [vmem:[#allocation9 + $0x3e0] sm:$0xff]
        %v1105 = vld [vmem:[#allocation9 + $0x3e8] sm:$0xff]
        %v1106 = vld [vmem:[#allocation9 + $0x3f0] sm:$0xff]
        %v1107 = vld [vmem:[#allocation9 + $0x3f8] sm:$0xff]
        %v1108 = vld [vmem:[#allocation9 + $0x400] sm:$0xff]
        %v1109 = vld [vmem:[#allocation9 + $0x408] sm:$0xff]
        %v1110 = vld [vmem:[#allocation9 + $0x410] sm:$0xff]
        %v1111 = vld [vmem:[#allocation9 + $0x418] sm:$0xff]
        %v1112 = vld [vmem:[#allocation9 + $0x420] sm:$0xff]
        %v1113 = vld [vmem:[#allocation9 + $0x428] sm:$0xff]
        %v1114 = vld [vmem:[#allocation9 + $0x430] sm:$0xff]
        %v1115 = vld [vmem:[#allocation9 + $0x438] sm:$0xff]
        %v1116 = vld [vmem:[#allocation9 + $0x440] sm:$0xff]
        %v1117 = vld [vmem:[#allocation9 + $0x448] sm:$0xff]
        %v1118 = vld [vmem:[#allocation9 + $0x450] sm:$0xff]
        %v1119 = vld [vmem:[#allocation9 + $0x458] sm:$0xff]
        %v1120 = vld [vmem:[#allocation9 + $0x460] sm:$0xff]
        %v1121 = vld [vmem:[#allocation9 + $0x468] sm:$0xff]
        %v1122 = vld [vmem:[#allocation9 + $0x470] sm:$0xff]
        %v1123 = vld [vmem:[#allocation9 + $0x478] sm:$0xff]
        %v1124 = vld [vmem:[%s3] sm:$0x1]
        %v1126 = vlaneseq
        %v1127 = vshrl.u32 %v1126, 7
        %v1128 = vsub.s32 0, %v1127
        %v1129 = vrot.slane %v1124, %v1128
        %1131 = vmatprep.subr.mxu0 0.0
        %1132 = vmatpush1.msra.mxu0 %v980
        %1133 = vmatprep.subr.mxu0 0.0
        %1134 = vmatpush1.msra.mxu0 %v981
        %1135 = vmatprep.subr.mxu0 0.0
        %1136 = vmatpush1.msra.mxu0 %v982
        %1137 = vmatprep.subr.mxu0 0.0
        %1138 = vmatpush1.msra.mxu0 %v983
        %1139 = vmatprep.subr.mxu0 0.0
        %1140 = vmatpush1.msra.mxu0 %v984
        %1141 = vmatprep.subr.mxu0 0.0
        %1142 = vmatpush1.msra.mxu0 %v985
        %1143 = vmatprep.subr.mxu0 0.0
        %1144 = vmatpush1.msra.mxu0 %v986
        %1145 = vmatprep.subr.mxu0 0.0
        %1146 = vmatpush1.msra.mxu0 %v987
        %1147 = vmatprep.subr.mxu0 0.0
        %1148 = vmatpush1.msra.mxu0 %v988
        %1149 = vmatprep.subr.mxu0 0.0
        %1150 = vmatpush1.msra.mxu0 %v989
        %1151 = vmatprep.subr.mxu0 0.0
        %1152 = vmatpush1.msra.mxu0 %v990
        %1153 = vmatprep.subr.mxu0 0.0
        %1154 = vmatpush1.msra.mxu0 %v991
        %1155 = vmatprep.subr.mxu0 0.0
        %1156 = vmatpush1.msra.mxu0 %v992
        %1157 = vmatprep.subr.mxu0 0.0
        %1158 = vmatpush1.msra.mxu0 %v993
        %1159 = vmatprep.subr.mxu0 0.0
        %1160 = vmatpush1.msra.mxu0 %v994
        %1161 = vmatprep.subr.mxu0 0.0
        %1162 = vmatpush1.msra.mxu0 %v995
        %1163 = vmatprep.subr.mxu0 0.0
        %1164 = vmatpush1.msra.mxu0 %v996
        %1165 = vmatprep.subr.mxu0 0.0
        %1166 = vmatpush1.msra.mxu0 %v997
        %1167 = vmatprep.subr.mxu0 0.0
        %1168 = vmatpush1.msra.mxu0 %v998
        %1169 = vmatprep.subr.mxu0 0.0
        %1170 = vmatpush1.msra.mxu0 %v999
        %1171 = vmatprep.subr.mxu0 0.0
        %1172 = vmatpush1.msra.mxu0 %v1000
        %1173 = vmatprep.subr.mxu0 0.0
        %1174 = vmatpush1.msra.mxu0 %v1001
        %1175 = vmatprep.subr.mxu0 0.0
        %1176 = vmatpush1.msra.mxu0 %v1002
        %1177 = vmatprep.subr.mxu0 0.0
        %1178 = vmatpush1.msra.mxu0 %v1003
        %1179 = vmatprep.subr.mxu0 0.0
        %1180 = vmatpush1.msra.mxu0 %v1004
        %1181 = vmatprep.subr.mxu0 0.0
        %1182 = vmatpush1.msra.mxu0 %v1005
        %1183 = vmatprep.subr.mxu0 0.0
        %1184 = vmatpush1.msra.mxu0 %v1006
        %1185 = vmatprep.subr.mxu0 0.0
        %1186 = vmatpush1.msra.mxu0 %v1007
        %1187 = vmatprep.subr.mxu0 0.0
        %1188 = vmatpush1.msra.mxu0 %v1008
        %1189 = vmatprep.subr.mxu0 0.0
        %1190 = vmatpush1.msra.mxu0 %v1009
        %1191 = vmatprep.subr.mxu0 0.0
        %1192 = vmatpush1.msra.mxu0 %v1010
        %1193 = vmatprep.subr.mxu0 0.0
        %1194 = vmatpush1.msra.mxu0 %v1011
        %1195 = vmatprep.mubr.f32.mxu0 %v801
        %1196 = vmatmul.mubr.f32.gmra.mrb[0].mxu0 %v800
        %v1197 = vpop.f32.mrb[0].mxu0
        %v1198 = vadd.f32 %v1129, %v1197
        %v1199 = vpop.f32.mrb[0].mxu0
        %1200 = vmatprep.mubr.f32.mxu0 %v810
        %1201 = vmatmul.mubr.f32.gmra.mrb[0].mxu0 %v809
        %v1202 = vpop.f32.mrb[0].mxu0
        %v1203 = vadd.f32 %v1129, %v1202
        %v1204 = vpop.f32.mrb[0].mxu0
        %1205 = vmatprep.mubr.f32.mxu0 %v819
        %1206 = vmatmul.mubr.f32.gmra.mrb[0].mxu0 %v818
        %v1207 = vpop.f32.mrb[0].mxu0
        %v1208 = vadd.f32 %v1129, %v1207
        %v1209 = vpop.f32.mrb[0].mxu0
        %1210 = vmatprep.mubr.f32.mxu0 %v828
        %1211 = vmatmul.mubr.f32.gmra.mrb[0].mxu0 %v827
        %v1212 = vpop.f32.mrb[0].mxu0
        %v1213 = vadd.f32 %v1129, %v1212
        %v1214 = vpop.f32.mrb[0].mxu0
        %1215 = vmatprep.mubr.f32.mxu0 %v837
        %1216 = vmatmul.mubr.f32.gmra.mrb[0].mxu0 %v836
        %v1217 = vpop.f32.mrb[0].mxu0
        %v1218 = vadd.f32 %v1129, %v1217
        %v1219 = vpop.f32.mrb[0].mxu0
        %1220 = vmatprep.mubr.f32.mxu0 %v846
        %1221 = vmatmul.mubr.f32.gmra.mrb[0].mxu0 %v845
        %v1222 = vpop.f32.mrb[0].mxu0
        %v1223 = vadd.f32 %v1129, %v1222
        %v1224 = vpop.f32.mrb[0].mxu0
        %1225 = vmatprep.mubr.f32.mxu0 %v855
        %1226 = vmatmul.mubr.f32.gmra.mrb[0].mxu0 %v854
        %v1227 = vpop.f32.mrb[0].mxu0
        %v1228 = vadd.f32 %v1129, %v1227
        %v1229 = vpop.f32.mrb[0].mxu0
        %1230 = vmatprep.mubr.f32.mxu0 %v864
        %1231 = vmatmul.mubr.f32.gmra.mrb[0].mxu0 %v863
        %v1232 = vpop.f32.mrb[0].mxu0
        %v1233 = vadd.f32 %v1129, %v1232
        %v1234 = vpop.f32.mrb[0].mxu0
        %1235 = vmatprep.mubr.f32.mxu0 %v873
        %1236 = vmatmul.mubr.f32.gmra.mrb[0].mxu0 %v872
        %v1237 = vpop.f32.mrb[0].mxu0
        %v1238 = vadd.f32 %v1129, %v1237
        %v1239 = vpop.f32.mrb[0].mxu0
        %1240 = vmatprep.mubr.f32.mxu0 %v882
        %1241 = vmatmul.mubr.f32.gmra.mrb[0].mxu0 %v881
        %v1242 = vpop.f32.mrb[0].mxu0
        %v1243 = vadd.f32 %v1129, %v1242
        %v1244 = vpop.f32.mrb[0].mxu0
        %1245 = vmatprep.mubr.f32.mxu0 %v891
        %1246 = vmatmul.mubr.f32.gmra.mrb[0].mxu0 %v890
        %v1247 = vpop.f32.mrb[0].mxu0
        %v1248 = vadd.f32 %v1129, %v1247
        %v1249 = vpop.f32.mrb[0].mxu0
        %1250 = vmatprep.mubr.f32.mxu0 %v900
        %1251 = vmatmul.mubr.f32.gmra.mrb[0].mxu0 %v899
        %v1252 = vpop.f32.mrb[0].mxu0
        %v1253 = vadd.f32 %v1129, %v1252
        %v1254 = vpop.f32.mrb[0].mxu0
        %1255 = vmatprep.mubr.f32.mxu0 %v909
        %1256 = vmatmul.mubr.f32.gmra.mrb[0].mxu0 %v908
        %v1257 = vpop.f32.mrb[0].mxu0
        %v1258 = vadd.f32 %v1129, %v1257
        %v1259 = vpop.f32.mrb[0].mxu0
        %1260 = vmatprep.mubr.f32.mxu0 %v918
        %1261 = vmatmul.mubr.f32.gmra.mrb[0].mxu0 %v917
        %v1262 = vpop.f32.mrb[0].mxu0
        %v1263 = vadd.f32 %v1129, %v1262
        %v1264 = vpop.f32.mrb[0].mxu0
        %1265 = vmatprep.mubr.f32.mxu0 %v927
        %1266 = vmatmul.mubr.f32.gmra.mrb[0].mxu0 %v926
        %v1267 = vpop.f32.mrb[0].mxu0
        %v1268 = vadd.f32 %v1129, %v1267
        %v1269 = vpop.f32.mrb[0].mxu0
        %1270 = vmatprep.mubr.f32.mxu0 %v936
        %1271 = vmatmul.mubr.f32.gmra.mrb[0].mxu0 %v935
        %v1272 = vpop.f32.mrb[0].mxu0
        %v1273 = vadd.f32 %v1129, %v1272
        %v1274 = vpop.f32.mrb[0].mxu0
        %1275 = vmatprep.mubr.f32.mxu0 %v945
        %1276 = vmatmul.mubr.f32.gmra.mrb[0].mxu0 %v944
        %v1277 = vpop.f32.mrb[0].mxu0
        %v1278 = vadd.f32 %v1129, %v1277
        %v1279 = vpop.f32.mrb[0].mxu0
        %1280 = vmatprep.mubr.f32.mxu0 %v954
        %1281 = vmatmul.mubr.f32.gmra.mrb[0].mxu0 %v953
        %v1282 = vpop.f32.mrb[0].mxu0
        %v1283 = vadd.f32 %v1129, %v1282
        %v1284 = vpop.f32.mrb[0].mxu0
        %1285 = vmatprep.mubr.f32.mxu0 %v963
        %1286 = vmatmul.mubr.f32.gmra.mrb[0].mxu0 %v962
        %v1287 = vpop.f32.mrb[0].mxu0
        %v1288 = vadd.f32 %v1129, %v1287
        %v1289 = vpop.f32.mrb[0].mxu0
        %1290 = vmatprep.mubr.f32.mxu0 %v972
        %1291 = vmatmul.mubr.f32.gmra.mrb[0].mxu0 %v971
        %v1292 = vpop.f32.mrb[0].mxu0
        %v1293 = vadd.f32 %v1129, %v1292
        %v1294 = vpop.f32.mrb[0].mxu0
        %1295 = vdwg.mxu0
        %1296 = vmatprep.subr.mxu0 0.0
        %1297 = vmatpush1.msra.mxu0 %v1012
        %1298 = vmatprep.subr.mxu0 0.0
        %1299 = vmatpush1.msra.mxu0 %v1013
        %1300 = vmatprep.subr.mxu0 0.0
        %1301 = vmatpush1.msra.mxu0 %v1014
        %1302 = vmatprep.subr.mxu0 0.0
        %1303 = vmatpush1.msra.mxu0 %v1015
        %1304 = vmatprep.subr.mxu0 0.0
        %1305 = vmatpush1.msra.mxu0 %v1016
        %1306 = vmatprep.subr.mxu0 0.0
        %1307 = vmatpush1.msra.mxu0 %v1017
        %1308 = vmatprep.subr.mxu0 0.0
        %1309 = vmatpush1.msra.mxu0 %v1018
        %1310 = vmatprep.subr.mxu0 0.0
        %1311 = vmatpush1.msra.mxu0 %v1019
        %1312 = vmatprep.subr.mxu0 0.0
        %1313 = vmatpush1.msra.mxu0 %v1020
        %1314 = vmatprep.subr.mxu0 0.0
        %1315 = vmatpush1.msra.mxu0 %v1021
        %1316 = vmatprep.subr.mxu0 0.0
        %1317 = vmatpush1.msra.mxu0 %v1022
        %1318 = vmatprep.subr.mxu0 0.0
        %1319 = vmatpush1.msra.mxu0 %v1023
        %1320 = vmatprep.subr.mxu0 0.0
        %1321 = vmatpush1.msra.mxu0 %v1024
        %1322 = vmatprep.subr.mxu0 0.0
        %1323 = vmatpush1.msra.mxu0 %v1025
        %1324 = vmatprep.subr.mxu0 0.0
        %1325 = vmatpush1.msra.mxu0 %v1026
        %1326 = vmatprep.subr.mxu0 0.0
        %1327 = vmatpush1.msra.mxu0 %v1027
        %1328 = vmatprep.subr.mxu0 0.0
        %1329 = vmatpush1.msra.mxu0 %v1028
        %1330 = vmatprep.subr.mxu0 0.0
        %1331 = vmatpush1.msra.mxu0 %v1029
        %1332 = vmatprep.subr.mxu0 0.0
        %1333 = vmatpush1.msra.mxu0 %v1030
        %1334 = vmatprep.subr.mxu0 0.0
        %1335 = vmatpush1.msra.mxu0 %v1031
        %1336 = vmatprep.subr.mxu0 0.0
        %1337 = vmatpush1.msra.mxu0 %v1032
        %1338 = vmatprep.subr.mxu0 0.0
        %1339 = vmatpush1.msra.mxu0 %v1033
        %1340 = vmatprep.subr.mxu0 0.0
        %1341 = vmatpush1.msra.mxu0 %v1034
        %1342 = vmatprep.subr.mxu0 0.0
        %1343 = vmatpush1.msra.mxu0 %v1035
        %1344 = vmatprep.subr.mxu0 0.0
        %1345 = vmatpush1.msra.mxu0 %v1036
        %1346 = vmatprep.subr.mxu0 0.0
        %1347 = vmatpush1.msra.mxu0 %v1037
        %1348 = vmatprep.subr.mxu0 0.0
        %1349 = vmatpush1.msra.mxu0 %v1038
        %1350 = vmatprep.subr.mxu0 0.0
        %1351 = vmatpush1.msra.mxu0 %v1039
        %1352 = vmatprep.subr.mxu0 0.0
        %1353 = vmatpush1.msra.mxu0 %v1040
        %1354 = vmatprep.subr.mxu0 0.0
        %1355 = vmatpush1.msra.mxu0 %v1041
        %1356 = vmatprep.subr.mxu0 0.0
        %1357 = vmatpush1.msra.mxu0 %v1042
        %1358 = vmatprep.subr.mxu0 0.0
        %1359 = vmatpush1.msra.mxu0 %v1043
        %1360 = vmatprep.mubr.f32.mxu0 %v803
        %1361 = vmatmul.mubr.f32.gmra.mrb[0].mxu0 %v802
        %v1362 = vpop.f32.mrb[0].mxu0
        %v1363 = vadd.f32 %v1198, %v1362
        %v1364 = vpop.f32.mrb[0].mxu0
        %1365 = vmatprep.mubr.f32.mxu0 %v812
        %1366 = vmatmul.mubr.f32.gmra.mrb[0].mxu0 %v811
        %v1367 = vpop.f32.mrb[0].mxu0
        %v1368 = vadd.f32 %v1203, %v1367
        %v1369 = vpop.f32.mrb[0].mxu0
        %1370 = vmatprep.mubr.f32.mxu0 %v821
        %1371 = vmatmul.mubr.f32.gmra.mrb[0].mxu0 %v820
        %v1372 = vpop.f32.mrb[0].mxu0
        %v1373 = vadd.f32 %v1208, %v1372
        %v1374 = vpop.f32.mrb[0].mxu0
        %1375 = vmatprep.mubr.f32.mxu0 %v830
        %1376 = vmatmul.mubr.f32.gmra.mrb[0].mxu0 %v829
        %v1377 = vpop.f32.mrb[0].mxu0
        %v1378 = vadd.f32 %v1213, %v1377
        %v1379 = vpop.f32.mrb[0].mxu0
        %1380 = vmatprep.mubr.f32.mxu0 %v839
        %1381 = vmatmul.mubr.f32.gmra.mrb[0].mxu0 %v838
        %v1382 = vpop.f32.mrb[0].mxu0
        %v1383 = vadd.f32 %v1218, %v1382
        %v1384 = vpop.f32.mrb[0].mxu0
        %1385 = vmatprep.mubr.f32.mxu0 %v848
        %1386 = vmatmul.mubr.f32.gmra.mrb[0].mxu0 %v847
        %v1387 = vpop.f32.mrb[0].mxu0
        %v1388 = vadd.f32 %v1223, %v1387
        %v1389 = vpop.f32.mrb[0].mxu0
        %1390 = vmatprep.mubr.f32.mxu0 %v857
        %1391 = vmatmul.mubr.f32.gmra.mrb[0].mxu0 %v856
        %v1392 = vpop.f32.mrb[0].mxu0
        %v1393 = vadd.f32 %v1228, %v1392
        %v1394 = vpop.f32.mrb[0].mxu0
        %1395 = vmatprep.mubr.f32.mxu0 %v866
        %1396 = vmatmul.mubr.f32.gmra.mrb[0].mxu0 %v865
        %v1397 = vpop.f32.mrb[0].mxu0
        %v1398 = vadd.f32 %v1233, %v1397
        %v1399 = vpop.f32.mrb[0].mxu0
        %1400 = vmatprep.mubr.f32.mxu0 %v875
        %1401 = vmatmul.mubr.f32.gmra.mrb[0].mxu0 %v874
        %v1402 = vpop.f32.mrb[0].mxu0
        %v1403 = vadd.f32 %v1238, %v1402
        %v1404 = vpop.f32.mrb[0].mxu0
        %1405 = vmatprep.mubr.f32.mxu0 %v884
        %1406 = vmatmul.mubr.f32.gmra.mrb[0].mxu0 %v883
        %v1407 = vpop.f32.mrb[0].mxu0
        %v1408 = vadd.f32 %v1243, %v1407
        %v1409 = vpop.f32.mrb[0].mxu0
        %1410 = vmatprep.mubr.f32.mxu0 %v893
        %1411 = vmatmul.mubr.f32.gmra.mrb[0].mxu0 %v892
        %v1412 = vpop.f32.mrb[0].mxu0
        %v1413 = vadd.f32 %v1248, %v1412
        %v1414 = vpop.f32.mrb[0].mxu0
        %1415 = vmatprep.mubr.f32.mxu0 %v902
        %1416 = vmatmul.mubr.f32.gmra.mrb[0].mxu0 %v901
        %v1417 = vpop.f32.mrb[0].mxu0
        %v1418 = vadd.f32 %v1253, %v1417
        %v1419 = vpop.f32.mrb[0].mxu0
        %1420 = vmatprep.mubr.f32.mxu0 %v911
        %1421 = vmatmul.mubr.f32.gmra.mrb[0].mxu0 %v910
        %v1422 = vpop.f32.mrb[0].mxu0
        %v1423 = vadd.f32 %v1258, %v1422
        %v1424 = vpop.f32.mrb[0].mxu0
        %1425 = vmatprep.mubr.f32.mxu0 %v920
        %1426 = vmatmul.mubr.f32.gmra.mrb[0].mxu0 %v919
        %v1427 = vpop.f32.mrb[0].mxu0
        %v1428 = vadd.f32 %v1263, %v1427
        %v1429 = vpop.f32.mrb[0].mxu0
        %1430 = vmatprep.mubr.f32.mxu0 %v929
        %1431 = vmatmul.mubr.f32.gmra.mrb[0].mxu0 %v928
        %v1432 = vpop.f32.mrb[0].mxu0
        %v1433 = vadd.f32 %v1268, %v1432
        %v1434 = vpop.f32.mrb[0].mxu0
        %1435 = vmatprep.mubr.f32.mxu0 %v938
        %1436 = vmatmul.mubr.f32.gmra.mrb[0].mxu0 %v937
        %v1437 = vpop.f32.mrb[0].mxu0
        %v1438 = vadd.f32 %v1273, %v1437
        %v1439 = vpop.f32.mrb[0].mxu0
        %1440 = vmatprep.mubr.f32.mxu0 %v947
        %1441 = vmatmul.mubr.f32.gmra.mrb[0].mxu0 %v946
        %v1442 = vpop.f32.mrb[0].mxu0
        %v1443 = vadd.f32 %v1278, %v1442
        %v1444 = vpop.f32.mrb[0].mxu0
        %1445 = vmatprep.mubr.f32.mxu0 %v956
        %1446 = vmatmul.mubr.f32.gmra.mrb[0].mxu0 %v955
        %v1447 = vpop.f32.mrb[0].mxu0
        %v1448 = vadd.f32 %v1283, %v1447
        %v1449 = vpop.f32.mrb[0].mxu0
        %1450 = vmatprep.mubr.f32.mxu0 %v965
        %1451 = vmatmul.mubr.f32.gmra.mrb[0].mxu0 %v964
        %v1452 = vpop.f32.mrb[0].mxu0
        %v1453 = vadd.f32 %v1288, %v1452
        %v1454 = vpop.f32.mrb[0].mxu0
        %1455 = vmatprep.mubr.f32.mxu0 %v974
        %1456 = vmatmul.mubr.f32.gmra.mrb[0].mxu0 %v973
        %v1457 = vpop.f32.mrb[0].mxu0
        %v1458 = vadd.f32 %v1293, %v1457
        %v1459 = vpop.f32.mrb[0].mxu0
        %1460 = vdwg.mxu0
        %1461 = vmatprep.subr.mxu0 0.0
        %1462 = vmatpush1.msra.mxu0 %v1044
        %1463 = vmatprep.subr.mxu0 0.0
        %1464 = vmatpush1.msra.mxu0 %v1045
        %1465 = vmatprep.subr.mxu0 0.0
        %1466 = vmatpush1.msra.mxu0 %v1046
        %1467 = vmatprep.subr.mxu0 0.0
        %1468 = vmatpush1.msra.mxu0 %v1047
        %1469 = vmatprep.subr.mxu0 0.0
        %1470 = vmatpush1.msra.mxu0 %v1048
        %1471 = vmatprep.subr.mxu0 0.0
        %1472 = vmatpush1.msra.mxu0 %v1049
        %1473 = vmatprep.subr.mxu0 0.0
        %1474 = vmatpush1.msra.mxu0 %v1050
        %1475 = vmatprep.subr.mxu0 0.0
        %1476 = vmatpush1.msra.mxu0 %v1051
        %1477 = vmatprep.subr.mxu0 0.0
        %1478 = vmatpush1.msra.mxu0 %v1052
        %1479 = vmatprep.subr.mxu0 0.0
        %1480 = vmatpush1.msra.mxu0 %v1053
        %1481 = vmatprep.subr.mxu0 0.0
        %1482 = vmatpush1.msra.mxu0 %v1054
        %1483 = vmatprep.subr.mxu0 0.0
        %1484 = vmatpush1.msra.mxu0 %v1055
        %1485 = vmatprep.subr.mxu0 0.0
        %1486 = vmatpush1.msra.mxu0 %v1056
        %1487 = vmatprep.subr.mxu0 0.0
        %1488 = vmatpush1.msra.mxu0 %v1057
        %1489 = vmatprep.subr.mxu0 0.0
        %1490 = vmatpush1.msra.mxu0 %v1058
        %1491 = vmatprep.subr.mxu0 0.0
        %1492 = vmatpush1.msra.mxu0 %v1059
        %1493 = vmatprep.subr.mxu0 0.0
        %1494 = vmatpush1.msra.mxu0 %v1060
        %1495 = vmatprep.subr.mxu0 0.0
        %1496 = vmatpush1.msra.mxu0 %v1061
        %1497 = vmatprep.subr.mxu0 0.0
        %1498 = vmatpush1.msra.mxu0 %v1062
        %1499 = vmatprep.subr.mxu0 0.0
        %1500 = vmatpush1.msra.mxu0 %v1063
        %1501 = vmatprep.subr.mxu0 0.0
        %1502 = vmatpush1.msra.mxu0 %v1064
        %1503 = vmatprep.subr.mxu0 0.0
        %1504 = vmatpush1.msra.mxu0 %v1065
        %1505 = vmatprep.subr.mxu0 0.0
        %1506 = vmatpush1.msra.mxu0 %v1066
        %1507 = vmatprep.subr.mxu0 0.0
        %1508 = vmatpush1.msra.mxu0 %v1067
        %1509 = vmatprep.subr.mxu0 0.0
        %1510 = vmatpush1.msra.mxu0 %v1068
        %1511 = vmatprep.subr.mxu0 0.0
        %1512 = vmatpush1.msra.mxu0 %v1069
        %1513 = vmatprep.subr.mxu0 0.0
        %1514 = vmatpush1.msra.mxu0 %v1070
        %1515 = vmatprep.subr.mxu0 0.0
        %1516 = vmatpush1.msra.mxu0 %v1071
        %1517 = vmatprep.subr.mxu0 0.0
        %1518 = vmatpush1.msra.mxu0 %v1072
        %1519 = vmatprep.subr.mxu0 0.0
        %1520 = vmatpush1.msra.mxu0 %v1073
        %1521 = vmatprep.subr.mxu0 0.0
        %1522 = vmatpush1.msra.mxu0 %v1074
        %1523 = vmatprep.subr.mxu0 0.0
        %1524 = vmatpush1.msra.mxu0 %v1075
        %1525 = vmatprep.mubr.f32.mxu0 %v805
        %1526 = vmatmul.mubr.f32.gmra.mrb[0].mxu0 %v804
        %v1527 = vpop.f32.mrb[0].mxu0
        %v1528 = vadd.f32 %v1363, %v1527
        %v1529 = vpop.f32.mrb[0].mxu0
        %1530 = vmatprep.mubr.f32.mxu0 %v814
        %1531 = vmatmul.mubr.f32.gmra.mrb[0].mxu0 %v813
        %v1532 = vpop.f32.mrb[0].mxu0
        %v1533 = vadd.f32 %v1368, %v1532
        %v1534 = vpop.f32.mrb[0].mxu0
        %1535 = vmatprep.mubr.f32.mxu0 %v823
        %1536 = vmatmul.mubr.f32.gmra.mrb[0].mxu0 %v822
        %v1537 = vpop.f32.mrb[0].mxu0
        %v1538 = vadd.f32 %v1373, %v1537
        %v1539 = vpop.f32.mrb[0].mxu0
        %1540 = vmatprep.mubr.f32.mxu0 %v832
        %1541 = vmatmul.mubr.f32.gmra.mrb[0].mxu0 %v831
        %v1542 = vpop.f32.mrb[0].mxu0
        %v1543 = vadd.f32 %v1378, %v1542
        %v1544 = vpop.f32.mrb[0].mxu0
        %1545 = vmatprep.mubr.f32.mxu0 %v841
        %1546 = vmatmul.mubr.f32.gmra.mrb[0].mxu0 %v840
        %v1547 = vpop.f32.mrb[0].mxu0
        %v1548 = vadd.f32 %v1383, %v1547
        %v1549 = vpop.f32.mrb[0].mxu0
        %1550 = vmatprep.mubr.f32.mxu0 %v850
        %1551 = vmatmul.mubr.f32.gmra.mrb[0].mxu0 %v849
        %v1552 = vpop.f32.mrb[0].mxu0
        %v1553 = vadd.f32 %v1388, %v1552
        %v1554 = vpop.f32.mrb[0].mxu0
        %1555 = vmatprep.mubr.f32.mxu0 %v859
        %1556 = vmatmul.mubr.f32.gmra.mrb[0].mxu0 %v858
        %v1557 = vpop.f32.mrb[0].mxu0
        %v1558 = vadd.f32 %v1393, %v1557
        %v1559 = vpop.f32.mrb[0].mxu0
        %1560 = vmatprep.mubr.f32.mxu0 %v868
        %1561 = vmatmul.mubr.f32.gmra.mrb[0].mxu0 %v867
        %v1562 = vpop.f32.mrb[0].mxu0
        %v1563 = vadd.f32 %v1398, %v1562
        %v1564 = vpop.f32.mrb[0].mxu0
        %1565 = vmatprep.mubr.f32.mxu0 %v877
        %1566 = vmatmul.mubr.f32.gmra.mrb[0].mxu0 %v876
        %v1567 = vpop.f32.mrb[0].mxu0
        %v1568 = vadd.f32 %v1403, %v1567
        %v1569 = vpop.f32.mrb[0].mxu0
        %1570 = vmatprep.mubr.f32.mxu0 %v886
        %1571 = vmatmul.mubr.f32.gmra.mrb[0].mxu0 %v885
        %v1572 = vpop.f32.mrb[0].mxu0
        %v1573 = vadd.f32 %v1408, %v1572
        %v1574 = vpop.f32.mrb[0].mxu0
        %1575 = vmatprep.mubr.f32.mxu0 %v895
        %1576 = vmatmul.mubr.f32.gmra.mrb[0].mxu0 %v894
        %v1577 = vpop.f32.mrb[0].mxu0
        %v1578 = vadd.f32 %v1413, %v1577
        %v1579 = vpop.f32.mrb[0].mxu0
        %1580 = vmatprep.mubr.f32.mxu0 %v904
        %1581 = vmatmul.mubr.f32.gmra.mrb[0].mxu0 %v903
        %v1582 = vpop.f32.mrb[0].mxu0
        %v1583 = vadd.f32 %v1418, %v1582
        %v1584 = vpop.f32.mrb[0].mxu0
        %1585 = vmatprep.mubr.f32.mxu0 %v913
        %1586 = vmatmul.mubr.f32.gmra.mrb[0].mxu0 %v912
        %v1587 = vpop.f32.mrb[0].mxu0
        %v1588 = vadd.f32 %v1423, %v1587
        %v1589 = vpop.f32.mrb[0].mxu0
        %1590 = vmatprep.mubr.f32.mxu0 %v922
        %1591 = vmatmul.mubr.f32.gmra.mrb[0].mxu0 %v921
        %v1592 = vpop.f32.mrb[0].mxu0
        %v1593 = vadd.f32 %v1428, %v1592
        %v1594 = vpop.f32.mrb[0].mxu0
        %1595 = vmatprep.mubr.f32.mxu0 %v931
        %1596 = vmatmul.mubr.f32.gmra.mrb[0].mxu0 %v930
        %v1597 = vpop.f32.mrb[0].mxu0
        %v1598 = vadd.f32 %v1433, %v1597
        %v1599 = vpop.f32.mrb[0].mxu0
        %1600 = vmatprep.mubr.f32.mxu0 %v940
        %1601 = vmatmul.mubr.f32.gmra.mrb[0].mxu0 %v939
        %v1602 = vpop.f32.mrb[0].mxu0
        %v1603 = vadd.f32 %v1438, %v1602
        %v1604 = vpop.f32.mrb[0].mxu0
        %1605 = vmatprep.mubr.f32.mxu0 %v949
        %1606 = vmatmul.mubr.f32.gmra.mrb[0].mxu0 %v948
        %v1607 = vpop.f32.mrb[0].mxu0
        %v1608 = vadd.f32 %v1443, %v1607
        %v1609 = vpop.f32.mrb[0].mxu0
        %1610 = vmatprep.mubr.f32.mxu0 %v958
        %1611 = vmatmul.mubr.f32.gmra.mrb[0].mxu0 %v957
        %v1612 = vpop.f32.mrb[0].mxu0
        %v1613 = vadd.f32 %v1448, %v1612
        %v1614 = vpop.f32.mrb[0].mxu0
        %1615 = vmatprep.mubr.f32.mxu0 %v967
        %1616 = vmatmul.mubr.f32.gmra.mrb[0].mxu0 %v966
        %v1617 = vpop.f32.mrb[0].mxu0
        %v1618 = vadd.f32 %v1453, %v1617
        %v1619 = vpop.f32.mrb[0].mxu0
        %1620 = vmatprep.mubr.f32.mxu0 %v976
        %1621 = vmatmul.mubr.f32.gmra.mrb[0].mxu0 %v975
        %v1622 = vpop.f32.mrb[0].mxu0
        %v1623 = vadd.f32 %v1458, %v1622
        %v1624 = vpop.f32.mrb[0].mxu0
        %1625 = vdwg.mxu0
        %1626 = vmatprep.subr.mxu0 0.0
        %1627 = vmatpush1.msra.mxu0 %v1076
        %1628 = vmatprep.subr.mxu0 0.0
        %1629 = vmatpush1.msra.mxu0 %v1077
        %1630 = vmatprep.subr.mxu0 0.0
        %1631 = vmatpush1.msra.mxu0 %v1078
        %1632 = vmatprep.subr.mxu0 0.0
        %1633 = vmatpush1.msra.mxu0 %v1079
        %1634 = vmatprep.subr.mxu0 0.0
        %1635 = vmatpush1.msra.mxu0 %v1080
        %1636 = vmatprep.subr.mxu0 0.0
        %1637 = vmatpush1.msra.mxu0 %v1081
        %1638 = vmatprep.subr.mxu0 0.0
        %1639 = vmatpush1.msra.mxu0 %v1082
        %1640 = vmatprep.subr.mxu0 0.0
        %1641 = vmatpush1.msra.mxu0 %v1083
        %1642 = vmatprep.subr.mxu0 0.0
        %1643 = vmatpush1.msra.mxu0 %v1084
        %1644 = vmatprep.subr.mxu0 0.0
        %1645 = vmatpush1.msra.mxu0 %v1085
        %1646 = vmatprep.subr.mxu0 0.0
        %1647 = vmatpush1.msra.mxu0 %v1086
        %1648 = vmatprep.subr.mxu0 0.0
        %1649 = vmatpush1.msra.mxu0 %v1087
        %1650 = vmatprep.subr.mxu0 0.0
        %1651 = vmatpush1.msra.mxu0 %v1088
        %1652 = vmatprep.subr.mxu0 0.0
        %1653 = vmatpush1.msra.mxu0 %v1089
        %1654 = vmatprep.subr.mxu0 0.0
        %1655 = vmatpush1.msra.mxu0 %v1090
        %1656 = vmatprep.subr.mxu0 0.0
        %1657 = vmatpush1.msra.mxu0 %v1091
        %1658 = vmatprep.subr.mxu0 0.0
        %1659 = vmatpush1.msra.mxu0 %v1092
        %1660 = vmatprep.subr.mxu0 0.0
        %1661 = vmatpush1.msra.mxu0 %v1093
        %1662 = vmatprep.subr.mxu0 0.0
        %1663 = vmatpush1.msra.mxu0 %v1094
        %1664 = vmatprep.subr.mxu0 0.0
        %1665 = vmatpush1.msra.mxu0 %v1095
        %1666 = vmatprep.subr.mxu0 0.0
        %1667 = vmatpush1.msra.mxu0 %v1096
        %1668 = vmatprep.subr.mxu0 0.0
        %1669 = vmatpush1.msra.mxu0 %v1097
        %1670 = vmatprep.subr.mxu0 0.0
        %1671 = vmatpush1.msra.mxu0 %v1098
        %1672 = vmatprep.subr.mxu0 0.0
        %1673 = vmatpush1.msra.mxu0 %v1099
        %1674 = vmatprep.subr.mxu0 0.0
        %1675 = vmatpush1.msra.mxu0 %v1100
        %1676 = vmatprep.subr.mxu0 0.0
        %1677 = vmatpush1.msra.mxu0 %v1101
        %1678 = vmatprep.subr.mxu0 0.0
        %1679 = vmatpush1.msra.mxu0 %v1102
        %1680 = vmatprep.subr.mxu0 0.0
        %1681 = vmatpush1.msra.mxu0 %v1103
        %1682 = vmatprep.subr.mxu0 0.0
        %1683 = vmatpush1.msra.mxu0 %v1104
        %1684 = vmatprep.subr.mxu0 0.0
        %1685 = vmatpush1.msra.mxu0 %v1105
        %1686 = vmatprep.subr.mxu0 0.0
        %1687 = vmatpush1.msra.mxu0 %v1106
        %1688 = vmatprep.subr.mxu0 0.0
        %1689 = vmatpush1.msra.mxu0 %v1107
        %1690 = vmatprep.mubr.f32.mxu0 %v807
        %1691 = vmatmul.mubr.f32.gmra.mrb[0].mxu0 %v806
        %v1692 = vpop.f32.mrb[0].mxu0
        %v1693 = vadd.f32 %v1528, %v1692
        %v1694 = vpop.f32.mrb[0].mxu0
        %1695 = vmatprep.mubr.f32.mxu0 %v816
        %1696 = vmatmul.mubr.f32.gmra.mrb[0].mxu0 %v815
        %v1697 = vpop.f32.mrb[0].mxu0
        %v1698 = vadd.f32 %v1533, %v1697
        %v1699 = vpop.f32.mrb[0].mxu0
        %1700 = vmatprep.mubr.f32.mxu0 %v825
        %1701 = vmatmul.mubr.f32.gmra.mrb[0].mxu0 %v824
        %v1702 = vpop.f32.mrb[0].mxu0
        %v1703 = vadd.f32 %v1538, %v1702
        %v1704 = vpop.f32.mrb[0].mxu0
        %1705 = vmatprep.mubr.f32.mxu0 %v834
        %1706 = vmatmul.mubr.f32.gmra.mrb[0].mxu0 %v833
        %v1707 = vpop.f32.mrb[0].mxu0
        %v1708 = vadd.f32 %v1543, %v1707
        %v1709 = vpop.f32.mrb[0].mxu0
        %1710 = vmatprep.mubr.f32.mxu0 %v843
        %1711 = vmatmul.mubr.f32.gmra.mrb[0].mxu0 %v842
        %v1712 = vpop.f32.mrb[0].mxu0
        %v1713 = vadd.f32 %v1548, %v1712
        %v1714 = vpop.f32.mrb[0].mxu0
        %1715 = vmatprep.mubr.f32.mxu0 %v852
        %1716 = vmatmul.mubr.f32.gmra.mrb[0].mxu0 %v851
        %v1717 = vpop.f32.mrb[0].mxu0
        %v1718 = vadd.f32 %v1553, %v1717
        %v1719 = vpop.f32.mrb[0].mxu0
        %1720 = vmatprep.mubr.f32.mxu0 %v861
        %1721 = vmatmul.mubr.f32.gmra.mrb[0].mxu0 %v860
        %v1722 = vpop.f32.mrb[0].mxu0
        %v1723 = vadd.f32 %v1558, %v1722
        %v1724 = vpop.f32.mrb[0].mxu0
        %1725 = vmatprep.mubr.f32.mxu0 %v870
        %1726 = vmatmul.mubr.f32.gmra.mrb[0].mxu0 %v869
        %v1727 = vpop.f32.mrb[0].mxu0
        %v1728 = vadd.f32 %v1563, %v1727
        %v1729 = vpop.f32.mrb[0].mxu0
        %1730 = vmatprep.mubr.f32.mxu0 %v879
        %1731 = vmatmul.mubr.f32.gmra.mrb[0].mxu0 %v878
        %v1732 = vpop.f32.mrb[0].mxu0
        %v1733 = vadd.f32 %v1568, %v1732
        %v1734 = vpop.f32.mrb[0].mxu0
        %1735 = vmatprep.mubr.f32.mxu0 %v888
        %1736 = vmatmul.mubr.f32.gmra.mrb[0].mxu0 %v887
        %v1737 = vpop.f32.mrb[0].mxu0
        %v1738 = vadd.f32 %v1573, %v1737
        %v1739 = vpop.f32.mrb[0].mxu0
        %1740 = vmatprep.mubr.f32.mxu0 %v897
        %1741 = vmatmul.mubr.f32.gmra.mrb[0].mxu0 %v896
        %v1742 = vpop.f32.mrb[0].mxu0
        %v1743 = vadd.f32 %v1578, %v1742
        %v1744 = vpop.f32.mrb[0].mxu0
        %1745 = vmatprep.mubr.f32.mxu0 %v906
        %1746 = vmatmul.mubr.f32.gmra.mrb[0].mxu0 %v905
        %v1747 = vpop.f32.mrb[0].mxu0
        %v1748 = vadd.f32 %v1583, %v1747
        %v1749 = vpop.f32.mrb[0].mxu0
        %1750 = vmatprep.mubr.f32.mxu0 %v915
        %1751 = vmatmul.mubr.f32.gmra.mrb[0].mxu0 %v914
        %v1752 = vpop.f32.mrb[0].mxu0
        %v1753 = vadd.f32 %v1588, %v1752
        %v1754 = vpop.f32.mrb[0].mxu0
        %1755 = vmatprep.mubr.f32.mxu0 %v924
        %1756 = vmatmul.mubr.f32.gmra.mrb[0].mxu0 %v923
        %v1757 = vpop.f32.mrb[0].mxu0
        %v1758 = vadd.f32 %v1593, %v1757
        %v1759 = vpop.f32.mrb[0].mxu0
        %1760 = vmatprep.mubr.f32.mxu0 %v933
        %1761 = vmatmul.mubr.f32.gmra.mrb[0].mxu0 %v932
        %v1762 = vpop.f32.mrb[0].mxu0
        %v1763 = vadd.f32 %v1598, %v1762
        %v1764 = vpop.f32.mrb[0].mxu0
        %1765 = vmatprep.mubr.f32.mxu0 %v942
        %1766 = vmatmul.mubr.f32.gmra.mrb[0].mxu0 %v941
        %v1767 = vpop.f32.mrb[0].mxu0
        %v1768 = vadd.f32 %v1603, %v1767
        %v1769 = vpop.f32.mrb[0].mxu0
        %1770 = vmatprep.mubr.f32.mxu0 %v951
        %1771 = vmatmul.mubr.f32.gmra.mrb[0].mxu0 %v950
        %v1772 = vpop.f32.mrb[0].mxu0
        %v1773 = vadd.f32 %v1608, %v1772
        %v1774 = vpop.f32.mrb[0].mxu0
        %1775 = vmatprep.mubr.f32.mxu0 %v960
        %1776 = vmatmul.mubr.f32.gmra.mrb[0].mxu0 %v959
        %v1777 = vpop.f32.mrb[0].mxu0
        %v1778 = vadd.f32 %v1613, %v1777
        %v1779 = vpop.f32.mrb[0].mxu0
        %1780 = vmatprep.mubr.f32.mxu0 %v969
        %1781 = vmatmul.mubr.f32.gmra.mrb[0].mxu0 %v968
        %v1782 = vpop.f32.mrb[0].mxu0
        %v1783 = vadd.f32 %v1618, %v1782
        %v1784 = vpop.f32.mrb[0].mxu0
        %1785 = vmatprep.mubr.f32.mxu0 %v978
        %1786 = vmatmul.mubr.f32.gmra.mrb[0].mxu0 %v977
        %v1787 = vpop.f32.mrb[0].mxu0
        %v1788 = vadd.f32 %v1623, %v1787
        %v1789 = vpop.f32.mrb[0].mxu0
        %1790 = vdwg.mxu0
        %1791 = vmatprep.subr.mxu0 0.0
        %1792 = vmatpush1.msra.mxu0 %v1108
        %1793 = vmatprep.subr.mxu0 0.0
        %1794 = vmatpush1.msra.mxu0 %v1109
        %1795 = vmatprep.subr.mxu0 0.0
        %1796 = vmatpush1.msra.mxu0 %v1110
        %1797 = vmatprep.subr.mxu0 0.0
        %1798 = vmatpush1.msra.mxu0 %v1111
        %1799 = vmatprep.subr.mxu0 0.0
        %1800 = vmatpush1.msra.mxu0 %v1112
        %1801 = vmatprep.subr.mxu0 0.0
        %1802 = vmatpush1.msra.mxu0 %v1113
        %1803 = vmatprep.subr.mxu0 0.0
        %1804 = vmatpush1.msra.mxu0 %v1114
        %1805 = vmatprep.subr.mxu0 0.0
        %1806 = vmatpush1.msra.mxu0 %v1115
        %1807 = vmatprep.subr.mxu0 0.0
        %1808 = vmatpush1.msra.mxu0 %v1116
        %1809 = vmatprep.subr.mxu0 0.0
        %1810 = vmatpush1.msra.mxu0 %v1117
        %1811 = vmatprep.subr.mxu0 0.0
        %1812 = vmatpush1.msra.mxu0 %v1118
        %1813 = vmatprep.subr.mxu0 0.0
        %1814 = vmatpush1.msra.mxu0 %v1119
        %1815 = vmatprep.subr.mxu0 0.0
        %1816 = vmatpush1.msra.mxu0 %v1120
        %1817 = vmatprep.subr.mxu0 0.0
        %1818 = vmatpush1.msra.mxu0 %v1121
        %1819 = vmatprep.subr.mxu0 0.0
        %1820 = vmatpush1.msra.mxu0 %v1122
        %1821 = vmatprep.subr.mxu0 0.0
        %1822 = vmatpush1.msra.mxu0 %v1123
        %1823 = vmatprep.subr.mxu0 0.0
        %1824 = vmatpush1.msra.mxu0 0.0
        %1825 = vmatprep.subr.mxu0 0.0
        %1826 = vmatpush1.msra.mxu0 0.0
        %1827 = vmatprep.subr.mxu0 0.0
        %1828 = vmatpush1.msra.mxu0 0.0
        %1829 = vmatprep.subr.mxu0 0.0
        %1830 = vmatpush1.msra.mxu0 0.0
        %1831 = vmatprep.subr.mxu0 0.0
        %1832 = vmatpush1.msra.mxu0 0.0
        %1833 = vmatprep.subr.mxu0 0.0
        %1834 = vmatpush1.msra.mxu0 0.0
        %1835 = vmatprep.subr.mxu0 0.0
        %1836 = vmatpush1.msra.mxu0 0.0
        %1837 = vmatprep.subr.mxu0 0.0
        %1838 = vmatpush1.msra.mxu0 0.0
        %1839 = vmatprep.subr.mxu0 0.0
        %1840 = vmatpush1.msra.mxu0 0.0
        %1841 = vmatprep.subr.mxu0 0.0
        %1842 = vmatpush1.msra.mxu0 0.0
        %1843 = vmatprep.subr.mxu0 0.0
        %1844 = vmatpush1.msra.mxu0 0.0
        %1845 = vmatprep.subr.mxu0 0.0
        %1846 = vmatpush1.msra.mxu0 0.0
        %1847 = vmatprep.subr.mxu0 0.0
        %1848 = vmatpush1.msra.mxu0 0.0
        %1849 = vmatprep.subr.mxu0 0.0
        %1850 = vmatpush1.msra.mxu0 0.0
        %1851 = vmatprep.subr.mxu0 0.0
        %1852 = vmatpush1.msra.mxu0 0.0
        %1853 = vmatprep.subr.mxu0 0.0
        %1854 = vmatpush1.msra.mxu0 0.0
        %1855 = vmatprep.mubr.f32.mxu0 0.0
        %1856 = vmatmul.mubr.f32.gmra.mrb[0].mxu0 %v808
        %v1857 = vpop.f32.mrb[0].mxu0
        %v1858 = vadd.f32 %v1693, %v1857
        %v1859 = vpop.f32.mrb[0].mxu0
        %1860 = vmatprep.mubr.f32.mxu0 0.0
        %1861 = vmatmul.mubr.f32.gmra.mrb[0].mxu0 %v817
        %v1862 = vpop.f32.mrb[0].mxu0
        %v1863 = vadd.f32 %v1698, %v1862
        %v1864 = vpop.f32.mrb[0].mxu0
        %1865 = vmatprep.mubr.f32.mxu0 0.0
        %1866 = vmatmul.mubr.f32.gmra.mrb[0].mxu0 %v826
        %v1867 = vpop.f32.mrb[0].mxu0
        %v1868 = vadd.f32 %v1703, %v1867
        %v1869 = vpop.f32.mrb[0].mxu0
        %1870 = vmatprep.mubr.f32.mxu0 0.0
        %1871 = vmatmul.mubr.f32.gmra.mrb[0].mxu0 %v835
        %v1872 = vpop.f32.mrb[0].mxu0
        %v1873 = vadd.f32 %v1708, %v1872
        %v1874 = vpop.f32.mrb[0].mxu0
        %1875 = vmatprep.mubr.f32.mxu0 0.0
        %1876 = vmatmul.mubr.f32.gmra.mrb[0].mxu0 %v844
        %v1877 = vpop.f32.mrb[0].mxu0
        %v1878 = vadd.f32 %v1713, %v1877
        %v1879 = vpop.f32.mrb[0].mxu0
        %1880 = vmatprep.mubr.f32.mxu0 0.0
        %1881 = vmatmul.mubr.f32.gmra.mrb[0].mxu0 %v853
        %v1882 = vpop.f32.mrb[0].mxu0
        %v1883 = vadd.f32 %v1718, %v1882
        %v1884 = vpop.f32.mrb[0].mxu0
        %1885 = vmatprep.mubr.f32.mxu0 0.0
        %1886 = vmatmul.mubr.f32.gmra.mrb[0].mxu0 %v862
        %v1887 = vpop.f32.mrb[0].mxu0
        %v1888 = vadd.f32 %v1723, %v1887
        %v1889 = vpop.f32.mrb[0].mxu0
        %1890 = vmatprep.mubr.f32.mxu0 0.0
        %1891 = vmatmul.mubr.f32.gmra.mrb[0].mxu0 %v871
        %v1892 = vpop.f32.mrb[0].mxu0
        %v1893 = vadd.f32 %v1728, %v1892
        %v1894 = vpop.f32.mrb[0].mxu0
        %1895 = vmatprep.mubr.f32.mxu0 0.0
        %1896 = vmatmul.mubr.f32.gmra.mrb[0].mxu0 %v880
        %v1897 = vpop.f32.mrb[0].mxu0
        %v1898 = vadd.f32 %v1733, %v1897
        %v1899 = vpop.f32.mrb[0].mxu0
        %1900 = vmatprep.mubr.f32.mxu0 0.0
        %1901 = vmatmul.mubr.f32.gmra.mrb[0].mxu0 %v889
        %v1902 = vpop.f32.mrb[0].mxu0
        %v1903 = vadd.f32 %v1738, %v1902
        %v1904 = vpop.f32.mrb[0].mxu0
        %1905 = vmatprep.mubr.f32.mxu0 0.0
        %1906 = vmatmul.mubr.f32.gmra.mrb[0].mxu0 %v898
        %v1907 = vpop.f32.mrb[0].mxu0
        %v1908 = vadd.f32 %v1743, %v1907
        %v1909 = vpop.f32.mrb[0].mxu0
        %1910 = vmatprep.mubr.f32.mxu0 0.0
        %1911 = vmatmul.mubr.f32.gmra.mrb[0].mxu0 %v907
        %v1912 = vpop.f32.mrb[0].mxu0
        %v1913 = vadd.f32 %v1748, %v1912
        %v1914 = vpop.f32.mrb[0].mxu0
        %1915 = vmatprep.mubr.f32.mxu0 0.0
        %1916 = vmatmul.mubr.f32.gmra.mrb[0].mxu0 %v916
        %v1917 = vpop.f32.mrb[0].mxu0
        %v1918 = vadd.f32 %v1753, %v1917
        %v1919 = vpop.f32.mrb[0].mxu0
        %1920 = vmatprep.mubr.f32.mxu0 0.0
        %1921 = vmatmul.mubr.f32.gmra.mrb[0].mxu0 %v925
        %v1922 = vpop.f32.mrb[0].mxu0
        %v1923 = vadd.f32 %v1758, %v1922
        %v1924 = vpop.f32.mrb[0].mxu0
        %1925 = vmatprep.mubr.f32.mxu0 0.0
        %1926 = vmatmul.mubr.f32.gmra.mrb[0].mxu0 %v934
        %v1927 = vpop.f32.mrb[0].mxu0
        %v1928 = vadd.f32 %v1763, %v1927
        %v1929 = vpop.f32.mrb[0].mxu0
        %1930 = vmatprep.mubr.f32.mxu0 0.0
        %1931 = vmatmul.mubr.f32.gmra.mrb[0].mxu0 %v943
        %v1932 = vpop.f32.mrb[0].mxu0
        %v1933 = vadd.f32 %v1768, %v1932
        %v1934 = vpop.f32.mrb[0].mxu0
        %1935 = vmatprep.mubr.f32.mxu0 0.0
        %1936 = vmatmul.mubr.f32.gmra.mrb[0].mxu0 %v952
        %v1937 = vpop.f32.mrb[0].mxu0
        %v1938 = vadd.f32 %v1773, %v1937
        %v1939 = vpop.f32.mrb[0].mxu0
        %1940 = vmatprep.mubr.f32.mxu0 0.0
        %1941 = vmatmul.mubr.f32.gmra.mrb[0].mxu0 %v961
        %v1942 = vpop.f32.mrb[0].mxu0
        %v1943 = vadd.f32 %v1778, %v1942
        %v1944 = vpop.f32.mrb[0].mxu0
        %1945 = vmatprep.mubr.f32.mxu0 0.0
        %1946 = vmatmul.mubr.f32.gmra.mrb[0].mxu0 %v970
        %v1947 = vpop.f32.mrb[0].mxu0
        %v1948 = vadd.f32 %v1783, %v1947
        %v1949 = vpop.f32.mrb[0].mxu0
        %1950 = vmatprep.mubr.f32.mxu0 0.0
        %1951 = vmatmul.mubr.f32.gmra.mrb[0].mxu0 %v979
        %v1952 = vpop.f32.mrb[0].mxu0
        %v1953 = vadd.f32 %v1788, %v1952
        %v1954 = vpop.f32.mrb[0].mxu0
        %1955 = vdwg.mxu0
        %v1956 = vmax.f32 %v1858, 0.0
        %v1957 = vmax.f32 %v1863, 0.0
        %v1958 = vmax.f32 %v1868, 0.0
        %v1959 = vmax.f32 %v1873, 0.0
        %v1960 = vmax.f32 %v1878, 0.0
        %v1961 = vmax.f32 %v1883, 0.0
        %v1962 = vmax.f32 %v1888, 0.0
        %v1963 = vmax.f32 %v1893, 0.0
        %v1964 = vmax.f32 %v1898, 0.0
        %v1965 = vmax.f32 %v1903, 0.0
        %v1966 = vmax.f32 %v1908, 0.0
        %v1967 = vmax.f32 %v1913, 0.0
        %v1968 = vmax.f32 %v1918, 0.0
        %v1969 = vmax.f32 %v1923, 0.0
        %v1970 = vmax.f32 %v1928, 0.0
        %v1971 = vmax.f32 %v1933, 0.0
        %v1972 = vmax.f32 %v1938, 0.0
        %v1973 = vmax.f32 %v1943, 0.0
        %v1974 = vmax.f32 %v1948, 0.0
        %v1975 = vmax.f32 %v1953, 0.0
        %1976 = vst [vmem:[#allocation2 + $0x1] sm:$0xff] %v1956
        %1977 = vst [vmem:[#allocation2 + $0x9] sm:$0xff] %v1957
        %1978 = vst [vmem:[#allocation2 + $0x19] sm:$0xff] %v1958
        %1979 = vst [vmem:[#allocation2 + $0x21] sm:$0xff] %v1959
        %1980 = vst [vmem:[#allocation2 + $0x31] sm:$0xff] %v1960
        %1981 = vst [vmem:[#allocation2 + $0x39] sm:$0xff] %v1961
        %1982 = vst [vmem:[#allocation2 + $0x49] sm:$0xff] %v1962
        %1983 = vst [vmem:[#allocation2 + $0x51] sm:$0xff] %v1963
        %1984 = vst [vmem:[#allocation2 + $0x61] sm:$0xff] %v1964
        %1985 = vst [vmem:[#allocation2 + $0x69] sm:$0xff] %v1965
        %1986 = vst [vmem:[#allocation2 + $0x79] sm:$0xff] %v1966
        %1987 = vst [vmem:[#allocation2 + $0x81] sm:$0xff] %v1967
        %1988 = vst [vmem:[#allocation2 + $0x91] sm:$0xff] %v1968
        %1989 = vst [vmem:[#allocation2 + $0x99] sm:$0xff] %v1969
        %1990 = vst [vmem:[#allocation2 + $0xa9] sm:$0xff] %v1970
        %1991 = vst [vmem:[#allocation2 + $0xb1] sm:$0xff] %v1971
        %1992 = vst [vmem:[#allocation2 + $0xc1] sm:$0xff] %v1972
        %1993 = vst [vmem:[#allocation2 + $0xc9] sm:$0xff] %v1973
        %1994 = vst [vmem:[#allocation2 + $0xd9] sm:$0xff] %v1974
        %1995 = vst [vmem:[#allocation2 + $0xe1] sm:$0xff] %v1975
        %p1996 = scmp.eq.s32.totalorder %s32, 0
        // Predicated region
        $region61: #{tpu_custom_call.1} parent=43 // pred_check
          %p1997 = pneg %p1996
        $region62: #{tpu_custom_call.1} parent=43 // pred_check_branch
          %1999 = sbr.rel (%p1997) target = $region64
        $region63: #{tpu_custom_call.1} parent=43 // pred_region
          %2000 = vst [vmem:[#allocation2] sm:$0xff] 0.0
          %2001 = vst [vmem:[#allocation2 + $0x8] sm:$0xff] 0.0
          %2002 = vst [vmem:[#allocation2 + $0x10] sm:$0x3] 0.0
        $region64: #{tpu_custom_call.1} parent=43 // pred_fallthru
          _
        %p2003 = scmp.eq.s32.totalorder %s32, 1
        // Predicated region
        $region65: #{tpu_custom_call.1} parent=43 // pred_check
          %p2004 = pneg %p2003
        $region66: #{tpu_custom_call.1} parent=43 // pred_check_branch
          %2006 = sbr.rel (%p2004) target = $region68
        $region67: #{tpu_custom_call.1} parent=43 // pred_region
          %s2007 = scalar_lea.vmem [#allocation2], 216
          %2008 = vst [vmem:[%s2007] sm:$0xff] 0.0
          %2009 = vst [vmem:[%s2007 + $0x8] sm:$0xff] 0.0
          %2010 = vst [vmem:[%s2007 + $0x10] sm:$0x3] 0.0
        $region68: #{tpu_custom_call.1} parent=43 // pred_fallthru
          _
        %v2011 = vld [vmem:[#allocation2] sm:$0xff]
        %v2012 = vld [vmem:[#allocation2 + $0x8] sm:$0xff]
        %v2013 = vld [vmem:[#allocation2 + $0x18] sm:$0xff]
        %v2014 = vld [vmem:[#allocation2 + $0x20] sm:$0xff]
        %v2015 = vld [vmem:[#allocation2 + $0x30] sm:$0xff]
        %v2016 = vld [vmem:[#allocation2 + $0x38] sm:$0xff]
        %v2017 = vld [vmem:[#allocation2 + $0x48] sm:$0xff]
        %v2018 = vld [vmem:[#allocation2 + $0x50] sm:$0xff]
        %v2019 = vld [vmem:[#allocation2 + $0x60] sm:$0xff]
        %v2020 = vld [vmem:[#allocation2 + $0x68] sm:$0xff]
        %v2021 = vld [vmem:[#allocation2 + $0x78] sm:$0xff]
        %v2022 = vld [vmem:[#allocation2 + $0x80] sm:$0xff]
        %v2023 = vld [vmem:[#allocation2 + $0x90] sm:$0xff]
        %v2024 = vld [vmem:[#allocation2 + $0x98] sm:$0xff]
        %v2025 = vld [vmem:[#allocation2 + $0xa8] sm:$0xff]
        %v2026 = vld [vmem:[#allocation2 + $0xb0] sm:$0xff]
        %2027 = vst [vmem:[#allocation3] sm:$0xff] %v2011
        %2028 = vst [vmem:[#allocation3 + $0x48] sm:$0xff] %v2012
        %2029 = vst [vmem:[#allocation3 + $0x90] sm:$0xff] %v2013
        %2030 = vst [vmem:[#allocation3 + $0xd8] sm:$0xff] %v2014
        %2031 = vst [vmem:[#allocation3 + $0x120] sm:$0xff] %v2015
        %2032 = vst [vmem:[#allocation3 + $0x168] sm:$0xff] %v2016
        %2033 = vst [vmem:[#allocation3 + $0x1b0] sm:$0xff] %v2017
        %2034 = vst [vmem:[#allocation3 + $0x1f8] sm:$0xff] %v2018
        %2035 = vst [vmem:[#allocation3 + $0x240] sm:$0xff] %v2019
        %2036 = vst [vmem:[#allocation3 + $0x288] sm:$0xff] %v2020
        %2037 = vst [vmem:[#allocation3 + $0x2d0] sm:$0xff] %v2021
        %2038 = vst [vmem:[#allocation3 + $0x318] sm:$0xff] %v2022
        %2039 = vst [vmem:[#allocation3 + $0x360] sm:$0xff] %v2023
        %2040 = vst [vmem:[#allocation3 + $0x3a8] sm:$0xff] %v2024
        %2041 = vst [vmem:[#allocation3 + $0x3f0] sm:$0xff] %v2025
        %2042 = vst [vmem:[#allocation3 + $0x438] sm:$0xff] %v2026
        %v2043 = vld [vmem:[#allocation2 + $0x1] sm:$0xff]
        %v2044 = vld [vmem:[#allocation2 + $0x9] sm:$0xff]
        %v2045 = vld [vmem:[#allocation2 + $0x19] sm:$0xff]
        %v2046 = vld [vmem:[#allocation2 + $0x21] sm:$0xff]
        %v2047 = vld [vmem:[#allocation2 + $0x31] sm:$0xff]
        %v2048 = vld [vmem:[#allocation2 + $0x39] sm:$0xff]
        %v2049 = vld [vmem:[#allocation2 + $0x49] sm:$0xff]
        %v2050 = vld [vmem:[#allocation2 + $0x51] sm:$0xff]
        %v2051 = vld [vmem:[#allocation2 + $0x61] sm:$0xff]
        %v2052 = vld [vmem:[#allocation2 + $0x69] sm:$0xff]
        %v2053 = vld [vmem:[#allocation2 + $0x79] sm:$0xff]
        %v2054 = vld [vmem:[#allocation2 + $0x81] sm:$0xff]
        %v2055 = vld [vmem:[#allocation2 + $0x91] sm:$0xff]
        %v2056 = vld [vmem:[#allocation2 + $0x99] sm:$0xff]
        %v2057 = vld [vmem:[#allocation2 + $0xa9] sm:$0xff]
        %v2058 = vld [vmem:[#allocation2 + $0xb1] sm:$0xff]
        %2059 = vst [vmem:[#allocation3 + $0x8] sm:$0xff] %v2043
        %2060 = vst [vmem:[#allocation3 + $0x50] sm:$0xff] %v2044
        %2061 = vst [vmem:[#allocation3 + $0x98] sm:$0xff] %v2045
        %2062 = vst [vmem:[#allocation3 + $0xe0] sm:$0xff] %v2046
        %2063 = vst [vmem:[#allocation3 + $0x128] sm:$0xff] %v2047
        %2064 = vst [vmem:[#allocation3 + $0x170] sm:$0xff] %v2048
        %2065 = vst [vmem:[#allocation3 + $0x1b8] sm:$0xff] %v2049
        %2066 = vst [vmem:[#allocation3 + $0x200] sm:$0xff] %v2050
        %2067 = vst [vmem:[#allocation3 + $0x248] sm:$0xff] %v2051
        %2068 = vst [vmem:[#allocation3 + $0x290] sm:$0xff] %v2052
        %2069 = vst [vmem:[#allocation3 + $0x2d8] sm:$0xff] %v2053
        %2070 = vst [vmem:[#allocation3 + $0x320] sm:$0xff] %v2054
        %2071 = vst [vmem:[#allocation3 + $0x368] sm:$0xff] %v2055
        %2072 = vst [vmem:[#allocation3 + $0x3b0] sm:$0xff] %v2056
        %2073 = vst [vmem:[#allocation3 + $0x3f8] sm:$0xff] %v2057
        %2074 = vst [vmem:[#allocation3 + $0x440] sm:$0xff] %v2058
        %v2075 = vld [vmem:[#allocation2 + $0x2] sm:$0xff]
        %v2076 = vld [vmem:[#allocation2 + $0xa] sm:$0xff]
        %v2077 = vld [vmem:[#allocation2 + $0x1a] sm:$0xff]
        %v2078 = vld [vmem:[#allocation2 + $0x22] sm:$0xff]
        %v2079 = vld [vmem:[#allocation2 + $0x32] sm:$0xff]
        %v2080 = vld [vmem:[#allocation2 + $0x3a] sm:$0xff]
        %v2081 = vld [vmem:[#allocation2 + $0x4a] sm:$0xff]
        %v2082 = vld [vmem:[#allocation2 + $0x52] sm:$0xff]
        %v2083 = vld [vmem:[#allocation2 + $0x62] sm:$0xff]
        %v2084 = vld [vmem:[#allocation2 + $0x6a] sm:$0xff]
        %v2085 = vld [vmem:[#allocation2 + $0x7a] sm:$0xff]
        %v2086 = vld [vmem:[#allocation2 + $0x82] sm:$0xff]
        %v2087 = vld [vmem:[#allocation2 + $0x92] sm:$0xff]
        %v2088 = vld [vmem:[#allocation2 + $0x9a] sm:$0xff]
        %v2089 = vld [vmem:[#allocation2 + $0xaa] sm:$0xff]
        %v2090 = vld [vmem:[#allocation2 + $0xb2] sm:$0xff]
        %2091 = vst [vmem:[#allocation3 + $0x10] sm:$0xff] %v2075
        %2092 = vst [vmem:[#allocation3 + $0x58] sm:$0xff] %v2076
        %2093 = vst [vmem:[#allocation3 + $0xa0] sm:$0xff] %v2077
        %2094 = vst [vmem:[#allocation3 + $0xe8] sm:$0xff] %v2078
        %2095 = vst [vmem:[#allocation3 + $0x130] sm:$0xff] %v2079
        %2096 = vst [vmem:[#allocation3 + $0x178] sm:$0xff] %v2080
        %2097 = vst [vmem:[#allocation3 + $0x1c0] sm:$0xff] %v2081
        %2098 = vst [vmem:[#allocation3 + $0x208] sm:$0xff] %v2082
        %2099 = vst [vmem:[#allocation3 + $0x250] sm:$0xff] %v2083
        %2100 = vst [vmem:[#allocation3 + $0x298] sm:$0xff] %v2084
        %2101 = vst [vmem:[#allocation3 + $0x2e0] sm:$0xff] %v2085
        %2102 = vst [vmem:[#allocation3 + $0x328] sm:$0xff] %v2086
        %2103 = vst [vmem:[#allocation3 + $0x370] sm:$0xff] %v2087
        %2104 = vst [vmem:[#allocation3 + $0x3b8] sm:$0xff] %v2088
        %2105 = vst [vmem:[#allocation3 + $0x400] sm:$0xff] %v2089
        %2106 = vst [vmem:[#allocation3 + $0x448] sm:$0xff] %v2090
        %v2107 = vld [vmem:[%s559] sm:$0xff]
        %v2108 = vld [vmem:[%s559 + $0x8] sm:$0xff]
        %v2109 = vld [vmem:[%s559 + $0x18] sm:$0xff]
        %v2110 = vld [vmem:[%s559 + $0x20] sm:$0xff]
        %v2111 = vld [vmem:[%s559 + $0x30] sm:$0xff]
        %v2112 = vld [vmem:[%s559 + $0x38] sm:$0xff]
        %v2113 = vld [vmem:[%s559 + $0x48] sm:$0xff]
        %v2114 = vld [vmem:[%s559 + $0x50] sm:$0xff]
        %v2115 = vld [vmem:[%s559 + $0x60] sm:$0xff]
        %v2116 = vld [vmem:[%s559 + $0x68] sm:$0xff]
        %v2117 = vld [vmem:[%s559 + $0x78] sm:$0xff]
        %v2118 = vld [vmem:[%s559 + $0x80] sm:$0xff]
        %v2119 = vld [vmem:[%s559 + $0x90] sm:$0xff]
        %v2120 = vld [vmem:[%s559 + $0x98] sm:$0xff]
        %v2121 = vld [vmem:[%s559 + $0xa8] sm:$0xff]
        %v2122 = vld [vmem:[%s559 + $0xb0] sm:$0xff]
        %2123 = vst [vmem:[#allocation3 + $0x18] sm:$0xff] %v2107
        %2124 = vst [vmem:[#allocation3 + $0x60] sm:$0xff] %v2108
        %2125 = vst [vmem:[#allocation3 + $0xa8] sm:$0xff] %v2109
        %2126 = vst [vmem:[#allocation3 + $0xf0] sm:$0xff] %v2110
        %2127 = vst [vmem:[#allocation3 + $0x138] sm:$0xff] %v2111
        %2128 = vst [vmem:[#allocation3 + $0x180] sm:$0xff] %v2112
        %2129 = vst [vmem:[#allocation3 + $0x1c8] sm:$0xff] %v2113
        %2130 = vst [vmem:[#allocation3 + $0x210] sm:$0xff] %v2114
        %2131 = vst [vmem:[#allocation3 + $0x258] sm:$0xff] %v2115
        %2132 = vst [vmem:[#allocation3 + $0x2a0] sm:$0xff] %v2116
        %2133 = vst [vmem:[#allocation3 + $0x2e8] sm:$0xff] %v2117
        %2134 = vst [vmem:[#allocation3 + $0x330] sm:$0xff] %v2118
        %2135 = vst [vmem:[#allocation3 + $0x378] sm:$0xff] %v2119
        %2136 = vst [vmem:[#allocation3 + $0x3c0] sm:$0xff] %v2120
        %2137 = vst [vmem:[#allocation3 + $0x408] sm:$0xff] %v2121
        %2138 = vst [vmem:[#allocation3 + $0x450] sm:$0xff] %v2122
        %v2139 = vld [vmem:[%s559 + $0x1] sm:$0xff]
        %v2140 = vld [vmem:[%s559 + $0x9] sm:$0xff]
        %v2141 = vld [vmem:[%s559 + $0x19] sm:$0xff]
        %v2142 = vld [vmem:[%s559 + $0x21] sm:$0xff]
        %v2143 = vld [vmem:[%s559 + $0x31] sm:$0xff]
        %v2144 = vld [vmem:[%s559 + $0x39] sm:$0xff]
        %v2145 = vld [vmem:[%s559 + $0x49] sm:$0xff]
        %v2146 = vld [vmem:[%s559 + $0x51] sm:$0xff]
        %v2147 = vld [vmem:[%s559 + $0x61] sm:$0xff]
        %v2148 = vld [vmem:[%s559 + $0x69] sm:$0xff]
        %v2149 = vld [vmem:[%s559 + $0x79] sm:$0xff]
        %v2150 = vld [vmem:[%s559 + $0x81] sm:$0xff]
        %v2151 = vld [vmem:[%s559 + $0x91] sm:$0xff]
        %v2152 = vld [vmem:[%s559 + $0x99] sm:$0xff]
        %v2153 = vld [vmem:[%s559 + $0xa9] sm:$0xff]
        %v2154 = vld [vmem:[%s559 + $0xb1] sm:$0xff]
        %2155 = vst [vmem:[#allocation3 + $0x20] sm:$0xff] %v2139
        %2156 = vst [vmem:[#allocation3 + $0x68] sm:$0xff] %v2140
        %2157 = vst [vmem:[#allocation3 + $0xb0] sm:$0xff] %v2141
        %2158 = vst [vmem:[#allocation3 + $0xf8] sm:$0xff] %v2142
        %2159 = vst [vmem:[#allocation3 + $0x140] sm:$0xff] %v2143
        %2160 = vst [vmem:[#allocation3 + $0x188] sm:$0xff] %v2144
        %2161 = vst [vmem:[#allocation3 + $0x1d0] sm:$0xff] %v2145
        %2162 = vst [vmem:[#allocation3 + $0x218] sm:$0xff] %v2146
        %2163 = vst [vmem:[#allocation3 + $0x260] sm:$0xff] %v2147
        %2164 = vst [vmem:[#allocation3 + $0x2a8] sm:$0xff] %v2148
        %2165 = vst [vmem:[#allocation3 + $0x2f0] sm:$0xff] %v2149
        %2166 = vst [vmem:[#allocation3 + $0x338] sm:$0xff] %v2150
        %2167 = vst [vmem:[#allocation3 + $0x380] sm:$0xff] %v2151
        %2168 = vst [vmem:[#allocation3 + $0x3c8] sm:$0xff] %v2152
        %2169 = vst [vmem:[#allocation3 + $0x410] sm:$0xff] %v2153
        %2170 = vst [vmem:[#allocation3 + $0x458] sm:$0xff] %v2154
        %v2171 = vld [vmem:[%s559 + $0x2] sm:$0xff]
        %v2172 = vld [vmem:[%s559 + $0xa] sm:$0xff]
        %v2173 = vld [vmem:[%s559 + $0x1a] sm:$0xff]
        %v2174 = vld [vmem:[%s559 + $0x22] sm:$0xff]
        %v2175 = vld [vmem:[%s559 + $0x32] sm:$0xff]
        %v2176 = vld [vmem:[%s559 + $0x3a] sm:$0xff]
        %v2177 = vld [vmem:[%s559 + $0x4a] sm:$0xff]
        %v2178 = vld [vmem:[%s559 + $0x52] sm:$0xff]
        %v2179 = vld [vmem:[%s559 + $0x62] sm:$0xff]
        %v2180 = vld [vmem:[%s559 + $0x6a] sm:$0xff]
        %v2181 = vld [vmem:[%s559 + $0x7a] sm:$0xff]
        %v2182 = vld [vmem:[%s559 + $0x82] sm:$0xff]
        %v2183 = vld [vmem:[%s559 + $0x92] sm:$0xff]
        %v2184 = vld [vmem:[%s559 + $0x9a] sm:$0xff]
        %v2185 = vld [vmem:[%s559 + $0xaa] sm:$0xff]
        %v2186 = vld [vmem:[%s559 + $0xb2] sm:$0xff]
        %2187 = vst [vmem:[#allocation3 + $0x28] sm:$0xff] %v2171
        %2188 = vst [vmem:[#allocation3 + $0x70] sm:$0xff] %v2172
        %2189 = vst [vmem:[#allocation3 + $0xb8] sm:$0xff] %v2173
        %2190 = vst [vmem:[#allocation3 + $0x100] sm:$0xff] %v2174
        %2191 = vst [vmem:[#allocation3 + $0x148] sm:$0xff] %v2175
        %2192 = vst [vmem:[#allocation3 + $0x190] sm:$0xff] %v2176
        %2193 = vst [vmem:[#allocation3 + $0x1d8] sm:$0xff] %v2177
        %2194 = vst [vmem:[#allocation3 + $0x220] sm:$0xff] %v2178
        %2195 = vst [vmem:[#allocation3 + $0x268] sm:$0xff] %v2179
        %2196 = vst [vmem:[#allocation3 + $0x2b0] sm:$0xff] %v2180
        %2197 = vst [vmem:[#allocation3 + $0x2f8] sm:$0xff] %v2181
        %2198 = vst [vmem:[#allocation3 + $0x340] sm:$0xff] %v2182
        %2199 = vst [vmem:[#allocation3 + $0x388] sm:$0xff] %v2183
        %2200 = vst [vmem:[#allocation3 + $0x3d0] sm:$0xff] %v2184
        %2201 = vst [vmem:[#allocation3 + $0x418] sm:$0xff] %v2185
        %2202 = vst [vmem:[#allocation3 + $0x460] sm:$0xff] %v2186
        %v2203 = vld [vmem:[%s412] sm:$0xff]
        %v2204 = vld [vmem:[%s412 + $0x8] sm:$0xff]
        %v2205 = vld [vmem:[%s412 + $0x18] sm:$0xff]
        %v2206 = vld [vmem:[%s412 + $0x20] sm:$0xff]
        %v2207 = vld [vmem:[%s412 + $0x30] sm:$0xff]
        %v2208 = vld [vmem:[%s412 + $0x38] sm:$0xff]
        %v2209 = vld [vmem:[%s412 + $0x48] sm:$0xff]
        %v2210 = vld [vmem:[%s412 + $0x50] sm:$0xff]
        %v2211 = vld [vmem:[%s412 + $0x60] sm:$0xff]
        %v2212 = vld [vmem:[%s412 + $0x68] sm:$0xff]
        %v2213 = vld [vmem:[%s412 + $0x78] sm:$0xff]
        %v2214 = vld [vmem:[%s412 + $0x80] sm:$0xff]
        %v2215 = vld [vmem:[%s412 + $0x90] sm:$0xff]
        %v2216 = vld [vmem:[%s412 + $0x98] sm:$0xff]
        %v2217 = vld [vmem:[%s412 + $0xa8] sm:$0xff]
        %v2218 = vld [vmem:[%s412 + $0xb0] sm:$0xff]
        %2219 = vst [vmem:[#allocation3 + $0x30] sm:$0xff] %v2203
        %2220 = vst [vmem:[#allocation3 + $0x78] sm:$0xff] %v2204
        %2221 = vst [vmem:[#allocation3 + $0xc0] sm:$0xff] %v2205
        %2222 = vst [vmem:[#allocation3 + $0x108] sm:$0xff] %v2206
        %2223 = vst [vmem:[#allocation3 + $0x150] sm:$0xff] %v2207
        %2224 = vst [vmem:[#allocation3 + $0x198] sm:$0xff] %v2208
        %2225 = vst [vmem:[#allocation3 + $0x1e0] sm:$0xff] %v2209
        %2226 = vst [vmem:[#allocation3 + $0x228] sm:$0xff] %v2210
        %2227 = vst [vmem:[#allocation3 + $0x270] sm:$0xff] %v2211
        %2228 = vst [vmem:[#allocation3 + $0x2b8] sm:$0xff] %v2212
        %2229 = vst [vmem:[#allocation3 + $0x300] sm:$0xff] %v2213
        %2230 = vst [vmem:[#allocation3 + $0x348] sm:$0xff] %v2214
        %2231 = vst [vmem:[#allocation3 + $0x390] sm:$0xff] %v2215
        %2232 = vst [vmem:[#allocation3 + $0x3d8] sm:$0xff] %v2216
        %2233 = vst [vmem:[#allocation3 + $0x420] sm:$0xff] %v2217
        %2234 = vst [vmem:[#allocation3 + $0x468] sm:$0xff] %v2218
        %v2235 = vld [vmem:[%s412 + $0x1] sm:$0xff]
        %v2236 = vld [vmem:[%s412 + $0x9] sm:$0xff]
        %v2237 = vld [vmem:[%s412 + $0x19] sm:$0xff]
        %v2238 = vld [vmem:[%s412 + $0x21] sm:$0xff]
        %v2239 = vld [vmem:[%s412 + $0x31] sm:$0xff]
        %v2240 = vld [vmem:[%s412 + $0x39] sm:$0xff]
        %v2241 = vld [vmem:[%s412 + $0x49] sm:$0xff]
        %v2242 = vld [vmem:[%s412 + $0x51] sm:$0xff]
        %v2243 = vld [vmem:[%s412 + $0x61] sm:$0xff]
        %v2244 = vld [vmem:[%s412 + $0x69] sm:$0xff]
        %v2245 = vld [vmem:[%s412 + $0x79] sm:$0xff]
        %v2246 = vld [vmem:[%s412 + $0x81] sm:$0xff]
        %v2247 = vld [vmem:[%s412 + $0x91] sm:$0xff]
        %v2248 = vld [vmem:[%s412 + $0x99] sm:$0xff]
        %v2249 = vld [vmem:[%s412 + $0xa9] sm:$0xff]
        %v2250 = vld [vmem:[%s412 + $0xb1] sm:$0xff]
        %2251 = vst [vmem:[#allocation3 + $0x38] sm:$0xff] %v2235
        %2252 = vst [vmem:[#allocation3 + $0x80] sm:$0xff] %v2236
        %2253 = vst [vmem:[#allocation3 + $0xc8] sm:$0xff] %v2237
        %2254 = vst [vmem:[#allocation3 + $0x110] sm:$0xff] %v2238
        %2255 = vst [vmem:[#allocation3 + $0x158] sm:$0xff] %v2239
        %2256 = vst [vmem:[#allocation3 + $0x1a0] sm:$0xff] %v2240
        %2257 = vst [vmem:[#allocation3 + $0x1e8] sm:$0xff] %v2241
        %2258 = vst [vmem:[#allocation3 + $0x230] sm:$0xff] %v2242
        %2259 = vst [vmem:[#allocation3 + $0x278] sm:$0xff] %v2243
        %2260 = vst [vmem:[#allocation3 + $0x2c0] sm:$0xff] %v2244
        %2261 = vst [vmem:[#allocation3 + $0x308] sm:$0xff] %v2245
        %2262 = vst [vmem:[#allocation3 + $0x350] sm:$0xff] %v2246
        %2263 = vst [vmem:[#allocation3 + $0x398] sm:$0xff] %v2247
        %2264 = vst [vmem:[#allocation3 + $0x3e0] sm:$0xff] %v2248
        %2265 = vst [vmem:[#allocation3 + $0x428] sm:$0xff] %v2249
        %2266 = vst [vmem:[#allocation3 + $0x470] sm:$0xff] %v2250
        %v2267 = vld [vmem:[%s412 + $0x2] sm:$0xff]
        %v2268 = vld [vmem:[%s412 + $0xa] sm:$0xff]
        %v2269 = vld [vmem:[%s412 + $0x1a] sm:$0xff]
        %v2270 = vld [vmem:[%s412 + $0x22] sm:$0xff]
        %v2271 = vld [vmem:[%s412 + $0x32] sm:$0xff]
        %v2272 = vld [vmem:[%s412 + $0x3a] sm:$0xff]
        %v2273 = vld [vmem:[%s412 + $0x4a] sm:$0xff]
        %v2274 = vld [vmem:[%s412 + $0x52] sm:$0xff]
        %v2275 = vld [vmem:[%s412 + $0x62] sm:$0xff]
        %v2276 = vld [vmem:[%s412 + $0x6a] sm:$0xff]
        %v2277 = vld [vmem:[%s412 + $0x7a] sm:$0xff]
        %v2278 = vld [vmem:[%s412 + $0x82] sm:$0xff]
        %v2279 = vld [vmem:[%s412 + $0x92] sm:$0xff]
        %v2280 = vld [vmem:[%s412 + $0x9a] sm:$0xff]
        %v2281 = vld [vmem:[%s412 + $0xaa] sm:$0xff]
        %v2282 = vld [vmem:[%s412 + $0xb2] sm:$0xff]
        %2283 = vst [vmem:[#allocation3 + $0x40] sm:$0xff] %v2267
        %2284 = vst [vmem:[#allocation3 + $0x88] sm:$0xff] %v2268
        %2285 = vst [vmem:[#allocation3 + $0xd0] sm:$0xff] %v2269
        %2286 = vst [vmem:[#allocation3 + $0x118] sm:$0xff] %v2270
        %2287 = vst [vmem:[#allocation3 + $0x160] sm:$0xff] %v2271
        %2288 = vst [vmem:[#allocation3 + $0x1a8] sm:$0xff] %v2272
        %2289 = vst [vmem:[#allocation3 + $0x1f0] sm:$0xff] %v2273
        %2290 = vst [vmem:[#allocation3 + $0x238] sm:$0xff] %v2274
        %2291 = vst [vmem:[#allocation3 + $0x280] sm:$0xff] %v2275
        %2292 = vst [vmem:[#allocation3 + $0x2c8] sm:$0xff] %v2276
        %2293 = vst [vmem:[#allocation3 + $0x310] sm:$0xff] %v2277
        %2294 = vst [vmem:[#allocation3 + $0x358] sm:$0xff] %v2278
        %2295 = vst [vmem:[#allocation3 + $0x3a0] sm:$0xff] %v2279
        %2296 = vst [vmem:[#allocation3 + $0x3e8] sm:$0xff] %v2280
        %2297 = vst [vmem:[#allocation3 + $0x430] sm:$0xff] %v2281
        %2298 = vst [vmem:[#allocation3 + $0x478] sm:$0xff] %v2282
        %v2299 = vld [vmem:[#allocation3] sm:$0xff]
        %v2300 = vld [vmem:[#allocation3 + $0x8] sm:$0xff]
        %v2301 = vld [vmem:[#allocation3 + $0x10] sm:$0xff]
        %v2302 = vld [vmem:[#allocation3 + $0x18] sm:$0xff]
        %v2303 = vld [vmem:[#allocation3 + $0x20] sm:$0xff]
        %v2304 = vld [vmem:[#allocation3 + $0x28] sm:$0xff]
        %v2305 = vld [vmem:[#allocation3 + $0x30] sm:$0xff]
        %v2306 = vld [vmem:[#allocation3 + $0x38] sm:$0xff]
        %v2307 = vld [vmem:[#allocation3 + $0x40] sm:$0xff]
        %v2308 = vld [vmem:[#allocation3 + $0x48] sm:$0xff]
        %v2309 = vld [vmem:[#allocation3 + $0x50] sm:$0xff]
        %v2310 = vld [vmem:[#allocation3 + $0x58] sm:$0xff]
        %v2311 = vld [vmem:[#allocation3 + $0x60] sm:$0xff]
        %v2312 = vld [vmem:[#allocation3 + $0x68] sm:$0xff]
        %v2313 = vld [vmem:[#allocation3 + $0x70] sm:$0xff]
        %v2314 = vld [vmem:[#allocation3 + $0x78] sm:$0xff]
        %v2315 = vld [vmem:[#allocation3 + $0x80] sm:$0xff]
        %v2316 = vld [vmem:[#allocation3 + $0x88] sm:$0xff]
        %v2317 = vld [vmem:[#allocation3 + $0x90] sm:$0xff]
        %v2318 = vld [vmem:[#allocation3 + $0x98] sm:$0xff]
        %v2319 = vld [vmem:[#allocation3 + $0xa0] sm:$0xff]
        %v2320 = vld [vmem:[#allocation3 + $0xa8] sm:$0xff]
        %v2321 = vld [vmem:[#allocation3 + $0xb0] sm:$0xff]
        %v2322 = vld [vmem:[#allocation3 + $0xb8] sm:$0xff]
        %v2323 = vld [vmem:[#allocation3 + $0xc0] sm:$0xff]
        %v2324 = vld [vmem:[#allocation3 + $0xc8] sm:$0xff]
        %v2325 = vld [vmem:[#allocation3 + $0xd0] sm:$0xff]
        %v2326 = vld [vmem:[#allocation3 + $0xd8] sm:$0xff]
        %v2327 = vld [vmem:[#allocation3 + $0xe0] sm:$0xff]
        %v2328 = vld [vmem:[#allocation3 + $0xe8] sm:$0xff]
        %v2329 = vld [vmem:[#allocation3 + $0xf0] sm:$0xff]
        %v2330 = vld [vmem:[#allocation3 + $0xf8] sm:$0xff]
        %v2331 = vld [vmem:[#allocation3 + $0x100] sm:$0xff]
        %v2332 = vld [vmem:[#allocation3 + $0x108] sm:$0xff]
        %v2333 = vld [vmem:[#allocation3 + $0x110] sm:$0xff]
        %v2334 = vld [vmem:[#allocation3 + $0x118] sm:$0xff]
        %v2335 = vld [vmem:[#allocation3 + $0x120] sm:$0xff]
        %v2336 = vld [vmem:[#allocation3 + $0x128] sm:$0xff]
        %v2337 = vld [vmem:[#allocation3 + $0x130] sm:$0xff]
        %v2338 = vld [vmem:[#allocation3 + $0x138] sm:$0xff]
        %v2339 = vld [vmem:[#allocation3 + $0x140] sm:$0xff]
        %v2340 = vld [vmem:[#allocation3 + $0x148] sm:$0xff]
        %v2341 = vld [vmem:[#allocation3 + $0x150] sm:$0xff]
        %v2342 = vld [vmem:[#allocation3 + $0x158] sm:$0xff]
        %v2343 = vld [vmem:[#allocation3 + $0x160] sm:$0xff]
        %v2344 = vld [vmem:[#allocation3 + $0x168] sm:$0xff]
        %v2345 = vld [vmem:[#allocation3 + $0x170] sm:$0xff]
        %v2346 = vld [vmem:[#allocation3 + $0x178] sm:$0xff]
        %v2347 = vld [vmem:[#allocation3 + $0x180] sm:$0xff]
        %v2348 = vld [vmem:[#allocation3 + $0x188] sm:$0xff]
        %v2349 = vld [vmem:[#allocation3 + $0x190] sm:$0xff]
        %v2350 = vld [vmem:[#allocation3 + $0x198] sm:$0xff]
        %v2351 = vld [vmem:[#allocation3 + $0x1a0] sm:$0xff]
        %v2352 = vld [vmem:[#allocation3 + $0x1a8] sm:$0xff]
        %v2353 = vld [vmem:[#allocation3 + $0x1b0] sm:$0xff]
        %v2354 = vld [vmem:[#allocation3 + $0x1b8] sm:$0xff]
        %v2355 = vld [vmem:[#allocation3 + $0x1c0] sm:$0xff]
        %v2356 = vld [vmem:[#allocation3 + $0x1c8] sm:$0xff]
        %v2357 = vld [vmem:[#allocation3 + $0x1d0] sm:$0xff]
        %v2358 = vld [vmem:[#allocation3 + $0x1d8] sm:$0xff]
        %v2359 = vld [vmem:[#allocation3 + $0x1e0] sm:$0xff]
        %v2360 = vld [vmem:[#allocation3 + $0x1e8] sm:$0xff]
        %v2361 = vld [vmem:[#allocation3 + $0x1f0] sm:$0xff]
        %v2362 = vld [vmem:[#allocation3 + $0x1f8] sm:$0xff]
        %v2363 = vld [vmem:[#allocation3 + $0x200] sm:$0xff]
        %v2364 = vld [vmem:[#allocation3 + $0x208] sm:$0xff]
        %v2365 = vld [vmem:[#allocation3 + $0x210] sm:$0xff]
        %v2366 = vld [vmem:[#allocation3 + $0x218] sm:$0xff]
        %v2367 = vld [vmem:[#allocation3 + $0x220] sm:$0xff]
        %v2368 = vld [vmem:[#allocation3 + $0x228] sm:$0xff]
        %v2369 = vld [vmem:[#allocation3 + $0x230] sm:$0xff]
        %v2370 = vld [vmem:[#allocation3 + $0x238] sm:$0xff]
        %v2371 = vld [vmem:[#allocation3 + $0x240] sm:$0xff]
        %v2372 = vld [vmem:[#allocation3 + $0x248] sm:$0xff]
        %v2373 = vld [vmem:[#allocation3 + $0x250] sm:$0xff]
        %v2374 = vld [vmem:[#allocation3 + $0x258] sm:$0xff]
        %v2375 = vld [vmem:[#allocation3 + $0x260] sm:$0xff]
        %v2376 = vld [vmem:[#allocation3 + $0x268] sm:$0xff]
        %v2377 = vld [vmem:[#allocation3 + $0x270] sm:$0xff]
        %v2378 = vld [vmem:[#allocation3 + $0x278] sm:$0xff]
        %v2379 = vld [vmem:[#allocation3 + $0x280] sm:$0xff]
        %v2380 = vld [vmem:[#allocation3 + $0x288] sm:$0xff]
        %v2381 = vld [vmem:[#allocation3 + $0x290] sm:$0xff]
        %v2382 = vld [vmem:[#allocation3 + $0x298] sm:$0xff]
        %v2383 = vld [vmem:[#allocation3 + $0x2a0] sm:$0xff]
        %v2384 = vld [vmem:[#allocation3 + $0x2a8] sm:$0xff]
        %v2385 = vld [vmem:[#allocation3 + $0x2b0] sm:$0xff]
        %v2386 = vld [vmem:[#allocation3 + $0x2b8] sm:$0xff]
        %v2387 = vld [vmem:[#allocation3 + $0x2c0] sm:$0xff]
        %v2388 = vld [vmem:[#allocation3 + $0x2c8] sm:$0xff]
        %v2389 = vld [vmem:[#allocation3 + $0x2d0] sm:$0xff]
        %v2390 = vld [vmem:[#allocation3 + $0x2d8] sm:$0xff]
        %v2391 = vld [vmem:[#allocation3 + $0x2e0] sm:$0xff]
        %v2392 = vld [vmem:[#allocation3 + $0x2e8] sm:$0xff]
        %v2393 = vld [vmem:[#allocation3 + $0x2f0] sm:$0xff]
        %v2394 = vld [vmem:[#allocation3 + $0x2f8] sm:$0xff]
        %v2395 = vld [vmem:[#allocation3 + $0x300] sm:$0xff]
        %v2396 = vld [vmem:[#allocation3 + $0x308] sm:$0xff]
        %v2397 = vld [vmem:[#allocation3 + $0x310] sm:$0xff]
        %v2398 = vld [vmem:[#allocation3 + $0x318] sm:$0xff]
        %v2399 = vld [vmem:[#allocation3 + $0x320] sm:$0xff]
        %v2400 = vld [vmem:[#allocation3 + $0x328] sm:$0xff]
        %v2401 = vld [vmem:[#allocation3 + $0x330] sm:$0xff]
        %v2402 = vld [vmem:[#allocation3 + $0x338] sm:$0xff]
        %v2403 = vld [vmem:[#allocation3 + $0x340] sm:$0xff]
        %v2404 = vld [vmem:[#allocation3 + $0x348] sm:$0xff]
        %v2405 = vld [vmem:[#allocation3 + $0x350] sm:$0xff]
        %v2406 = vld [vmem:[#allocation3 + $0x358] sm:$0xff]
        %v2407 = vld [vmem:[#allocation3 + $0x360] sm:$0xff]
        %v2408 = vld [vmem:[#allocation3 + $0x368] sm:$0xff]
        %v2409 = vld [vmem:[#allocation3 + $0x370] sm:$0xff]
        %v2410 = vld [vmem:[#allocation3 + $0x378] sm:$0xff]
        %v2411 = vld [vmem:[#allocation3 + $0x380] sm:$0xff]
        %v2412 = vld [vmem:[#allocation3 + $0x388] sm:$0xff]
        %v2413 = vld [vmem:[#allocation3 + $0x390] sm:$0xff]
        %v2414 = vld [vmem:[#allocation3 + $0x398] sm:$0xff]
        %v2415 = vld [vmem:[#allocation3 + $0x3a0] sm:$0xff]
        %v2416 = vld [vmem:[#allocation3 + $0x3a8] sm:$0xff]
        %v2417 = vld [vmem:[#allocation3 + $0x3b0] sm:$0xff]
        %v2418 = vld [vmem:[#allocation3 + $0x3b8] sm:$0xff]
        %v2419 = vld [vmem:[#allocation3 + $0x3c0] sm:$0xff]
        %v2420 = vld [vmem:[#allocation3 + $0x3c8] sm:$0xff]
        %v2421 = vld [vmem:[#allocation3 + $0x3d0] sm:$0xff]
        %v2422 = vld [vmem:[#allocation3 + $0x3d8] sm:$0xff]
        %v2423 = vld [vmem:[#allocation3 + $0x3e0] sm:$0xff]
        %v2424 = vld [vmem:[#allocation3 + $0x3e8] sm:$0xff]
        %v2425 = vld [vmem:[#allocation3 + $0x3f0] sm:$0xff]
        %v2426 = vld [vmem:[#allocation3 + $0x3f8] sm:$0xff]
        %v2427 = vld [vmem:[#allocation3 + $0x400] sm:$0xff]
        %v2428 = vld [vmem:[#allocation3 + $0x408] sm:$0xff]
        %v2429 = vld [vmem:[#allocation3 + $0x410] sm:$0xff]
        %v2430 = vld [vmem:[#allocation3 + $0x418] sm:$0xff]
        %v2431 = vld [vmem:[#allocation3 + $0x420] sm:$0xff]
        %v2432 = vld [vmem:[#allocation3 + $0x428] sm:$0xff]
        %v2433 = vld [vmem:[#allocation3 + $0x430] sm:$0xff]
        %v2434 = vld [vmem:[#allocation3 + $0x438] sm:$0xff]
        %v2435 = vld [vmem:[#allocation3 + $0x440] sm:$0xff]
        %v2436 = vld [vmem:[#allocation3 + $0x448] sm:$0xff]
        %v2437 = vld [vmem:[#allocation3 + $0x450] sm:$0xff]
        %v2438 = vld [vmem:[#allocation3 + $0x458] sm:$0xff]
        %v2439 = vld [vmem:[#allocation3 + $0x460] sm:$0xff]
        %v2440 = vld [vmem:[#allocation3 + $0x468] sm:$0xff]
        %v2441 = vld [vmem:[#allocation3 + $0x470] sm:$0xff]
        %v2442 = vld [vmem:[#allocation3 + $0x478] sm:$0xff]
        %v2443 = vld [vmem:[#allocation10] sm:$0xff]
        %v2444 = vld [vmem:[#allocation10 + $0x8] sm:$0xff]
        %v2445 = vld [vmem:[#allocation10 + $0x10] sm:$0xff]
        %v2446 = vld [vmem:[#allocation10 + $0x18] sm:$0xff]
        %v2447 = vld [vmem:[#allocation10 + $0x20] sm:$0xff]
        %v2448 = vld [vmem:[#allocation10 + $0x28] sm:$0xff]
        %v2449 = vld [vmem:[#allocation10 + $0x30] sm:$0xff]
        %v2450 = vld [vmem:[#allocation10 + $0x38] sm:$0xff]
        %v2451 = vld [vmem:[#allocation10 + $0x40] sm:$0xff]
        %v2452 = vld [vmem:[#allocation10 + $0x48] sm:$0xff]
        %v2453 = vld [vmem:[#allocation10 + $0x50] sm:$0xff]
        %v2454 = vld [vmem:[#allocation10 + $0x58] sm:$0xff]
        %v2455 = vld [vmem:[#allocation10 + $0x60] sm:$0xff]
        %v2456 = vld [vmem:[#allocation10 + $0x68] sm:$0xff]
        %v2457 = vld [vmem:[#allocation10 + $0x70] sm:$0xff]
        %v2458 = vld [vmem:[#allocation10 + $0x78] sm:$0xff]
        %v2459 = vld [vmem:[#allocation10 + $0x80] sm:$0xff]
        %v2460 = vld [vmem:[#allocation10 + $0x88] sm:$0xff]
        %v2461 = vld [vmem:[#allocation10 + $0x90] sm:$0xff]
        %v2462 = vld [vmem:[#allocation10 + $0x98] sm:$0xff]
        %v2463 = vld [vmem:[#allocation10 + $0xa0] sm:$0xff]
        %v2464 = vld [vmem:[#allocation10 + $0xa8] sm:$0xff]
        %v2465 = vld [vmem:[#allocation10 + $0xb0] sm:$0xff]
        %v2466 = vld [vmem:[#allocation10 + $0xb8] sm:$0xff]
        %v2467 = vld [vmem:[#allocation10 + $0xc0] sm:$0xff]
        %v2468 = vld [vmem:[#allocation10 + $0xc8] sm:$0xff]
        %v2469 = vld [vmem:[#allocation10 + $0xd0] sm:$0xff]
        %v2470 = vld [vmem:[#allocation10 + $0xd8] sm:$0xff]
        %v2471 = vld [vmem:[#allocation10 + $0xe0] sm:$0xff]
        %v2472 = vld [vmem:[#allocation10 + $0xe8] sm:$0xff]
        %v2473 = vld [vmem:[#allocation10 + $0xf0] sm:$0xff]
        %v2474 = vld [vmem:[#allocation10 + $0xf8] sm:$0xff]
        %v2475 = vld [vmem:[#allocation10 + $0x100] sm:$0xff]
        %v2476 = vld [vmem:[#allocation10 + $0x108] sm:$0xff]
        %v2477 = vld [vmem:[#allocation10 + $0x110] sm:$0xff]
        %v2478 = vld [vmem:[#allocation10 + $0x118] sm:$0xff]
        %v2479 = vld [vmem:[#allocation10 + $0x120] sm:$0xff]
        %v2480 = vld [vmem:[#allocation10 + $0x128] sm:$0xff]
        %v2481 = vld [vmem:[#allocation10 + $0x130] sm:$0xff]
        %v2482 = vld [vmem:[#allocation10 + $0x138] sm:$0xff]
        %v2483 = vld [vmem:[#allocation10 + $0x140] sm:$0xff]
        %v2484 = vld [vmem:[#allocation10 + $0x148] sm:$0xff]
        %v2485 = vld [vmem:[#allocation10 + $0x150] sm:$0xff]
        %v2486 = vld [vmem:[#allocation10 + $0x158] sm:$0xff]
        %v2487 = vld [vmem:[#allocation10 + $0x160] sm:$0xff]
        %v2488 = vld [vmem:[#allocation10 + $0x168] sm:$0xff]
        %v2489 = vld [vmem:[#allocation10 + $0x170] sm:$0xff]
        %v2490 = vld [vmem:[#allocation10 + $0x178] sm:$0xff]
        %v2491 = vld [vmem:[#allocation10 + $0x180] sm:$0xff]
        %v2492 = vld [vmem:[#allocation10 + $0x188] sm:$0xff]
        %v2493 = vld [vmem:[#allocation10 + $0x190] sm:$0xff]
        %v2494 = vld [vmem:[#allocation10 + $0x198] sm:$0xff]
        %v2495 = vld [vmem:[#allocation10 + $0x1a0] sm:$0xff]
        %v2496 = vld [vmem:[#allocation10 + $0x1a8] sm:$0xff]
        %v2497 = vld [vmem:[#allocation10 + $0x1b0] sm:$0xff]
        %v2498 = vld [vmem:[#allocation10 + $0x1b8] sm:$0xff]
        %v2499 = vld [vmem:[#allocation10 + $0x1c0] sm:$0xff]
        %v2500 = vld [vmem:[#allocation10 + $0x1c8] sm:$0xff]
        %v2501 = vld [vmem:[#allocation10 + $0x1d0] sm:$0xff]
        %v2502 = vld [vmem:[#allocation10 + $0x1d8] sm:$0xff]
        %v2503 = vld [vmem:[#allocation10 + $0x1e0] sm:$0xff]
        %v2504 = vld [vmem:[#allocation10 + $0x1e8] sm:$0xff]
        %v2505 = vld [vmem:[#allocation10 + $0x1f0] sm:$0xff]
        %v2506 = vld [vmem:[#allocation10 + $0x1f8] sm:$0xff]
        %v2507 = vld [vmem:[#allocation10 + $0x200] sm:$0xff]
        %v2508 = vld [vmem:[#allocation10 + $0x208] sm:$0xff]
        %v2509 = vld [vmem:[#allocation10 + $0x210] sm:$0xff]
        %v2510 = vld [vmem:[#allocation10 + $0x218] sm:$0xff]
        %v2511 = vld [vmem:[#allocation10 + $0x220] sm:$0xff]
        %v2512 = vld [vmem:[#allocation10 + $0x228] sm:$0xff]
        %v2513 = vld [vmem:[#allocation10 + $0x230] sm:$0xff]
        %v2514 = vld [vmem:[#allocation10 + $0x238] sm:$0xff]
        %v2515 = vld [vmem:[#allocation10 + $0x240] sm:$0xff]
        %v2516 = vld [vmem:[#allocation10 + $0x248] sm:$0xff]
        %v2517 = vld [vmem:[#allocation10 + $0x250] sm:$0xff]
        %v2518 = vld [vmem:[#allocation10 + $0x258] sm:$0xff]
        %v2519 = vld [vmem:[#allocation10 + $0x260] sm:$0xff]
        %v2520 = vld [vmem:[#allocation10 + $0x268] sm:$0xff]
        %v2521 = vld [vmem:[#allocation10 + $0x270] sm:$0xff]
        %v2522 = vld [vmem:[#allocation10 + $0x278] sm:$0xff]
        %v2523 = vld [vmem:[#allocation10 + $0x280] sm:$0xff]
        %v2524 = vld [vmem:[#allocation10 + $0x288] sm:$0xff]
        %v2525 = vld [vmem:[#allocation10 + $0x290] sm:$0xff]
        %v2526 = vld [vmem:[#allocation10 + $0x298] sm:$0xff]
        %v2527 = vld [vmem:[#allocation10 + $0x2a0] sm:$0xff]
        %v2528 = vld [vmem:[#allocation10 + $0x2a8] sm:$0xff]
        %v2529 = vld [vmem:[#allocation10 + $0x2b0] sm:$0xff]
        %v2530 = vld [vmem:[#allocation10 + $0x2b8] sm:$0xff]
        %v2531 = vld [vmem:[#allocation10 + $0x2c0] sm:$0xff]
        %v2532 = vld [vmem:[#allocation10 + $0x2c8] sm:$0xff]
        %v2533 = vld [vmem:[#allocation10 + $0x2d0] sm:$0xff]
        %v2534 = vld [vmem:[#allocation10 + $0x2d8] sm:$0xff]
        %v2535 = vld [vmem:[#allocation10 + $0x2e0] sm:$0xff]
        %v2536 = vld [vmem:[#allocation10 + $0x2e8] sm:$0xff]
        %v2537 = vld [vmem:[#allocation10 + $0x2f0] sm:$0xff]
        %v2538 = vld [vmem:[#allocation10 + $0x2f8] sm:$0xff]
        %v2539 = vld [vmem:[#allocation10 + $0x300] sm:$0xff]
        %v2540 = vld [vmem:[#allocation10 + $0x308] sm:$0xff]
        %v2541 = vld [vmem:[#allocation10 + $0x310] sm:$0xff]
        %v2542 = vld [vmem:[#allocation10 + $0x318] sm:$0xff]
        %v2543 = vld [vmem:[#allocation10 + $0x320] sm:$0xff]
        %v2544 = vld [vmem:[#allocation10 + $0x328] sm:$0xff]
        %v2545 = vld [vmem:[#allocation10 + $0x330] sm:$0xff]
        %v2546 = vld [vmem:[#allocation10 + $0x338] sm:$0xff]
        %v2547 = vld [vmem:[#allocation10 + $0x340] sm:$0xff]
        %v2548 = vld [vmem:[#allocation10 + $0x348] sm:$0xff]
        %v2549 = vld [vmem:[#allocation10 + $0x350] sm:$0xff]
        %v2550 = vld [vmem:[#allocation10 + $0x358] sm:$0xff]
        %v2551 = vld [vmem:[#allocation10 + $0x360] sm:$0xff]
        %v2552 = vld [vmem:[#allocation10 + $0x368] sm:$0xff]
        %v2553 = vld [vmem:[#allocation10 + $0x370] sm:$0xff]
        %v2554 = vld [vmem:[#allocation10 + $0x378] sm:$0xff]
        %v2555 = vld [vmem:[#allocation10 + $0x380] sm:$0xff]
        %v2556 = vld [vmem:[#allocation10 + $0x388] sm:$0xff]
        %v2557 = vld [vmem:[#allocation10 + $0x390] sm:$0xff]
        %v2558 = vld [vmem:[#allocation10 + $0x398] sm:$0xff]
        %v2559 = vld [vmem:[#allocation10 + $0x3a0] sm:$0xff]
        %v2560 = vld [vmem:[#allocation10 + $0x3a8] sm:$0xff]
        %v2561 = vld [vmem:[#allocation10 + $0x3b0] sm:$0xff]
        %v2562 = vld [vmem:[#allocation10 + $0x3b8] sm:$0xff]
        %v2563 = vld [vmem:[#allocation10 + $0x3c0] sm:$0xff]
        %v2564 = vld [vmem:[#allocation10 + $0x3c8] sm:$0xff]
        %v2565 = vld [vmem:[#allocation10 + $0x3d0] sm:$0xff]
        %v2566 = vld [vmem:[#allocation10 + $0x3d8] sm:$0xff]
        %v2567 = vld [vmem:[#allocation10 + $0x3e0] sm:$0xff]
        %v2568 = vld [vmem:[#allocation10 + $0x3e8] sm:$0xff]
        %v2569 = vld [vmem:[#allocation10 + $0x3f0] sm:$0xff]
        %v2570 = vld [vmem:[#allocation10 + $0x3f8] sm:$0xff]
        %v2571 = vld [vmem:[#allocation10 + $0x400] sm:$0xff]
        %v2572 = vld [vmem:[#allocation10 + $0x408] sm:$0xff]
        %v2573 = vld [vmem:[#allocation10 + $0x410] sm:$0xff]
        %v2574 = vld [vmem:[#allocation10 + $0x418] sm:$0xff]
        %v2575 = vld [vmem:[#allocation10 + $0x420] sm:$0xff]
        %v2576 = vld [vmem:[#allocation10 + $0x428] sm:$0xff]
        %v2577 = vld [vmem:[#allocation10 + $0x430] sm:$0xff]
        %v2578 = vld [vmem:[#allocation10 + $0x438] sm:$0xff]
        %v2579 = vld [vmem:[#allocation10 + $0x440] sm:$0xff]
        %v2580 = vld [vmem:[#allocation10 + $0x448] sm:$0xff]
        %v2581 = vld [vmem:[#allocation10 + $0x450] sm:$0xff]
        %v2582 = vld [vmem:[#allocation10 + $0x458] sm:$0xff]
        %v2583 = vld [vmem:[#allocation10 + $0x460] sm:$0xff]
        %v2584 = vld [vmem:[#allocation10 + $0x468] sm:$0xff]
        %v2585 = vld [vmem:[#allocation10 + $0x470] sm:$0xff]
        %v2586 = vld [vmem:[#allocation10 + $0x478] sm:$0xff]
        %v2587 = vld [vmem:[%s5] sm:$0x1]
        %v2589 = vlaneseq
        %v2590 = vshrl.u32 %v2589, 7
        %v2591 = vsub.s32 0, %v2590
        %v2592 = vrot.slane %v2587, %v2591
        %2594 = vmatprep.subr.mxu0 0.0
        %2595 = vmatpush1.msra.mxu0 %v2443
        %2596 = vmatprep.subr.mxu0 0.0
        %2597 = vmatpush1.msra.mxu0 %v2444
        %2598 = vmatprep.subr.mxu0 0.0
        %2599 = vmatpush1.msra.mxu0 %v2445
        %2600 = vmatprep.subr.mxu0 0.0
        %2601 = vmatpush1.msra.mxu0 %v2446
        %2602 = vmatprep.subr.mxu0 0.0
        %2603 = vmatpush1.msra.mxu0 %v2447
        %2604 = vmatprep.subr.mxu0 0.0
        %2605 = vmatpush1.msra.mxu0 %v2448
        %2606 = vmatprep.subr.mxu0 0.0
        %2607 = vmatpush1.msra.mxu0 %v2449
        %2608 = vmatprep.subr.mxu0 0.0
        %2609 = vmatpush1.msra.mxu0 %v2450
        %2610 = vmatprep.subr.mxu0 0.0
        %2611 = vmatpush1.msra.mxu0 %v2451
        %2612 = vmatprep.subr.mxu0 0.0
        %2613 = vmatpush1.msra.mxu0 %v2452
        %2614 = vmatprep.subr.mxu0 0.0
        %2615 = vmatpush1.msra.mxu0 %v2453
        %2616 = vmatprep.subr.mxu0 0.0
        %2617 = vmatpush1.msra.mxu0 %v2454
        %2618 = vmatprep.subr.mxu0 0.0
        %2619 = vmatpush1.msra.mxu0 %v2455
        %2620 = vmatprep.subr.mxu0 0.0
        %2621 = vmatpush1.msra.mxu0 %v2456
        %2622 = vmatprep.subr.mxu0 0.0
        %2623 = vmatpush1.msra.mxu0 %v2457
        %2624 = vmatprep.subr.mxu0 0.0
        %2625 = vmatpush1.msra.mxu0 %v2458
        %2626 = vmatprep.subr.mxu0 0.0
        %2627 = vmatpush1.msra.mxu0 %v2459
        %2628 = vmatprep.subr.mxu0 0.0
        %2629 = vmatpush1.msra.mxu0 %v2460
        %2630 = vmatprep.subr.mxu0 0.0
        %2631 = vmatpush1.msra.mxu0 %v2461
        %2632 = vmatprep.subr.mxu0 0.0
        %2633 = vmatpush1.msra.mxu0 %v2462
        %2634 = vmatprep.subr.mxu0 0.0
        %2635 = vmatpush1.msra.mxu0 %v2463
        %2636 = vmatprep.subr.mxu0 0.0
        %2637 = vmatpush1.msra.mxu0 %v2464
        %2638 = vmatprep.subr.mxu0 0.0
        %2639 = vmatpush1.msra.mxu0 %v2465
        %2640 = vmatprep.subr.mxu0 0.0
        %2641 = vmatpush1.msra.mxu0 %v2466
        %2642 = vmatprep.subr.mxu0 0.0
        %2643 = vmatpush1.msra.mxu0 %v2467
        %2644 = vmatprep.subr.mxu0 0.0
        %2645 = vmatpush1.msra.mxu0 %v2468
        %2646 = vmatprep.subr.mxu0 0.0
        %2647 = vmatpush1.msra.mxu0 %v2469
        %2648 = vmatprep.subr.mxu0 0.0
        %2649 = vmatpush1.msra.mxu0 %v2470
        %2650 = vmatprep.subr.mxu0 0.0
        %2651 = vmatpush1.msra.mxu0 %v2471
        %2652 = vmatprep.subr.mxu0 0.0
        %2653 = vmatpush1.msra.mxu0 %v2472
        %2654 = vmatprep.subr.mxu0 0.0
        %2655 = vmatpush1.msra.mxu0 %v2473
        %2656 = vmatprep.subr.mxu0 0.0
        %2657 = vmatpush1.msra.mxu0 %v2474
        %2658 = vmatprep.mubr.f32.mxu0 %v2300
        %2659 = vmatmul.mubr.f32.gmra.mrb[0].mxu0 %v2299
        %v2660 = vpop.f32.mrb[0].mxu0
        %v2661 = vadd.f32 %v2592, %v2660
        %v2662 = vpop.f32.mrb[0].mxu0
        %2663 = vmatprep.mubr.f32.mxu0 %v2309
        %2664 = vmatmul.mubr.f32.gmra.mrb[0].mxu0 %v2308
        %v2665 = vpop.f32.mrb[0].mxu0
        %v2666 = vadd.f32 %v2592, %v2665
        %v2667 = vpop.f32.mrb[0].mxu0
        %2668 = vmatprep.mubr.f32.mxu0 %v2318
        %2669 = vmatmul.mubr.f32.gmra.mrb[0].mxu0 %v2317
        %v2670 = vpop.f32.mrb[0].mxu0
        %v2671 = vadd.f32 %v2592, %v2670
        %v2672 = vpop.f32.mrb[0].mxu0
        %2673 = vmatprep.mubr.f32.mxu0 %v2327
        %2674 = vmatmul.mubr.f32.gmra.mrb[0].mxu0 %v2326
        %v2675 = vpop.f32.mrb[0].mxu0
        %v2676 = vadd.f32 %v2592, %v2675
        %v2677 = vpop.f32.mrb[0].mxu0
        %2678 = vmatprep.mubr.f32.mxu0 %v2336
        %2679 = vmatmul.mubr.f32.gmra.mrb[0].mxu0 %v2335
        %v2680 = vpop.f32.mrb[0].mxu0
        %v2681 = vadd.f32 %v2592, %v2680
        %v2682 = vpop.f32.mrb[0].mxu0
        %2683 = vmatprep.mubr.f32.mxu0 %v2345
        %2684 = vmatmul.mubr.f32.gmra.mrb[0].mxu0 %v2344
        %v2685 = vpop.f32.mrb[0].mxu0
        %v2686 = vadd.f32 %v2592, %v2685
        %v2687 = vpop.f32.mrb[0].mxu0
        %2688 = vmatprep.mubr.f32.mxu0 %v2354
        %2689 = vmatmul.mubr.f32.gmra.mrb[0].mxu0 %v2353
        %v2690 = vpop.f32.mrb[0].mxu0
        %v2691 = vadd.f32 %v2592, %v2690
        %v2692 = vpop.f32.mrb[0].mxu0
        %2693 = vmatprep.mubr.f32.mxu0 %v2363
        %2694 = vmatmul.mubr.f32.gmra.mrb[0].mxu0 %v2362
        %v2695 = vpop.f32.mrb[0].mxu0
        %v2696 = vadd.f32 %v2592, %v2695
        %v2697 = vpop.f32.mrb[0].mxu0
        %2698 = vmatprep.mubr.f32.mxu0 %v2372
        %2699 = vmatmul.mubr.f32.gmra.mrb[0].mxu0 %v2371
        %v2700 = vpop.f32.mrb[0].mxu0
        %v2701 = vadd.f32 %v2592, %v2700
        %v2702 = vpop.f32.mrb[0].mxu0
        %2703 = vmatprep.mubr.f32.mxu0 %v2381
        %2704 = vmatmul.mubr.f32.gmra.mrb[0].mxu0 %v2380
        %v2705 = vpop.f32.mrb[0].mxu0
        %v2706 = vadd.f32 %v2592, %v2705
        %v2707 = vpop.f32.mrb[0].mxu0
        %2708 = vmatprep.mubr.f32.mxu0 %v2390
        %2709 = vmatmul.mubr.f32.gmra.mrb[0].mxu0 %v2389
        %v2710 = vpop.f32.mrb[0].mxu0
        %v2711 = vadd.f32 %v2592, %v2710
        %v2712 = vpop.f32.mrb[0].mxu0
        %2713 = vmatprep.mubr.f32.mxu0 %v2399
        %2714 = vmatmul.mubr.f32.gmra.mrb[0].mxu0 %v2398
        %v2715 = vpop.f32.mrb[0].mxu0
        %v2716 = vadd.f32 %v2592, %v2715
        %v2717 = vpop.f32.mrb[0].mxu0
        %2718 = vmatprep.mubr.f32.mxu0 %v2408
        %2719 = vmatmul.mubr.f32.gmra.mrb[0].mxu0 %v2407
        %v2720 = vpop.f32.mrb[0].mxu0
        %v2721 = vadd.f32 %v2592, %v2720
        %v2722 = vpop.f32.mrb[0].mxu0
        %2723 = vmatprep.mubr.f32.mxu0 %v2417
        %2724 = vmatmul.mubr.f32.gmra.mrb[0].mxu0 %v2416
        %v2725 = vpop.f32.mrb[0].mxu0
        %v2726 = vadd.f32 %v2592, %v2725
        %v2727 = vpop.f32.mrb[0].mxu0
        %2728 = vmatprep.mubr.f32.mxu0 %v2426
        %2729 = vmatmul.mubr.f32.gmra.mrb[0].mxu0 %v2425
        %v2730 = vpop.f32.mrb[0].mxu0
        %v2731 = vadd.f32 %v2592, %v2730
        %v2732 = vpop.f32.mrb[0].mxu0
        %2733 = vmatprep.mubr.f32.mxu0 %v2435
        %2734 = vmatmul.mubr.f32.gmra.mrb[0].mxu0 %v2434
        %v2735 = vpop.f32.mrb[0].mxu0
        %v2736 = vadd.f32 %v2592, %v2735
        %v2737 = vpop.f32.mrb[0].mxu0
        %2738 = vdwg.mxu0
        %2739 = vmatprep.subr.mxu0 0.0
        %2740 = vmatpush1.msra.mxu0 %v2475
        %2741 = vmatprep.subr.mxu0 0.0
        %2742 = vmatpush1.msra.mxu0 %v2476
        %2743 = vmatprep.subr.mxu0 0.0
        %2744 = vmatpush1.msra.mxu0 %v2477
        %2745 = vmatprep.subr.mxu0 0.0
        %2746 = vmatpush1.msra.mxu0 %v2478
        %2747 = vmatprep.subr.mxu0 0.0
        %2748 = vmatpush1.msra.mxu0 %v2479
        %2749 = vmatprep.subr.mxu0 0.0
        %2750 = vmatpush1.msra.mxu0 %v2480
        %2751 = vmatprep.subr.mxu0 0.0
        %2752 = vmatpush1.msra.mxu0 %v2481
        %2753 = vmatprep.subr.mxu0 0.0
        %2754 = vmatpush1.msra.mxu0 %v2482
        %2755 = vmatprep.subr.mxu0 0.0
        %2756 = vmatpush1.msra.mxu0 %v2483
        %2757 = vmatprep.subr.mxu0 0.0
        %2758 = vmatpush1.msra.mxu0 %v2484
        %2759 = vmatprep.subr.mxu0 0.0
        %2760 = vmatpush1.msra.mxu0 %v2485
        %2761 = vmatprep.subr.mxu0 0.0
        %2762 = vmatpush1.msra.mxu0 %v2486
        %2763 = vmatprep.subr.mxu0 0.0
        %2764 = vmatpush1.msra.mxu0 %v2487
        %2765 = vmatprep.subr.mxu0 0.0
        %2766 = vmatpush1.msra.mxu0 %v2488
        %2767 = vmatprep.subr.mxu0 0.0
        %2768 = vmatpush1.msra.mxu0 %v2489
        %2769 = vmatprep.subr.mxu0 0.0
        %2770 = vmatpush1.msra.mxu0 %v2490
        %2771 = vmatprep.subr.mxu0 0.0
        %2772 = vmatpush1.msra.mxu0 %v2491
        %2773 = vmatprep.subr.mxu0 0.0
        %2774 = vmatpush1.msra.mxu0 %v2492
        %2775 = vmatprep.subr.mxu0 0.0
        %2776 = vmatpush1.msra.mxu0 %v2493
        %2777 = vmatprep.subr.mxu0 0.0
        %2778 = vmatpush1.msra.mxu0 %v2494
        %2779 = vmatprep.subr.mxu0 0.0
        %2780 = vmatpush1.msra.mxu0 %v2495
        %2781 = vmatprep.subr.mxu0 0.0
        %2782 = vmatpush1.msra.mxu0 %v2496
        %2783 = vmatprep.subr.mxu0 0.0
        %2784 = vmatpush1.msra.mxu0 %v2497
        %2785 = vmatprep.subr.mxu0 0.0
        %2786 = vmatpush1.msra.mxu0 %v2498
        %2787 = vmatprep.subr.mxu0 0.0
        %2788 = vmatpush1.msra.mxu0 %v2499
        %2789 = vmatprep.subr.mxu0 0.0
        %2790 = vmatpush1.msra.mxu0 %v2500
        %2791 = vmatprep.subr.mxu0 0.0
        %2792 = vmatpush1.msra.mxu0 %v2501
        %2793 = vmatprep.subr.mxu0 0.0
        %2794 = vmatpush1.msra.mxu0 %v2502
        %2795 = vmatprep.subr.mxu0 0.0
        %2796 = vmatpush1.msra.mxu0 %v2503
        %2797 = vmatprep.subr.mxu0 0.0
        %2798 = vmatpush1.msra.mxu0 %v2504
        %2799 = vmatprep.subr.mxu0 0.0
        %2800 = vmatpush1.msra.mxu0 %v2505
        %2801 = vmatprep.subr.mxu0 0.0
        %2802 = vmatpush1.msra.mxu0 %v2506
        %2803 = vmatprep.mubr.f32.mxu0 %v2302
        %2804 = vmatmul.mubr.f32.gmra.mrb[0].mxu0 %v2301
        %v2805 = vpop.f32.mrb[0].mxu0
        %v2806 = vadd.f32 %v2661, %v2805
        %v2807 = vpop.f32.mrb[0].mxu0
        %2808 = vmatprep.mubr.f32.mxu0 %v2311
        %2809 = vmatmul.mubr.f32.gmra.mrb[0].mxu0 %v2310
        %v2810 = vpop.f32.mrb[0].mxu0
        %v2811 = vadd.f32 %v2666, %v2810
        %v2812 = vpop.f32.mrb[0].mxu0
        %2813 = vmatprep.mubr.f32.mxu0 %v2320
        %2814 = vmatmul.mubr.f32.gmra.mrb[0].mxu0 %v2319
        %v2815 = vpop.f32.mrb[0].mxu0
        %v2816 = vadd.f32 %v2671, %v2815
        %v2817 = vpop.f32.mrb[0].mxu0
        %2818 = vmatprep.mubr.f32.mxu0 %v2329
        %2819 = vmatmul.mubr.f32.gmra.mrb[0].mxu0 %v2328
        %v2820 = vpop.f32.mrb[0].mxu0
        %v2821 = vadd.f32 %v2676, %v2820
        %v2822 = vpop.f32.mrb[0].mxu0
        %2823 = vmatprep.mubr.f32.mxu0 %v2338
        %2824 = vmatmul.mubr.f32.gmra.mrb[0].mxu0 %v2337
        %v2825 = vpop.f32.mrb[0].mxu0
        %v2826 = vadd.f32 %v2681, %v2825
        %v2827 = vpop.f32.mrb[0].mxu0
        %2828 = vmatprep.mubr.f32.mxu0 %v2347
        %2829 = vmatmul.mubr.f32.gmra.mrb[0].mxu0 %v2346
        %v2830 = vpop.f32.mrb[0].mxu0
        %v2831 = vadd.f32 %v2686, %v2830
        %v2832 = vpop.f32.mrb[0].mxu0
        %2833 = vmatprep.mubr.f32.mxu0 %v2356
        %2834 = vmatmul.mubr.f32.gmra.mrb[0].mxu0 %v2355
        %v2835 = vpop.f32.mrb[0].mxu0
        %v2836 = vadd.f32 %v2691, %v2835
        %v2837 = vpop.f32.mrb[0].mxu0
        %2838 = vmatprep.mubr.f32.mxu0 %v2365
        %2839 = vmatmul.mubr.f32.gmra.mrb[0].mxu0 %v2364
        %v2840 = vpop.f32.mrb[0].mxu0
        %v2841 = vadd.f32 %v2696, %v2840
        %v2842 = vpop.f32.mrb[0].mxu0
        %2843 = vmatprep.mubr.f32.mxu0 %v2374
        %2844 = vmatmul.mubr.f32.gmra.mrb[0].mxu0 %v2373
        %v2845 = vpop.f32.mrb[0].mxu0
        %v2846 = vadd.f32 %v2701, %v2845
        %v2847 = vpop.f32.mrb[0].mxu0
        %2848 = vmatprep.mubr.f32.mxu0 %v2383
        %2849 = vmatmul.mubr.f32.gmra.mrb[0].mxu0 %v2382
        %v2850 = vpop.f32.mrb[0].mxu0
        %v2851 = vadd.f32 %v2706, %v2850
        %v2852 = vpop.f32.mrb[0].mxu0
        %2853 = vmatprep.mubr.f32.mxu0 %v2392
        %2854 = vmatmul.mubr.f32.gmra.mrb[0].mxu0 %v2391
        %v2855 = vpop.f32.mrb[0].mxu0
        %v2856 = vadd.f32 %v2711, %v2855
        %v2857 = vpop.f32.mrb[0].mxu0
        %2858 = vmatprep.mubr.f32.mxu0 %v2401
        %2859 = vmatmul.mubr.f32.gmra.mrb[0].mxu0 %v2400
        %v2860 = vpop.f32.mrb[0].mxu0
        %v2861 = vadd.f32 %v2716, %v2860
        %v2862 = vpop.f32.mrb[0].mxu0
        %2863 = vmatprep.mubr.f32.mxu0 %v2410
        %2864 = vmatmul.mubr.f32.gmra.mrb[0].mxu0 %v2409
        %v2865 = vpop.f32.mrb[0].mxu0
        %v2866 = vadd.f32 %v2721, %v2865
        %v2867 = vpop.f32.mrb[0].mxu0
        %2868 = vmatprep.mubr.f32.mxu0 %v2419
        %2869 = vmatmul.mubr.f32.gmra.mrb[0].mxu0 %v2418
        %v2870 = vpop.f32.mrb[0].mxu0
        %v2871 = vadd.f32 %v2726, %v2870
        %v2872 = vpop.f32.mrb[0].mxu0
        %2873 = vmatprep.mubr.f32.mxu0 %v2428
        %2874 = vmatmul.mubr.f32.gmra.mrb[0].mxu0 %v2427
        %v2875 = vpop.f32.mrb[0].mxu0
        %v2876 = vadd.f32 %v2731, %v2875
        %v2877 = vpop.f32.mrb[0].mxu0
        %2878 = vmatprep.mubr.f32.mxu0 %v2437
        %2879 = vmatmul.mubr.f32.gmra.mrb[0].mxu0 %v2436
        %v2880 = vpop.f32.mrb[0].mxu0
        %v2881 = vadd.f32 %v2736, %v2880
        %v2882 = vpop.f32.mrb[0].mxu0
        %2883 = vdwg.mxu0
        %2884 = vmatprep.subr.mxu0 0.0
        %2885 = vmatpush1.msra.mxu0 %v2507
        %2886 = vmatprep.subr.mxu0 0.0
        %2887 = vmatpush1.msra.mxu0 %v2508
        %2888 = vmatprep.subr.mxu0 0.0
        %2889 = vmatpush1.msra.mxu0 %v2509
        %2890 = vmatprep.subr.mxu0 0.0
        %2891 = vmatpush1.msra.mxu0 %v2510
        %2892 = vmatprep.subr.mxu0 0.0
        %2893 = vmatpush1.msra.mxu0 %v2511
        %2894 = vmatprep.subr.mxu0 0.0
        %2895 = vmatpush1.msra.mxu0 %v2512
        %2896 = vmatprep.subr.mxu0 0.0
        %2897 = vmatpush1.msra.mxu0 %v2513
        %2898 = vmatprep.subr.mxu0 0.0
        %2899 = vmatpush1.msra.mxu0 %v2514
        %2900 = vmatprep.subr.mxu0 0.0
        %2901 = vmatpush1.msra.mxu0 %v2515
        %2902 = vmatprep.subr.mxu0 0.0
        %2903 = vmatpush1.msra.mxu0 %v2516
        %2904 = vmatprep.subr.mxu0 0.0
        %2905 = vmatpush1.msra.mxu0 %v2517
        %2906 = vmatprep.subr.mxu0 0.0
        %2907 = vmatpush1.msra.mxu0 %v2518
        %2908 = vmatprep.subr.mxu0 0.0
        %2909 = vmatpush1.msra.mxu0 %v2519
        %2910 = vmatprep.subr.mxu0 0.0
        %2911 = vmatpush1.msra.mxu0 %v2520
        %2912 = vmatprep.subr.mxu0 0.0
        %2913 = vmatpush1.msra.mxu0 %v2521
        %2914 = vmatprep.subr.mxu0 0.0
        %2915 = vmatpush1.msra.mxu0 %v2522
        %2916 = vmatprep.subr.mxu0 0.0
        %2917 = vmatpush1.msra.mxu0 %v2523
        %2918 = vmatprep.subr.mxu0 0.0
        %2919 = vmatpush1.msra.mxu0 %v2524
        %2920 = vmatprep.subr.mxu0 0.0
        %2921 = vmatpush1.msra.mxu0 %v2525
        %2922 = vmatprep.subr.mxu0 0.0
        %2923 = vmatpush1.msra.mxu0 %v2526
        %2924 = vmatprep.subr.mxu0 0.0
        %2925 = vmatpush1.msra.mxu0 %v2527
        %2926 = vmatprep.subr.mxu0 0.0
        %2927 = vmatpush1.msra.mxu0 %v2528
        %2928 = vmatprep.subr.mxu0 0.0
        %2929 = vmatpush1.msra.mxu0 %v2529
        %2930 = vmatprep.subr.mxu0 0.0
        %2931 = vmatpush1.msra.mxu0 %v2530
        %2932 = vmatprep.subr.mxu0 0.0
        %2933 = vmatpush1.msra.mxu0 %v2531
        %2934 = vmatprep.subr.mxu0 0.0
        %2935 = vmatpush1.msra.mxu0 %v2532
        %2936 = vmatprep.subr.mxu0 0.0
        %2937 = vmatpush1.msra.mxu0 %v2533
        %2938 = vmatprep.subr.mxu0 0.0
        %2939 = vmatpush1.msra.mxu0 %v2534
        %2940 = vmatprep.subr.mxu0 0.0
        %2941 = vmatpush1.msra.mxu0 %v2535
        %2942 = vmatprep.subr.mxu0 0.0
        %2943 = vmatpush1.msra.mxu0 %v2536
        %2944 = vmatprep.subr.mxu0 0.0
        %2945 = vmatpush1.msra.mxu0 %v2537
        %2946 = vmatprep.subr.mxu0 0.0
        %2947 = vmatpush1.msra.mxu0 %v2538
        %2948 = vmatprep.mubr.f32.mxu0 %v2304
        %2949 = vmatmul.mubr.f32.gmra.mrb[0].mxu0 %v2303
        %v2950 = vpop.f32.mrb[0].mxu0
        %v2951 = vadd.f32 %v2806, %v2950
        %v2952 = vpop.f32.mrb[0].mxu0
        %2953 = vmatprep.mubr.f32.mxu0 %v2313
        %2954 = vmatmul.mubr.f32.gmra.mrb[0].mxu0 %v2312
        %v2955 = vpop.f32.mrb[0].mxu0
        %v2956 = vadd.f32 %v2811, %v2955
        %v2957 = vpop.f32.mrb[0].mxu0
        %2958 = vmatprep.mubr.f32.mxu0 %v2322
        %2959 = vmatmul.mubr.f32.gmra.mrb[0].mxu0 %v2321
        %v2960 = vpop.f32.mrb[0].mxu0
        %v2961 = vadd.f32 %v2816, %v2960
        %v2962 = vpop.f32.mrb[0].mxu0
        %2963 = vmatprep.mubr.f32.mxu0 %v2331
        %2964 = vmatmul.mubr.f32.gmra.mrb[0].mxu0 %v2330
        %v2965 = vpop.f32.mrb[0].mxu0
        %v2966 = vadd.f32 %v2821, %v2965
        %v2967 = vpop.f32.mrb[0].mxu0
        %2968 = vmatprep.mubr.f32.mxu0 %v2340
        %2969 = vmatmul.mubr.f32.gmra.mrb[0].mxu0 %v2339
        %v2970 = vpop.f32.mrb[0].mxu0
        %v2971 = vadd.f32 %v2826, %v2970
        %v2972 = vpop.f32.mrb[0].mxu0
        %2973 = vmatprep.mubr.f32.mxu0 %v2349
        %2974 = vmatmul.mubr.f32.gmra.mrb[0].mxu0 %v2348
        %v2975 = vpop.f32.mrb[0].mxu0
        %v2976 = vadd.f32 %v2831, %v2975
        %v2977 = vpop.f32.mrb[0].mxu0
        %2978 = vmatprep.mubr.f32.mxu0 %v2358
        %2979 = vmatmul.mubr.f32.gmra.mrb[0].mxu0 %v2357
        %v2980 = vpop.f32.mrb[0].mxu0
        %v2981 = vadd.f32 %v2836, %v2980
        %v2982 = vpop.f32.mrb[0].mxu0
        %2983 = vmatprep.mubr.f32.mxu0 %v2367
        %2984 = vmatmul.mubr.f32.gmra.mrb[0].mxu0 %v2366
        %v2985 = vpop.f32.mrb[0].mxu0
        %v2986 = vadd.f32 %v2841, %v2985
        %v2987 = vpop.f32.mrb[0].mxu0
        %2988 = vmatprep.mubr.f32.mxu0 %v2376
        %2989 = vmatmul.mubr.f32.gmra.mrb[0].mxu0 %v2375
        %v2990 = vpop.f32.mrb[0].mxu0
        %v2991 = vadd.f32 %v2846, %v2990
        %v2992 = vpop.f32.mrb[0].mxu0
        %2993 = vmatprep.mubr.f32.mxu0 %v2385
        %2994 = vmatmul.mubr.f32.gmra.mrb[0].mxu0 %v2384
        %v2995 = vpop.f32.mrb[0].mxu0
        %v2996 = vadd.f32 %v2851, %v2995
        %v2997 = vpop.f32.mrb[0].mxu0
        %2998 = vmatprep.mubr.f32.mxu0 %v2394
        %2999 = vmatmul.mubr.f32.gmra.mrb[0].mxu0 %v2393
        %v3000 = vpop.f32.mrb[0].mxu0
        %v3001 = vadd.f32 %v2856, %v3000
        %v3002 = vpop.f32.mrb[0].mxu0
        %3003 = vmatprep.mubr.f32.mxu0 %v2403
        %3004 = vmatmul.mubr.f32.gmra.mrb[0].mxu0 %v2402
        %v3005 = vpop.f32.mrb[0].mxu0
        %v3006 = vadd.f32 %v2861, %v3005
        %v3007 = vpop.f32.mrb[0].mxu0
        %3008 = vmatprep.mubr.f32.mxu0 %v2412
        %3009 = vmatmul.mubr.f32.gmra.mrb[0].mxu0 %v2411
        %v3010 = vpop.f32.mrb[0].mxu0
        %v3011 = vadd.f32 %v2866, %v3010
        %v3012 = vpop.f32.mrb[0].mxu0
        %3013 = vmatprep.mubr.f32.mxu0 %v2421
        %3014 = vmatmul.mubr.f32.gmra.mrb[0].mxu0 %v2420
        %v3015 = vpop.f32.mrb[0].mxu0
        %v3016 = vadd.f32 %v2871, %v3015
        %v3017 = vpop.f32.mrb[0].mxu0
        %3018 = vmatprep.mubr.f32.mxu0 %v2430
        %3019 = vmatmul.mubr.f32.gmra.mrb[0].mxu0 %v2429
        %v3020 = vpop.f32.mrb[0].mxu0
        %v3021 = vadd.f32 %v2876, %v3020
        %v3022 = vpop.f32.mrb[0].mxu0
        %3023 = vmatprep.mubr.f32.mxu0 %v2439
        %3024 = vmatmul.mubr.f32.gmra.mrb[0].mxu0 %v2438
        %v3025 = vpop.f32.mrb[0].mxu0
        %v3026 = vadd.f32 %v2881, %v3025
        %v3027 = vpop.f32.mrb[0].mxu0
        %3028 = vdwg.mxu0
        %3029 = vmatprep.subr.mxu0 0.0
        %3030 = vmatpush1.msra.mxu0 %v2539
        %3031 = vmatprep.subr.mxu0 0.0
        %3032 = vmatpush1.msra.mxu0 %v2540
        %3033 = vmatprep.subr.mxu0 0.0
        %3034 = vmatpush1.msra.mxu0 %v2541
        %3035 = vmatprep.subr.mxu0 0.0
        %3036 = vmatpush1.msra.mxu0 %v2542
        %3037 = vmatprep.subr.mxu0 0.0
        %3038 = vmatpush1.msra.mxu0 %v2543
        %3039 = vmatprep.subr.mxu0 0.0
        %3040 = vmatpush1.msra.mxu0 %v2544
        %3041 = vmatprep.subr.mxu0 0.0
        %3042 = vmatpush1.msra.mxu0 %v2545
        %3043 = vmatprep.subr.mxu0 0.0
        %3044 = vmatpush1.msra.mxu0 %v2546
        %3045 = vmatprep.subr.mxu0 0.0
        %3046 = vmatpush1.msra.mxu0 %v2547
        %3047 = vmatprep.subr.mxu0 0.0
        %3048 = vmatpush1.msra.mxu0 %v2548
        %3049 = vmatprep.subr.mxu0 0.0
        %3050 = vmatpush1.msra.mxu0 %v2549
        %3051 = vmatprep.subr.mxu0 0.0
        %3052 = vmatpush1.msra.mxu0 %v2550
        %3053 = vmatprep.subr.mxu0 0.0
        %3054 = vmatpush1.msra.mxu0 %v2551
        %3055 = vmatprep.subr.mxu0 0.0
        %3056 = vmatpush1.msra.mxu0 %v2552
        %3057 = vmatprep.subr.mxu0 0.0
        %3058 = vmatpush1.msra.mxu0 %v2553
        %3059 = vmatprep.subr.mxu0 0.0
        %3060 = vmatpush1.msra.mxu0 %v2554
        %3061 = vmatprep.subr.mxu0 0.0
        %3062 = vmatpush1.msra.mxu0 %v2555
        %3063 = vmatprep.subr.mxu0 0.0
        %3064 = vmatpush1.msra.mxu0 %v2556
        %3065 = vmatprep.subr.mxu0 0.0
        %3066 = vmatpush1.msra.mxu0 %v2557
        %3067 = vmatprep.subr.mxu0 0.0
        %3068 = vmatpush1.msra.mxu0 %v2558
        %3069 = vmatprep.subr.mxu0 0.0
        %3070 = vmatpush1.msra.mxu0 %v2559
        %3071 = vmatprep.subr.mxu0 0.0
        %3072 = vmatpush1.msra.mxu0 %v2560
        %3073 = vmatprep.subr.mxu0 0.0
        %3074 = vmatpush1.msra.mxu0 %v2561
        %3075 = vmatprep.subr.mxu0 0.0
        %3076 = vmatpush1.msra.mxu0 %v2562
        %3077 = vmatprep.subr.mxu0 0.0
        %3078 = vmatpush1.msra.mxu0 %v2563
        %3079 = vmatprep.subr.mxu0 0.0
        %3080 = vmatpush1.msra.mxu0 %v2564
        %3081 = vmatprep.subr.mxu0 0.0
        %3082 = vmatpush1.msra.mxu0 %v2565
        %3083 = vmatprep.subr.mxu0 0.0
        %3084 = vmatpush1.msra.mxu0 %v2566
        %3085 = vmatprep.subr.mxu0 0.0
        %3086 = vmatpush1.msra.mxu0 %v2567
        %3087 = vmatprep.subr.mxu0 0.0
        %3088 = vmatpush1.msra.mxu0 %v2568
        %3089 = vmatprep.subr.mxu0 0.0
        %3090 = vmatpush1.msra.mxu0 %v2569
        %3091 = vmatprep.subr.mxu0 0.0
        %3092 = vmatpush1.msra.mxu0 %v2570
        %3093 = vmatprep.mubr.f32.mxu0 %v2306
        %3094 = vmatmul.mubr.f32.gmra.mrb[0].mxu0 %v2305
        %v3095 = vpop.f32.mrb[0].mxu0
        %v3096 = vadd.f32 %v2951, %v3095
        %v3097 = vpop.f32.mrb[0].mxu0
        %3098 = vmatprep.mubr.f32.mxu0 %v2315
        %3099 = vmatmul.mubr.f32.gmra.mrb[0].mxu0 %v2314
        %v3100 = vpop.f32.mrb[0].mxu0
        %v3101 = vadd.f32 %v2956, %v3100
        %v3102 = vpop.f32.mrb[0].mxu0
        %3103 = vmatprep.mubr.f32.mxu0 %v2324
        %3104 = vmatmul.mubr.f32.gmra.mrb[0].mxu0 %v2323
        %v3105 = vpop.f32.mrb[0].mxu0
        %v3106 = vadd.f32 %v2961, %v3105
        %v3107 = vpop.f32.mrb[0].mxu0
        %3108 = vmatprep.mubr.f32.mxu0 %v2333
        %3109 = vmatmul.mubr.f32.gmra.mrb[0].mxu0 %v2332
        %v3110 = vpop.f32.mrb[0].mxu0
        %v3111 = vadd.f32 %v2966, %v3110
        %v3112 = vpop.f32.mrb[0].mxu0
        %3113 = vmatprep.mubr.f32.mxu0 %v2342
        %3114 = vmatmul.mubr.f32.gmra.mrb[0].mxu0 %v2341
        %v3115 = vpop.f32.mrb[0].mxu0
        %v3116 = vadd.f32 %v2971, %v3115
        %v3117 = vpop.f32.mrb[0].mxu0
        %3118 = vmatprep.mubr.f32.mxu0 %v2351
        %3119 = vmatmul.mubr.f32.gmra.mrb[0].mxu0 %v2350
        %v3120 = vpop.f32.mrb[0].mxu0
        %v3121 = vadd.f32 %v2976, %v3120
        %v3122 = vpop.f32.mrb[0].mxu0
        %3123 = vmatprep.mubr.f32.mxu0 %v2360
        %3124 = vmatmul.mubr.f32.gmra.mrb[0].mxu0 %v2359
        %v3125 = vpop.f32.mrb[0].mxu0
        %v3126 = vadd.f32 %v2981, %v3125
        %v3127 = vpop.f32.mrb[0].mxu0
        %3128 = vmatprep.mubr.f32.mxu0 %v2369
        %3129 = vmatmul.mubr.f32.gmra.mrb[0].mxu0 %v2368
        %v3130 = vpop.f32.mrb[0].mxu0
        %v3131 = vadd.f32 %v2986, %v3130
        %v3132 = vpop.f32.mrb[0].mxu0
        %3133 = vmatprep.mubr.f32.mxu0 %v2378
        %3134 = vmatmul.mubr.f32.gmra.mrb[0].mxu0 %v2377
        %v3135 = vpop.f32.mrb[0].mxu0
        %v3136 = vadd.f32 %v2991, %v3135
        %v3137 = vpop.f32.mrb[0].mxu0
        %3138 = vmatprep.mubr.f32.mxu0 %v2387
        %3139 = vmatmul.mubr.f32.gmra.mrb[0].mxu0 %v2386
        %v3140 = vpop.f32.mrb[0].mxu0
        %v3141 = vadd.f32 %v2996, %v3140
        %v3142 = vpop.f32.mrb[0].mxu0
        %3143 = vmatprep.mubr.f32.mxu0 %v2396
        %3144 = vmatmul.mubr.f32.gmra.mrb[0].mxu0 %v2395
        %v3145 = vpop.f32.mrb[0].mxu0
        %v3146 = vadd.f32 %v3001, %v3145
        %v3147 = vpop.f32.mrb[0].mxu0
        %3148 = vmatprep.mubr.f32.mxu0 %v2405
        %3149 = vmatmul.mubr.f32.gmra.mrb[0].mxu0 %v2404
        %v3150 = vpop.f32.mrb[0].mxu0
        %v3151 = vadd.f32 %v3006, %v3150
        %v3152 = vpop.f32.mrb[0].mxu0
        %3153 = vmatprep.mubr.f32.mxu0 %v2414
        %3154 = vmatmul.mubr.f32.gmra.mrb[0].mxu0 %v2413
        %v3155 = vpop.f32.mrb[0].mxu0
        %v3156 = vadd.f32 %v3011, %v3155
        %v3157 = vpop.f32.mrb[0].mxu0
        %3158 = vmatprep.mubr.f32.mxu0 %v2423
        %3159 = vmatmul.mubr.f32.gmra.mrb[0].mxu0 %v2422
        %v3160 = vpop.f32.mrb[0].mxu0
        %v3161 = vadd.f32 %v3016, %v3160
        %v3162 = vpop.f32.mrb[0].mxu0
        %3163 = vmatprep.mubr.f32.mxu0 %v2432
        %3164 = vmatmul.mubr.f32.gmra.mrb[0].mxu0 %v2431
        %v3165 = vpop.f32.mrb[0].mxu0
        %v3166 = vadd.f32 %v3021, %v3165
        %v3167 = vpop.f32.mrb[0].mxu0
        %3168 = vmatprep.mubr.f32.mxu0 %v2441
        %3169 = vmatmul.mubr.f32.gmra.mrb[0].mxu0 %v2440
        %v3170 = vpop.f32.mrb[0].mxu0
        %v3171 = vadd.f32 %v3026, %v3170
        %v3172 = vpop.f32.mrb[0].mxu0
        %3173 = vdwg.mxu0
        %3174 = vmatprep.subr.mxu0 0.0
        %3175 = vmatpush1.msra.mxu0 %v2571
        %3176 = vmatprep.subr.mxu0 0.0
        %3177 = vmatpush1.msra.mxu0 %v2572
        %3178 = vmatprep.subr.mxu0 0.0
        %3179 = vmatpush1.msra.mxu0 %v2573
        %3180 = vmatprep.subr.mxu0 0.0
        %3181 = vmatpush1.msra.mxu0 %v2574
        %3182 = vmatprep.subr.mxu0 0.0
        %3183 = vmatpush1.msra.mxu0 %v2575
        %3184 = vmatprep.subr.mxu0 0.0
        %3185 = vmatpush1.msra.mxu0 %v2576
        %3186 = vmatprep.subr.mxu0 0.0
        %3187 = vmatpush1.msra.mxu0 %v2577
        %3188 = vmatprep.subr.mxu0 0.0
        %3189 = vmatpush1.msra.mxu0 %v2578
        %3190 = vmatprep.subr.mxu0 0.0
        %3191 = vmatpush1.msra.mxu0 %v2579
        %3192 = vmatprep.subr.mxu0 0.0
        %3193 = vmatpush1.msra.mxu0 %v2580
        %3194 = vmatprep.subr.mxu0 0.0
        %3195 = vmatpush1.msra.mxu0 %v2581
        %3196 = vmatprep.subr.mxu0 0.0
        %3197 = vmatpush1.msra.mxu0 %v2582
        %3198 = vmatprep.subr.mxu0 0.0
        %3199 = vmatpush1.msra.mxu0 %v2583
        %3200 = vmatprep.subr.mxu0 0.0
        %3201 = vmatpush1.msra.mxu0 %v2584
        %3202 = vmatprep.subr.mxu0 0.0
        %3203 = vmatpush1.msra.mxu0 %v2585
        %3204 = vmatprep.subr.mxu0 0.0
        %3205 = vmatpush1.msra.mxu0 %v2586
        %3206 = vmatprep.subr.mxu0 0.0
        %3207 = vmatpush1.msra.mxu0 0.0
        %3208 = vmatprep.subr.mxu0 0.0
        %3209 = vmatpush1.msra.mxu0 0.0
        %3210 = vmatprep.subr.mxu0 0.0
        %3211 = vmatpush1.msra.mxu0 0.0
        %3212 = vmatprep.subr.mxu0 0.0
        %3213 = vmatpush1.msra.mxu0 0.0
        %3214 = vmatprep.subr.mxu0 0.0
        %3215 = vmatpush1.msra.mxu0 0.0
        %3216 = vmatprep.subr.mxu0 0.0
        %3217 = vmatpush1.msra.mxu0 0.0
        %3218 = vmatprep.subr.mxu0 0.0
        %3219 = vmatpush1.msra.mxu0 0.0
        %3220 = vmatprep.subr.mxu0 0.0
        %3221 = vmatpush1.msra.mxu0 0.0
        %3222 = vmatprep.subr.mxu0 0.0
        %3223 = vmatpush1.msra.mxu0 0.0
        %3224 = vmatprep.subr.mxu0 0.0
        %3225 = vmatpush1.msra.mxu0 0.0
        %3226 = vmatprep.subr.mxu0 0.0
        %3227 = vmatpush1.msra.mxu0 0.0
        %3228 = vmatprep.subr.mxu0 0.0
        %3229 = vmatpush1.msra.mxu0 0.0
        %3230 = vmatprep.subr.mxu0 0.0
        %3231 = vmatpush1.msra.mxu0 0.0
        %3232 = vmatprep.subr.mxu0 0.0
        %3233 = vmatpush1.msra.mxu0 0.0
        %3234 = vmatprep.subr.mxu0 0.0
        %3235 = vmatpush1.msra.mxu0 0.0
        %3236 = vmatprep.subr.mxu0 0.0
        %3237 = vmatpush1.msra.mxu0 0.0
        %3238 = vmatprep.mubr.f32.mxu0 0.0
        %3239 = vmatmul.mubr.f32.gmra.mrb[0].mxu0 %v2307
        %v3240 = vpop.f32.mrb[0].mxu0
        %v3241 = vadd.f32 %v3096, %v3240
        %v3242 = vpop.f32.mrb[0].mxu0
        %3243 = vmatprep.mubr.f32.mxu0 0.0
        %3244 = vmatmul.mubr.f32.gmra.mrb[0].mxu0 %v2316
        %v3245 = vpop.f32.mrb[0].mxu0
        %v3246 = vadd.f32 %v3101, %v3245
        %v3247 = vpop.f32.mrb[0].mxu0
        %3248 = vmatprep.mubr.f32.mxu0 0.0
        %3249 = vmatmul.mubr.f32.gmra.mrb[0].mxu0 %v2325
        %v3250 = vpop.f32.mrb[0].mxu0
        %v3251 = vadd.f32 %v3106, %v3250
        %v3252 = vpop.f32.mrb[0].mxu0
        %3253 = vmatprep.mubr.f32.mxu0 0.0
        %3254 = vmatmul.mubr.f32.gmra.mrb[0].mxu0 %v2334
        %v3255 = vpop.f32.mrb[0].mxu0
        %v3256 = vadd.f32 %v3111, %v3255
        %v3257 = vpop.f32.mrb[0].mxu0
        %3258 = vmatprep.mubr.f32.mxu0 0.0
        %3259 = vmatmul.mubr.f32.gmra.mrb[0].mxu0 %v2343
        %v3260 = vpop.f32.mrb[0].mxu0
        %v3261 = vadd.f32 %v3116, %v3260
        %v3262 = vpop.f32.mrb[0].mxu0
        %3263 = vmatprep.mubr.f32.mxu0 0.0
        %3264 = vmatmul.mubr.f32.gmra.mrb[0].mxu0 %v2352
        %v3265 = vpop.f32.mrb[0].mxu0
        %v3266 = vadd.f32 %v3121, %v3265
        %v3267 = vpop.f32.mrb[0].mxu0
        %3268 = vmatprep.mubr.f32.mxu0 0.0
        %3269 = vmatmul.mubr.f32.gmra.mrb[0].mxu0 %v2361
        %v3270 = vpop.f32.mrb[0].mxu0
        %v3271 = vadd.f32 %v3126, %v3270
        %v3272 = vpop.f32.mrb[0].mxu0
        %3273 = vmatprep.mubr.f32.mxu0 0.0
        %3274 = vmatmul.mubr.f32.gmra.mrb[0].mxu0 %v2370
        %v3275 = vpop.f32.mrb[0].mxu0
        %v3276 = vadd.f32 %v3131, %v3275
        %v3277 = vpop.f32.mrb[0].mxu0
        %3278 = vmatprep.mubr.f32.mxu0 0.0
        %3279 = vmatmul.mubr.f32.gmra.mrb[0].mxu0 %v2379
        %v3280 = vpop.f32.mrb[0].mxu0
        %v3281 = vadd.f32 %v3136, %v3280
        %v3282 = vpop.f32.mrb[0].mxu0
        %3283 = vmatprep.mubr.f32.mxu0 0.0
        %3284 = vmatmul.mubr.f32.gmra.mrb[0].mxu0 %v2388
        %v3285 = vpop.f32.mrb[0].mxu0
        %v3286 = vadd.f32 %v3141, %v3285
        %v3287 = vpop.f32.mrb[0].mxu0
        %3288 = vmatprep.mubr.f32.mxu0 0.0
        %3289 = vmatmul.mubr.f32.gmra.mrb[0].mxu0 %v2397
        %v3290 = vpop.f32.mrb[0].mxu0
        %v3291 = vadd.f32 %v3146, %v3290
        %v3292 = vpop.f32.mrb[0].mxu0
        %3293 = vmatprep.mubr.f32.mxu0 0.0
        %3294 = vmatmul.mubr.f32.gmra.mrb[0].mxu0 %v2406
        %v3295 = vpop.f32.mrb[0].mxu0
        %v3296 = vadd.f32 %v3151, %v3295
        %v3297 = vpop.f32.mrb[0].mxu0
        %3298 = vmatprep.mubr.f32.mxu0 0.0
        %3299 = vmatmul.mubr.f32.gmra.mrb[0].mxu0 %v2415
        %v3300 = vpop.f32.mrb[0].mxu0
        %v3301 = vadd.f32 %v3156, %v3300
        %v3302 = vpop.f32.mrb[0].mxu0
        %3303 = vmatprep.mubr.f32.mxu0 0.0
        %3304 = vmatmul.mubr.f32.gmra.mrb[0].mxu0 %v2424
        %v3305 = vpop.f32.mrb[0].mxu0
        %v3306 = vadd.f32 %v3161, %v3305
        %v3307 = vpop.f32.mrb[0].mxu0
        %3308 = vmatprep.mubr.f32.mxu0 0.0
        %3309 = vmatmul.mubr.f32.gmra.mrb[0].mxu0 %v2433
        %v3310 = vpop.f32.mrb[0].mxu0
        %v3311 = vadd.f32 %v3166, %v3310
        %v3312 = vpop.f32.mrb[0].mxu0
        %3313 = vmatprep.mubr.f32.mxu0 0.0
        %3314 = vmatmul.mubr.f32.gmra.mrb[0].mxu0 %v2442
        %v3315 = vpop.f32.mrb[0].mxu0
        %v3316 = vadd.f32 %v3171, %v3315
        %v3317 = vpop.f32.mrb[0].mxu0
        %3318 = vdwg.mxu0
        %v3319 = vld [vmem:[%s311] sm:$0xff]
        %v3320 = vld [vmem:[%s311 + $0x8] sm:$0xff]
        %v3321 = vld [vmem:[%s311 + $0x10] sm:$0xff]
        %v3322 = vld [vmem:[%s311 + $0x18] sm:$0xff]
        %v3323 = vld [vmem:[%s311 + $0x20] sm:$0xff]
        %v3324 = vld [vmem:[%s311 + $0x28] sm:$0xff]
        %v3325 = vld [vmem:[%s311 + $0x30] sm:$0xff]
        %v3326 = vld [vmem:[%s311 + $0x38] sm:$0xff]
        %v3327 = vld [vmem:[%s311 + $0x40] sm:$0xff]
        %v3328 = vld [vmem:[%s311 + $0x48] sm:$0xff]
        %v3329 = vld [vmem:[%s311 + $0x50] sm:$0xff]
        %v3330 = vld [vmem:[%s311 + $0x58] sm:$0xff]
        %v3331 = vld [vmem:[%s311 + $0x60] sm:$0xff]
        %v3332 = vld [vmem:[%s311 + $0x68] sm:$0xff]
        %v3333 = vld [vmem:[%s311 + $0x70] sm:$0xff]
        %v3334 = vld [vmem:[%s311 + $0x78] sm:$0xff]
        %v3335 = vadd.f32 %v3241, %v3319
        %v3336 = vadd.f32 %v3246, %v3320
        %v3337 = vadd.f32 %v3251, %v3321
        %v3338 = vadd.f32 %v3256, %v3322
        %v3339 = vadd.f32 %v3261, %v3323
        %v3340 = vadd.f32 %v3266, %v3324
        %v3341 = vadd.f32 %v3271, %v3325
        %v3342 = vadd.f32 %v3276, %v3326
        %v3343 = vadd.f32 %v3281, %v3327
        %v3344 = vadd.f32 %v3286, %v3328
        %v3345 = vadd.f32 %v3291, %v3329
        %v3346 = vadd.f32 %v3296, %v3330
        %v3347 = vadd.f32 %v3301, %v3331
        %v3348 = vadd.f32 %v3306, %v3332
        %v3349 = vadd.f32 %v3311, %v3333
        %v3350 = vadd.f32 %v3316, %v3334
        %3351 = vst [vmem:[%s361] sm:$0xff] %v3335
        %3352 = vst [vmem:[%s361 + $0x8] sm:$0xff] %v3336
        %3353 = vst [vmem:[%s361 + $0x10] sm:$0xff] %v3337
        %3354 = vst [vmem:[%s361 + $0x18] sm:$0xff] %v3338
        %3355 = vst [vmem:[%s361 + $0x20] sm:$0xff] %v3339
        %3356 = vst [vmem:[%s361 + $0x28] sm:$0xff] %v3340
        %3357 = vst [vmem:[%s361 + $0x30] sm:$0xff] %v3341
        %3358 = vst [vmem:[%s361 + $0x38] sm:$0xff] %v3342
        %3359 = vst [vmem:[%s361 + $0x40] sm:$0xff] %v3343
        %3360 = vst [vmem:[%s361 + $0x48] sm:$0xff] %v3344
        %3361 = vst [vmem:[%s361 + $0x50] sm:$0xff] %v3345
        %3362 = vst [vmem:[%s361 + $0x58] sm:$0xff] %v3346
        %3363 = vst [vmem:[%s361 + $0x60] sm:$0xff] %v3347
        %3364 = vst [vmem:[%s361 + $0x68] sm:$0xff] %v3348
        %3365 = vst [vmem:[%s361 + $0x70] sm:$0xff] %v3349
        %3366 = vst [vmem:[%s361 + $0x78] sm:$0xff] %v3350
        %s3367 = sand.u32 %s189, 1
        %s3368 = scalar_lea.sflag [#allocation6], %s3367
        %s3369 = sand.u32 %s189, 1
        %s3370 = smul.addr %s3369, 128
        %s3371 = scalar_lea.vmem [#allocation12], %s3370
        // Predicated region
        $region69: #{tpu_custom_call.1} parent=43 // pred_check
          %p3372 = pneg %p199
        $region70: #{tpu_custom_call.1} parent=43 // pred_check_branch
          %3374 = sbr.rel (%p3372) target = $region72
        $region71: #{tpu_custom_call.1} parent=43 // pred_region
          %s3375 = smul.u32 8, %s32
          %s3377 = ssub.s32 2048, 2048
          %3378 = vsyncadd %s3368, %s3377
          %s3379 = smul.addr %s3375, 2
          %s3380 = smul.addr %s31, 32
          %s3381 = sadd.s32 %s3379, %s3380
          %s3382 = smul.addr %s3381, 128
          %s3383 = scalar_lea.hbm %s6, %s3382
          %s3384 = sshll.u32 %s3371, 4
          %s3385 = int_to_ptr.vmem [resolvable:$true] %s3384
          %3390 = dma.vmem_to_hbm [thread:$0]  %s3385, 2048, %s3383, %s3368, 128, 128, 8
        $region72: #{tpu_custom_call.1} parent=43 // pred_fallthru
          _
      $region44: #{tpu_custom_call.1} parent=5 // pred_fallthru
        _
      %p3391 = scmp.le.s32.totalorder 2, %s22
      // Predicated region
      $region73: #{tpu_custom_call.1} parent=5 // pred_check
        %p3392 = pneg %p3391
      $region74: #{tpu_custom_call.1} parent=5 // pred_check_branch
        %3394 = sbr.rel (%p3392) target = $region76
      $region75: #{tpu_custom_call.1} parent=5 // pred_region
        %s3395 = ssub.s32 %s22, 2
        // Predicated region
        $region77: #{tpu_custom_call.1} parent=75 // pred_check
          %p3396 = pneg %p205
        $region78: #{tpu_custom_call.1} parent=75 // pred_check_branch
          %3398 = sbr.rel (%p3396) target = $region80
        $region79: #{tpu_custom_call.1} parent=75 // pred_region
          %s3399 = sand.u32 %s190, 1
          %s3400 = scalar_lea.sflag [#allocation6], %s3399
          %s3401 = sand.u32 %s190, 1
          %s3402 = smul.addr %s3401, 128
          %s3403 = scalar_lea.vmem [#allocation12], %s3402
          %3404 = dma.done %s3400, 2048
        $region80: #{tpu_custom_call.1} parent=75 // pred_fallthru
          _
      $region76: #{tpu_custom_call.1} parent=5 // pred_fallthru
        _
    $region6: #{tpu_custom_call.1} parent=1 // loop_footer
      %s26 = sadd.s32 1, %s22
    $region7: #{tpu_custom_call.1} parent=1 // loop_footer_branch
      %21 = sbr.rel target = $region3
    $region8: #{tpu_custom_call.1} parent=1 // loop_exit
      _
    %3405 = vsyncpa [#allocation5], 1
    %s3406 = scalar_lea.sflag [#allocation5], 1
    %3407 = vsyncpa %s3406, 1
    %3408 = vsyncpa [#allocation8], 1
    %s3409 = scalar_lea.sflag [#allocation8], 1
    %3410 = vsyncpa %s3409, 1
    %3411 = vsyncpa [#allocation11], 1
    %3412 = vsyncpa [#allocation6], 1
    %s3413 = scalar_lea.sflag [#allocation6], 1
    %3414 = vsyncpa %s3413, 1

</llo_original>
